<compile_context>
chip_gen: v7x
topology: tpu7x:2x2x1
jax: 0.10.0
libtpu: 0.0.40
codegen_flags: <defaults>
</compile_context>

<pallas_src>
import jax
import jax.numpy as jnp
from jax.experimental import pallas as pl
from jax.experimental.pallas import tpu as pltpu

LEAKY_SLOPE = 0.01  # torch.nn.LeakyReLU default negative_slope


def _round_up(x, m):
    return ((x + m - 1) // m) * m


def _mlp_ensemble_kernel(x1_ref, x2_ref,
                         w1a_ref, b1a_ref, w2a_ref, b2a_ref,
                         wb_ref, bb_ref,
                         o_ref):
    # First layer, one matmul per branch (bf16 operands, f32 accumulation).
    h1 = jnp.dot(x1_ref[...], w1a_ref[...],
                 preferred_element_type=jnp.float32) + b1a_ref[...]
    h2 = jnp.dot(x2_ref[...], w2a_ref[...],
                 preferred_element_type=jnp.float32) + b2a_ref[...]
    # Dropout -> identity (eval); LeakyReLU in f32 (v5e has no bf16 VPU).
    h1 = jnp.where(h1 >= 0, h1, LEAKY_SLOPE * h1)
    h2 = jnp.where(h2 >= 0, h2, LEAKY_SLOPE * h2)
    # Fused second layer: concat(h1,h2) @ concat_rows(w1b,w2b) + (b1b+b2b), output padded to
    # 128 lanes so the store is a full unmasked vst.
    h = jnp.concatenate([h1, h2], axis=-1).astype(wb_ref.dtype)  # [tile_b, 800] bf16
    out = jnp.dot(h, wb_ref[...], preferred_element_type=jnp.float32) + bb_ref[...]
    o_ref[...] = out.astype(o_ref.dtype)


def init_params(key, input_dim=406, hidden=400, out_dim=2):
    """Deterministic init mimicking torch.nn.Linear (uniform +/- 1/sqrt(fan_in)).
    Weights stored pre-transposed as [in, out], f32 (prep_params handles bf16/pad/fusion)."""
    ks = jax.random.split(key, 8)

    def lin(kw, kb, fan_in, fan_out):
        bound = 1.0 / jnp.sqrt(fan_in)
        w = jax.random.uniform(kw, (fan_in, fan_out), jnp.float32, -bound, bound)
        b = jax.random.uniform(kb, (fan_out,), jnp.float32, -bound, bound)
        return w, b

    w1a, b1a = lin(ks[0], ks[1], input_dim, hidden)
    w1b, b1b = lin(ks[2], ks[3], hidden, out_dim)
    w2a, b2a = lin(ks[4], ks[5], input_dim, hidden)
    w2b, b2b = lin(ks[6], ks[7], hidden, out_dim)
    return dict(w1a=w1a, b1a=b1a, w1b=w1b, b1b=b1b,
                w2a=w2a, b2a=b2a, w2b=w2b, b2b=b2b)


def prep_params(params, input_dim=406, hidden=400, out_dim=2):
    """One-time prep: pad K 406->512, fuse second layer, pad output lanes to 128, cast bf16."""
    d_pad = _round_up(input_dim, 128)     # 512
    out_pad = 128

    def pad_k(w):  # [input_dim, hidden] -> [d_pad, hidden]
        return jnp.pad(w, ((0, d_pad - input_dim), (0, 0)))

    w1a = pad_k(params["w1a"]).astype(jnp.bfloat16)
    w2a = pad_k(params["w2a"]).astype(jnp.bfloat16)
    b1a = params["b1a"][None, :].astype(jnp.float32)    # [1, hidden]
    b2a = params["b2a"][None, :].astype(jnp.float32)

    # Fused second layer: rows = [w1b ; w2b] -> [2*hidden, out_dim], cols zero-padded to 128.
    wb = jnp.concatenate([params["w1b"], params["w2b"]], axis=0)
    wb = jnp.pad(wb, ((0, 0), (0, out_pad - out_dim))).astype(jnp.bfloat16)
    bb = jnp.pad((params["b1b"] + params["b2b"])[None, :],
                 ((0, 0), (0, out_pad - out_dim))).astype(jnp.float32)

    return dict(w1a=w1a, b1a=b1a, w2a=w2a, b2a=b2a, wb=wb, bb=bb,
                input_dim=input_dim, hidden=hidden, out_dim=out_dim,
                d_pad=d_pad, out_pad=out_pad)


def mlp_ensemble_forward(x1, x2, prepped):
    B, D = x1.shape
    d_pad = prepped["d_pad"]
    hidden = prepped["hidden"]
    out_pad = prepped["out_pad"]
    out_dim = prepped["out_dim"]

    tile_b = min(128, _round_up(B, 8))
    b_pad = _round_up(B, tile_b)

    def prep_x(x):
        x = jnp.pad(x, ((0, b_pad - B), (0, d_pad - D)))
        return x.astype(jnp.bfloat16)

    x1p = prep_x(x1)
    x2p = prep_x(x2)

    grid = (b_pad // tile_b,)

    out = pl.pallas_call(
        _mlp_ensemble_kernel,
        out_shape=jax.ShapeDtypeStruct((b_pad, out_pad), jnp.float32),
        grid_spec=pltpu.PrefetchScalarGridSpec(
            num_scalar_prefetch=0,
            grid=grid,
            in_specs=[
                # activations: streamed per batch tile
                pl.BlockSpec((tile_b, d_pad), lambda i: (i, 0)),
                pl.BlockSpec((tile_b, d_pad), lambda i: (i, 0)),
                # weights/biases: constant block index -> loaded once, VMEM-resident
                pl.BlockSpec((d_pad, hidden), lambda i: (0, 0)),
                pl.BlockSpec((1, hidden), lambda i: (0, 0)),
                pl.BlockSpec((d_pad, hidden), lambda i: (0, 0)),
                pl.BlockSpec((1, hidden), lambda i: (0, 0)),
                pl.BlockSpec((2 * hidden, out_pad), lambda i: (0, 0)),
                pl.BlockSpec((1, out_pad), lambda i: (0, 0)),
            ],
            out_specs=pl.BlockSpec((tile_b, out_pad), lambda i: (i, 0)),
        ),
        compiler_params=pltpu.CompilerParams(
            dimension_semantics=("parallel",)),
    )(x1p, x2p,
      prepped["w1a"], prepped["b1a"], prepped["w2a"], prepped["b2a"],
      prepped["wb"], prepped["bb"])

    return out[:B, :out_dim]


def _reference(x1, x2, p):
    """Pure-f32 reference of the original module (eval mode)."""
    def branch(x, wa, ba, wb, bb):
        h = x @ wa + ba
        h = jnp.where(h >= 0, h, LEAKY_SLOPE * h)
        return h @ wb + bb
    return (branch(x1, p["w1a"], p["b1a"], p["w1b"], p["b1b"])
            + branch(x2, p["w2a"], p["b2a"], p["w2b"], p["b2b"]))


if __name__ == "__main__":
    key = jax.random.PRNGKey(0)
    k_p, k_x1, k_x2 = jax.random.split(key, 3)

    input_dim = 406   # module default
    batch = 256       # exercises the batch grid (2 tiles of 128)

    params = init_params(k_p, input_dim=input_dim)
    prepped = prep_params(params, input_dim=input_dim)

    x1 = jax.random.normal(k_x1, (batch, input_dim), jnp.float32)
    x2 = jax.random.normal(k_x2, (batch, input_dim), jnp.float32)

    out = mlp_ensemble_forward(x1, x2, prepped)
    out = jax.block_until_ready(out)

    ref = _reference(x1, x2, params)
    assert out.shape == (batch, 2), out.shape
    # bf16 weights/activations vs f32 reference -> loosened tolerance.
    assert jnp.allclose(out, ref, atol=5e-2, rtol=5e-2), "mismatch vs reference"

    print("KERNEL_OK")
</pallas_src>

<mosaic_0001>
module attributes {stable_mosaic.version = 11 : i64} {
  func.func @_mlp_ensemble_kernel(%arg0: i32, %arg1: memref<128x512xbf16, #tpu.memory_space<vmem>>, %arg2: memref<128x512xbf16, #tpu.memory_space<vmem>>, %arg3: memref<512x400xbf16, #tpu.memory_space<vmem>>, %arg4: memref<1x400xf32, #tpu.memory_space<vmem>>, %arg5: memref<512x400xbf16, #tpu.memory_space<vmem>>, %arg6: memref<1x400xf32, #tpu.memory_space<vmem>>, %arg7: memref<800x128xbf16, #tpu.memory_space<vmem>>, %arg8: memref<1x128xf32, #tpu.memory_space<vmem>>, %arg9: memref<128x128xf32, #tpu.memory_space<vmem>>) attributes {dimension_semantics = [#tpu.dimension_semantics<parallel>], iteration_bounds = array<i64: 2>, scalar_prefetch = 0 : i64, scratch_operands = 0 : i64, tpu.core_type = #tpu.core_type<tc>, window_params = [{transform_indices = @transform_0, window_bounds = array<i64: 128, 512>}, {transform_indices = @transform_1, window_bounds = array<i64: 128, 512>}, {pipeline_mode = #tpu.pipeline_mode<synchronous>, transform_indices = @transform_2, window_bounds = array<i64: 512, 400>}, {pipeline_mode = #tpu.pipeline_mode<synchronous>, transform_indices = @transform_3, window_bounds = array<i64: 1, 400>}, {pipeline_mode = #tpu.pipeline_mode<synchronous>, transform_indices = @transform_4, window_bounds = array<i64: 512, 400>}, {pipeline_mode = #tpu.pipeline_mode<synchronous>, transform_indices = @transform_5, window_bounds = array<i64: 1, 400>}, {pipeline_mode = #tpu.pipeline_mode<synchronous>, transform_indices = @transform_6, window_bounds = array<i64: 800, 128>}, {pipeline_mode = #tpu.pipeline_mode<synchronous>, transform_indices = @transform_7, window_bounds = array<i64: 1, 128>}, {transform_indices = @transform_8, window_bounds = array<i64: 128, 128>}]} {
    %c0 = arith.constant 0 : index
    %c0_0 = arith.constant 0 : index
    %0 = vector.load %arg1[%c0, %c0_0] : memref<128x512xbf16, #tpu.memory_space<vmem>>, vector<128x512xbf16>
    %c0_1 = arith.constant 0 : index
    %c0_2 = arith.constant 0 : index
    %1 = vector.load %arg3[%c0_1, %c0_2] : memref<512x400xbf16, #tpu.memory_space<vmem>>, vector<512x400xbf16>
    %cst = arith.constant dense<0.000000e+00> : vector<128x400xf32>
    %2 = tpu.matmul %0, %1, %cst {dimension_numbers = #tpu.dot_dimension_numbers<[1], [0], [0], [1], [0, 0, 1, 1], [], []>} : vector<128x512xbf16>, vector<512x400xbf16>, vector<128x400xf32> -> vector<128x400xf32>
    %c0_3 = arith.constant 0 : index
    %c0_4 = arith.constant 0 : index
    %3 = vector.load %arg4[%c0_3, %c0_4] : memref<1x400xf32, #tpu.memory_space<vmem>>, vector<1x400xf32>
    %4 = vector.broadcast %3 : vector<1x400xf32> to vector<128x400xf32>
    %5 = arith.addf %2, %4 : vector<128x400xf32>
    %c0_5 = arith.constant 0 : index
    %c0_6 = arith.constant 0 : index
    %6 = vector.load %arg2[%c0_5, %c0_6] : memref<128x512xbf16, #tpu.memory_space<vmem>>, vector<128x512xbf16>
    %c0_7 = arith.constant 0 : index
    %c0_8 = arith.constant 0 : index
    %7 = vector.load %arg5[%c0_7, %c0_8] : memref<512x400xbf16, #tpu.memory_space<vmem>>, vector<512x400xbf16>
    %cst_9 = arith.constant dense<0.000000e+00> : vector<128x400xf32>
    %8 = tpu.matmul %6, %7, %cst_9 {dimension_numbers = #tpu.dot_dimension_numbers<[1], [0], [0], [1], [0, 0, 1, 1], [], []>} : vector<128x512xbf16>, vector<512x400xbf16>, vector<128x400xf32> -> vector<128x400xf32>
    %c0_10 = arith.constant 0 : index
    %c0_11 = arith.constant 0 : index
    %9 = vector.load %arg6[%c0_10, %c0_11] : memref<1x400xf32, #tpu.memory_space<vmem>>, vector<1x400xf32>
    %10 = vector.broadcast %9 : vector<1x400xf32> to vector<128x400xf32>
    %11 = arith.addf %8, %10 : vector<128x400xf32>
    %cst_12 = arith.constant 0.000000e+00 : f32
    %12 = vector.broadcast %cst_12 : f32 to vector<128x400xf32>
    %13 = arith.cmpf oge, %5, %12 : vector<128x400xf32>
    %cst_13 = arith.constant 0.00999999977 : f32
    %14 = vector.broadcast %cst_13 : f32 to vector<128x400xf32>
    %15 = arith.mulf %14, %5 : vector<128x400xf32>
    %16 = arith.select %13, %5, %15 : vector<128x400xi1>, vector<128x400xf32>
    %cst_14 = arith.constant 0.000000e+00 : f32
    %17 = vector.broadcast %cst_14 : f32 to vector<128x400xf32>
    %18 = arith.cmpf oge, %11, %17 : vector<128x400xf32>
    %cst_15 = arith.constant 0.00999999977 : f32
    %19 = vector.broadcast %cst_15 : f32 to vector<128x400xf32>
    %20 = arith.mulf %19, %11 : vector<128x400xf32>
    %21 = arith.select %18, %11, %20 : vector<128x400xi1>, vector<128x400xf32>
    %22 = tpu.concatenate %16, %21 in 1 : vector<128x400xf32>, vector<128x400xf32> -> vector<128x800xf32>
    %23 = arith.truncf %22 : vector<128x800xf32> to vector<128x800xbf16>
    %c0_16 = arith.constant 0 : index
    %c0_17 = arith.constant 0 : index
    %24 = vector.load %arg7[%c0_16, %c0_17] : memref<800x128xbf16, #tpu.memory_space<vmem>>, vector<800x128xbf16>
    %cst_18 = arith.constant dense<0.000000e+00> : vector<128x128xf32>
    %25 = tpu.matmul %23, %24, %cst_18 {dimension_numbers = #tpu.dot_dimension_numbers<[1], [0], [0], [1], [0, 0, 1, 1], [], []>} : vector<128x800xbf16>, vector<800x128xbf16>, vector<128x128xf32> -> vector<128x128xf32>
    %c0_19 = arith.constant 0 : index
    %c0_20 = arith.constant 0 : index
    %26 = vector.load %arg8[%c0_19, %c0_20] : memref<1x128xf32, #tpu.memory_space<vmem>>, vector<1x128xf32>
    %27 = vector.broadcast %26 : vector<1x128xf32> to vector<128x128xf32>
    %28 = arith.addf %25, %27 : vector<128x128xf32>
    %c0_21 = arith.constant 0 : index
    %c0_22 = arith.constant 0 : index
    %29 = vector.load %arg9[%c0_21, %c0_22] : memref<128x128xf32, #tpu.memory_space<vmem>>, vector<128x128xf32>
    tpu.vector_store %arg9[%c0_21, %c0_22], %28 {strides = array<i32>} : memref<128x128xf32, #tpu.memory_space<vmem>>, vector<128x128xf32>,
    return
  }
  func.func @transform_0(%arg0: i32) -> (i32, i32) {
    %c0_i32 = arith.constant 0 : i32
    %c0_i32_0 = arith.constant 0 : i32
    return %arg0, %c0_i32 : i32, i32
  }
  func.func @transform_1(%arg0: i32) -> (i32, i32) {
    %c0_i32 = arith.constant 0 : i32
    %c0_i32_0 = arith.constant 0 : i32
    return %arg0, %c0_i32 : i32, i32
  }
  func.func @transform_2(%arg0: i32) -> (i32, i32) {
    %c0_i32 = arith.constant 0 : i32
    %c0_i32_0 = arith.constant 0 : i32
    %c0_i32_1 = arith.constant 0 : i32
    return %c0_i32, %c0_i32_0 : i32, i32
  }
  func.func @transform_3(%arg0: i32) -> (i32, i32) {
    %c0_i32 = arith.constant 0 : i32
    %c0_i32_0 = arith.constant 0 : i32
    %c0_i32_1 = arith.constant 0 : i32
    return %c0_i32, %c0_i32_0 : i32, i32
  }
  func.func @transform_4(%arg0: i32) -> (i32, i32) {
    %c0_i32 = arith.constant 0 : i32
    %c0_i32_0 = arith.constant 0 : i32
    %c0_i32_1 = arith.constant 0 : i32
    return %c0_i32, %c0_i32_0 : i32, i32
  }
  func.func @transform_5(%arg0: i32) -> (i32, i32) {
    %c0_i32 = arith.constant 0 : i32
    %c0_i32_0 = arith.constant 0 : i32
    %c0_i32_1 = arith.constant 0 : i32
    return %c0_i32, %c0_i32_0 : i32, i32
  }
  func.func @transform_6(%arg0: i32) -> (i32, i32) {
    %c0_i32 = arith.constant 0 : i32
    %c0_i32_0 = arith.constant 0 : i32
    %c0_i32_1 = arith.constant 0 : i32
    return %c0_i32, %c0_i32_0 : i32, i32
  }
  func.func @transform_7(%arg0: i32) -> (i32, i32) {
    %c0_i32 = arith.constant 0 : i32
    %c0_i32_0 = arith.constant 0 : i32
    %c0_i32_1 = arith.constant 0 : i32
    return %c0_i32, %c0_i32_0 : i32, i32
  }
  func.func @transform_8(%arg0: i32) -> (i32, i32) {
    %c0_i32 = arith.constant 0 : i32
    %c0_i32_0 = arith.constant 0 : i32
    return %arg0, %c0_i32 : i32, i32
  }
}

</mosaic_0001>

<llo_original>
// kernel: tpu_custom_call.1
$region0: #{tpu_custom_call.1}
  #allocation0 [shape = 'u32[]', space=smem, size = 0x4, offset = 0x4, fixed_abs, tag = 'smem constant byte address 0x4 - core index']
  #allocation1 [shape = 'u32[144,128]{1,0:T(1,128)}', space=vmem, size = 0x12000, scoped, tag = 'internal scratch']
  %s0 = inlined_call_operand.vmem [shape: bf16[256,512], index: 0, kind: input, shape index: {}]
  %s1 = inlined_call_operand.vmem [shape: bf16[256,512], index: 1, kind: input, shape index: {}]
  %s2 = inlined_call_operand.vmem [shape: bf16[512,400], index: 2, kind: input, shape index: {}]
  %s3 = inlined_call_operand.vmem [shape: f32[1,400], index: 3, kind: input, shape index: {}]
  %s4 = inlined_call_operand.vmem [shape: bf16[512,400], index: 4, kind: input, shape index: {}]
  %s5 = inlined_call_operand.vmem [shape: f32[1,400], index: 5, kind: input, shape index: {}]
  %s6 = inlined_call_operand.vmem [shape: bf16[800,128], index: 6, kind: input, shape index: {}]
  %s7 = inlined_call_operand.vmem [shape: f32[1,128], index: 7, kind: input, shape index: {}]
  %s8 = inlined_call_operand.hbm [shape: f32[256,128], index: 8, kind: output, shape index: {}]
  %s9 = sld [smem:[#allocation0]]
  $region65: #{tpu_custom_call.1} parent=0
    _
  %s11 = ssub.s32 1, %s9
  %s12 = scalar_select 0, %s11, %s9
  $region1: #{tpu_custom_call.1} parent=0
    #allocation2 [shape = 'u8[131072]{0}', space=vmem, size = 0x20000, scoped, tag = 'output window, operand 0']
    #allocation3 [shape = 's32[2]{0}', space=sflag, size = 0x8, scoped, tag = 'scoped memory for tpu_custom_call.1']
    %13 = vsyncpa [#allocation3], 0
    %s14 = scalar_lea.sflag [#allocation3], 1
    %15 = vsyncpa %s14, 0
    loop: start=0, step=1, limit=4
    $region2: #{tpu_custom_call.1} parent=1 // loop_pre_header
      _
    $region3: #{tpu_custom_call.1} parent=1 // loop_header
      %s17 = sphi 0, %s21
      %p18 = scmp.ge.s32.totalorder %s17, 4
      %s27 = sphi 0, %s29
      %s30 = sphi 0, %s27
      %s31 = sphi 0, %s30
      %s47 = sphi 0, %s31
      %s53 = sphi 0, %s55
      %s56 = sphi 0, %s53
      %s57 = sphi 0, %s56
      %s73 = sphi 0, %s57
      %s77 = sphi 0, %s77
      %s79 = sphi 0, %s77
      %s80 = sphi 0, %s79
      %s94 = sphi 0, %s80
      %s98 = sphi 0, %s98
      %s100 = sphi 0, %s98
      %s101 = sphi 0, %s100
      %s115 = sphi 0, %s101
      %s119 = sphi 0, %s119
      %s121 = sphi 0, %s119
      %s122 = sphi 0, %s121
      %s136 = sphi 0, %s122
      %s140 = sphi 0, %s140
      %s142 = sphi 0, %s140
      %s143 = sphi 0, %s142
      %s157 = sphi 0, %s143
      %s161 = sphi 0, %s161
      %s163 = sphi 0, %s161
      %s164 = sphi 0, %s163
      %s178 = sphi 0, %s164
      %s182 = sphi 0, %s182
      %s184 = sphi 0, %s182
      %s185 = sphi 0, %s184
      %s199 = sphi 0, %s185
      %s205 = sphi 0, %s207
      %s208 = sphi 0, %s205
      %s209 = sphi 0, %s208
      %s225 = sphi 0, %s209
    $region4: #{tpu_custom_call.1} parent=1 // loop_header_branch
      %20 = sbr.rel (%p18) target = $region8
    $region5: #{tpu_custom_call.1} parent=1 // loop_body
      %s22 = ssub.s32 %s17, 1
      %s23 = ssub.s32 %s17, 2
      %s24 = sadd.s32 %s17, 1
      %s25 = ssub.s32 %s17, %s24
      %p26 = scmp.eq.s32.totalorder %s25, 0
      %s28 = sadd.s32 %s27, 1
      %s29 = scalar_select %p26, %s27, %s28
      %p32 = pneg %p26
      %p33 = scmp.eq.s32.totalorder %s17, 1
      %p34 = por %p32, %p33
      %p35 = scmp.ne.s32.totalorder %s27, %s30
      %p36 = scmp.eq.s32.totalorder %s17, 0
      %p37 = por %p35, %p36
      %p38 = scmp.ne.s32.totalorder %s27, %s30
      %p39 = scmp.eq.s32.totalorder %s22, 1
      %p40 = por %p38, %p39
      %p41 = scmp.ne.s32.totalorder %s30, %s31
      %p42 = scmp.eq.s32.totalorder %s22, 0
      %p43 = por %p41, %p42
      %p44 = scmp.ne.s32.totalorder %s30, %s31
      %p45 = scmp.eq.s32.totalorder %s23, 1
      %p46 = por %p44, %p45
      %p48 = scmp.ne.s32.totalorder %s31, %s47
      %p49 = scmp.eq.s32.totalorder %s23, 0
      %p50 = por %p48, %p49
      %s51 = ssub.s32 %s17, %s24
      %p52 = scmp.eq.s32.totalorder %s51, 0
      %s54 = sadd.s32 %s53, 1
      %s55 = scalar_select %p52, %s53, %s54
      %p58 = pneg %p52
      %p59 = scmp.eq.s32.totalorder %s17, 1
      %p60 = por %p58, %p59
      %p61 = scmp.ne.s32.totalorder %s53, %s56
      %p62 = scmp.eq.s32.totalorder %s17, 0
      %p63 = por %p61, %p62
      %p64 = scmp.ne.s32.totalorder %s53, %s56
      %p65 = scmp.eq.s32.totalorder %s22, 1
      %p66 = por %p64, %p65
      %p67 = scmp.ne.s32.totalorder %s56, %s57
      %p68 = scmp.eq.s32.totalorder %s22, 0
      %p69 = por %p67, %p68
      %p70 = scmp.ne.s32.totalorder %s56, %s57
      %p71 = scmp.eq.s32.totalorder %s23, 1
      %p72 = por %p70, %p71
      %p74 = scmp.ne.s32.totalorder %s57, %s73
      %p75 = scmp.eq.s32.totalorder %s23, 0
      %p76 = por %p74, %p75
      %s78 = sadd.s32 %s77, 1
      %p81 = scmp.eq.s32.totalorder %s17, 1
      %p82 = scmp.ne.s32.totalorder %s77, %s79
      %p83 = scmp.eq.s32.totalorder %s17, 0
      %p84 = por %p82, %p83
      %p85 = scmp.ne.s32.totalorder %s77, %s79
      %p86 = scmp.eq.s32.totalorder %s22, 1
      %p87 = por %p85, %p86
      %p88 = scmp.ne.s32.totalorder %s79, %s80
      %p89 = scmp.eq.s32.totalorder %s22, 0
      %p90 = por %p88, %p89
      %p91 = scmp.ne.s32.totalorder %s79, %s80
      %p92 = scmp.eq.s32.totalorder %s23, 1
      %p93 = por %p91, %p92
      %p95 = scmp.ne.s32.totalorder %s80, %s94
      %p96 = scmp.eq.s32.totalorder %s23, 0
      %p97 = por %p95, %p96
      %s99 = sadd.s32 %s98, 1
      %p102 = scmp.eq.s32.totalorder %s17, 1
      %p103 = scmp.ne.s32.totalorder %s98, %s100
      %p104 = scmp.eq.s32.totalorder %s17, 0
      %p105 = por %p103, %p104
      %p106 = scmp.ne.s32.totalorder %s98, %s100
      %p107 = scmp.eq.s32.totalorder %s22, 1
      %p108 = por %p106, %p107
      %p109 = scmp.ne.s32.totalorder %s100, %s101
      %p110 = scmp.eq.s32.totalorder %s22, 0
      %p111 = por %p109, %p110
      %p112 = scmp.ne.s32.totalorder %s100, %s101
      %p113 = scmp.eq.s32.totalorder %s23, 1
      %p114 = por %p112, %p113
      %p116 = scmp.ne.s32.totalorder %s101, %s115
      %p117 = scmp.eq.s32.totalorder %s23, 0
      %p118 = por %p116, %p117
      %s120 = sadd.s32 %s119, 1
      %p123 = scmp.eq.s32.totalorder %s17, 1
      %p124 = scmp.ne.s32.totalorder %s119, %s121
      %p125 = scmp.eq.s32.totalorder %s17, 0
      %p126 = por %p124, %p125
      %p127 = scmp.ne.s32.totalorder %s119, %s121
      %p128 = scmp.eq.s32.totalorder %s22, 1
      %p129 = por %p127, %p128
      %p130 = scmp.ne.s32.totalorder %s121, %s122
      %p131 = scmp.eq.s32.totalorder %s22, 0
      %p132 = por %p130, %p131
      %p133 = scmp.ne.s32.totalorder %s121, %s122
      %p134 = scmp.eq.s32.totalorder %s23, 1
      %p135 = por %p133, %p134
      %p137 = scmp.ne.s32.totalorder %s122, %s136
      %p138 = scmp.eq.s32.totalorder %s23, 0
      %p139 = por %p137, %p138
      %s141 = sadd.s32 %s140, 1
      %p144 = scmp.eq.s32.totalorder %s17, 1
      %p145 = scmp.ne.s32.totalorder %s140, %s142
      %p146 = scmp.eq.s32.totalorder %s17, 0
      %p147 = por %p145, %p146
      %p148 = scmp.ne.s32.totalorder %s140, %s142
      %p149 = scmp.eq.s32.totalorder %s22, 1
      %p150 = por %p148, %p149
      %p151 = scmp.ne.s32.totalorder %s142, %s143
      %p152 = scmp.eq.s32.totalorder %s22, 0
      %p153 = por %p151, %p152
      %p154 = scmp.ne.s32.totalorder %s142, %s143
      %p155 = scmp.eq.s32.totalorder %s23, 1
      %p156 = por %p154, %p155
      %p158 = scmp.ne.s32.totalorder %s143, %s157
      %p159 = scmp.eq.s32.totalorder %s23, 0
      %p160 = por %p158, %p159
      %s162 = sadd.s32 %s161, 1
      %p165 = scmp.eq.s32.totalorder %s17, 1
      %p166 = scmp.ne.s32.totalorder %s161, %s163
      %p167 = scmp.eq.s32.totalorder %s17, 0
      %p168 = por %p166, %p167
      %p169 = scmp.ne.s32.totalorder %s161, %s163
      %p170 = scmp.eq.s32.totalorder %s22, 1
      %p171 = por %p169, %p170
      %p172 = scmp.ne.s32.totalorder %s163, %s164
      %p173 = scmp.eq.s32.totalorder %s22, 0
      %p174 = por %p172, %p173
      %p175 = scmp.ne.s32.totalorder %s163, %s164
      %p176 = scmp.eq.s32.totalorder %s23, 1
      %p177 = por %p175, %p176
      %p179 = scmp.ne.s32.totalorder %s164, %s178
      %p180 = scmp.eq.s32.totalorder %s23, 0
      %p181 = por %p179, %p180
      %s183 = sadd.s32 %s182, 1
      %p186 = scmp.eq.s32.totalorder %s17, 1
      %p187 = scmp.ne.s32.totalorder %s182, %s184
      %p188 = scmp.eq.s32.totalorder %s17, 0
      %p189 = por %p187, %p188
      %p190 = scmp.ne.s32.totalorder %s182, %s184
      %p191 = scmp.eq.s32.totalorder %s22, 1
      %p192 = por %p190, %p191
      %p193 = scmp.ne.s32.totalorder %s184, %s185
      %p194 = scmp.eq.s32.totalorder %s22, 0
      %p195 = por %p193, %p194
      %p196 = scmp.ne.s32.totalorder %s184, %s185
      %p197 = scmp.eq.s32.totalorder %s23, 1
      %p198 = por %p196, %p197
      %p200 = scmp.ne.s32.totalorder %s185, %s199
      %p201 = scmp.eq.s32.totalorder %s23, 0
      %p202 = por %p200, %p201
      %s203 = ssub.s32 %s17, %s24
      %p204 = scmp.eq.s32.totalorder %s203, 0
      %s206 = sadd.s32 %s205, 1
      %s207 = scalar_select %p204, %s205, %s206
      %p210 = pneg %p204
      %p211 = scmp.eq.s32.totalorder %s17, 1
      %p212 = por %p210, %p211
      %p213 = scmp.ne.s32.totalorder %s205, %s208
      %p214 = scmp.eq.s32.totalorder %s17, 0
      %p215 = por %p213, %p214
      %p216 = scmp.ne.s32.totalorder %s205, %s208
      %p217 = scmp.eq.s32.totalorder %s22, 1
      %p218 = por %p216, %p217
      %p219 = scmp.ne.s32.totalorder %s208, %s209
      %p220 = scmp.eq.s32.totalorder %s22, 0
      %p221 = por %p219, %p220
      %p222 = scmp.ne.s32.totalorder %s208, %s209
      %p223 = scmp.eq.s32.totalorder %s23, 1
      %p224 = por %p222, %p223
      %p226 = scmp.ne.s32.totalorder %s209, %s225
      %p227 = scmp.eq.s32.totalorder %s23, 0
      %p228 = por %p226, %p227
      %p229 = scmp.le.s32.totalorder 1, %s17
      %p230 = scmp.lt.s32.totalorder %s17, 3
      %p231 = pnand %p229, %p230
      %p232 = pneg %p231
      // Predicated region
      $region9: #{tpu_custom_call.1} parent=5 // pred_check
        _
      $region10: #{tpu_custom_call.1} parent=5 // pred_check_branch
        %234 = sbr.rel (%p231) target = $region12
      $region11: #{tpu_custom_call.1} parent=5 // pred_region
        %s235 = ssub.s32 %s17, 1
        // Predicated region
        $region13: #{tpu_custom_call.1} parent=11 // pred_check
          %p236 = pneg %p90
        $region14: #{tpu_custom_call.1} parent=11 // pred_check_branch
          %238 = sbr.rel (%p236) target = $region16
        $region15: #{tpu_custom_call.1} parent=11 // pred_region
          _
        $region16: #{tpu_custom_call.1} parent=11 // pred_fallthru
          _
        // Predicated region
        $region17: #{tpu_custom_call.1} parent=11 // pred_check
          %p239 = pneg %p111
        $region18: #{tpu_custom_call.1} parent=11 // pred_check_branch
          %241 = sbr.rel (%p239) target = $region20
        $region19: #{tpu_custom_call.1} parent=11 // pred_region
          _
        $region20: #{tpu_custom_call.1} parent=11 // pred_fallthru
          _
        // Predicated region
        $region21: #{tpu_custom_call.1} parent=11 // pred_check
          %p242 = pneg %p132
        $region22: #{tpu_custom_call.1} parent=11 // pred_check_branch
          %244 = sbr.rel (%p242) target = $region24
        $region23: #{tpu_custom_call.1} parent=11 // pred_region
          _
        $region24: #{tpu_custom_call.1} parent=11 // pred_fallthru
          _
        // Predicated region
        $region25: #{tpu_custom_call.1} parent=11 // pred_check
          %p245 = pneg %p153
        $region26: #{tpu_custom_call.1} parent=11 // pred_check_branch
          %247 = sbr.rel (%p245) target = $region28
        $region27: #{tpu_custom_call.1} parent=11 // pred_region
          _
        $region28: #{tpu_custom_call.1} parent=11 // pred_fallthru
          _
        // Predicated region
        $region29: #{tpu_custom_call.1} parent=11 // pred_check
          %p248 = pneg %p174
        $region30: #{tpu_custom_call.1} parent=11 // pred_check_branch
          %250 = sbr.rel (%p248) target = $region32
        $region31: #{tpu_custom_call.1} parent=11 // pred_region
          _
        $region32: #{tpu_custom_call.1} parent=11 // pred_fallthru
          _
        // Predicated region
        $region33: #{tpu_custom_call.1} parent=11 // pred_check
          %p251 = pneg %p195
        $region34: #{tpu_custom_call.1} parent=11 // pred_check_branch
          %253 = sbr.rel (%p251) target = $region36
        $region35: #{tpu_custom_call.1} parent=11 // pred_region
          _
        $region36: #{tpu_custom_call.1} parent=11 // pred_fallthru
          _
      $region12: #{tpu_custom_call.1} parent=5 // pred_fallthru
        _
      %p254 = scmp.lt.s32.totalorder %s17, 2
      // Predicated region
      $region37: #{tpu_custom_call.1} parent=5 // pred_check
        %p255 = pneg %p254
      $region38: #{tpu_custom_call.1} parent=5 // pred_check_branch
        %257 = sbr.rel (%p255) target = $region40
      $region39: #{tpu_custom_call.1} parent=5 // pred_region
        // Predicated region
        $region41: #{tpu_custom_call.1} parent=39 // pred_check
          %p258 = pneg %p37
        $region42: #{tpu_custom_call.1} parent=39 // pred_check_branch
          %260 = sbr.rel (%p258) target = $region44
        $region43: #{tpu_custom_call.1} parent=39 // pred_region
          %s261 = smul.u32 16, %s17
          %p262 = scmp.lt.s32.totalorder %s261, 31
          %s263 = scalar_select %p262, %s261, 31
          %s264 = smul.addr %s263, 4
          %s265 = smul.addr %s264, 4
          %s266 = scalar_lea.vmem %s0, %s265
          %s267 = smul.u32 16, %s17
        $region44: #{tpu_custom_call.1} parent=39 // pred_fallthru
          _
        // Predicated region
        $region45: #{tpu_custom_call.1} parent=39 // pred_check
          %p268 = pneg %p63
        $region46: #{tpu_custom_call.1} parent=39 // pred_check_branch
          %270 = sbr.rel (%p268) target = $region48
        $region47: #{tpu_custom_call.1} parent=39 // pred_region
          %s271 = smul.u32 16, %s17
          %p272 = scmp.lt.s32.totalorder %s271, 31
          %s273 = scalar_select %p272, %s271, 31
          %s274 = smul.addr %s273, 4
          %s275 = smul.addr %s274, 4
          %s276 = scalar_lea.vmem %s1, %s275
          %s277 = smul.u32 16, %s17
        $region48: #{tpu_custom_call.1} parent=39 // pred_fallthru
          _
      $region40: #{tpu_custom_call.1} parent=5 // pred_fallthru
        _
      %p278 = scmp.le.s32.totalorder 1, %s17
      %p279 = scmp.lt.s32.totalorder %s17, 3
      %p280 = pnand %p278, %p279
      %p281 = pneg %p280
      // Predicated region
      $region49: #{tpu_custom_call.1} parent=5 // pred_check
        _
      $region50: #{tpu_custom_call.1} parent=5 // pred_check_branch
        %283 = sbr.rel (%p280) target = $region52
      $region51: #{tpu_custom_call.1} parent=5 // pred_region
        %s284 = ssub.s32 %s17, 1
        %s285 = smul.u32 16, %s22
        %p286 = scmp.lt.s32.totalorder %s285, 31
        %s287 = scalar_select %p286, %s285, 31
        %s288 = smul.addr %s287, 4
        %s289 = smul.addr %s288, 4
        %s290 = scalar_lea.vmem %s0, %s289
        %p291 = pneg %p43
        %p292 = pneg %p40
        %s293 = smul.u32 16, %s22
        %p294 = scmp.lt.s32.totalorder %s293, 31
        %s295 = scalar_select %p294, %s293, 31
        %s296 = smul.addr %s295, 4
        %s297 = smul.addr %s296, 4
        %s298 = scalar_lea.vmem %s1, %s297
        %p299 = pneg %p69
        %p300 = pneg %p66
        %p301 = pneg %p90
        %p302 = pneg %p87
        %p303 = pneg %p111
        %p304 = pneg %p108
        %p305 = pneg %p132
        %p306 = pneg %p129
        %p307 = pneg %p153
        %p308 = pneg %p150
        %p309 = pneg %p174
        %p310 = pneg %p171
        %p311 = pneg %p195
        %p312 = pneg %p192
        %p313 = pneg %p221
        %p314 = pneg %p218
        %s315 = sand.u32 %s208, 1
        %s316 = scalar_lea.sflag [#allocation3], %s315
        %s317 = sand.u32 %s208, 1
        %s318 = smul.addr %s317, 128
        %s319 = scalar_lea.vmem [#allocation2], %s318
        %s320 = smul.u32 16, %s22
        %p321 = scmp.lt.s32.totalorder %s320, 31
        %s322 = scalar_select %p321, %s320, 31
        %s323 = smul.addr %s322, 4
        %s324 = smul.addr %s323, 4
        %s325 = scalar_lea.vmem %s0, %s324
        %s326 = smul.u32 16, %s22
        %s327 = smul.u32 16, %s22
        %p328 = scmp.lt.s32.totalorder %s327, 31
        %s329 = scalar_select %p328, %s327, 31
        %s330 = smul.addr %s329, 4
        %s331 = smul.addr %s330, 4
        %s332 = scalar_lea.vmem %s1, %s331
        %s333 = smul.u32 16, %s22
        %s334 = smul.u32 16, %s22
        %v336 = vld [vmem:[%s325] sm:$0xff]
        %v337 = vld [vmem:[%s325 + $0x8] sm:$0xff]
        %v338 = vld [vmem:[%s325 + $0x10] sm:$0xff]
        %v339 = vld [vmem:[%s325 + $0x18] sm:$0xff]
        %v340 = vld [vmem:[%s325 + $0x20] sm:$0xff]
        %v341 = vld [vmem:[%s325 + $0x28] sm:$0xff]
        %v342 = vld [vmem:[%s325 + $0x30] sm:$0xff]
        %v343 = vld [vmem:[%s325 + $0x38] sm:$0xff]
        %v344 = vld [vmem:[%s325 + $0x40] sm:$0xff]
        %v345 = vld [vmem:[%s325 + $0x48] sm:$0xff]
        %v346 = vld [vmem:[%s325 + $0x50] sm:$0xff]
        %v347 = vld [vmem:[%s325 + $0x58] sm:$0xff]
        %v348 = vld [vmem:[%s325 + $0x60] sm:$0xff]
        %v349 = vld [vmem:[%s325 + $0x68] sm:$0xff]
        %v350 = vld [vmem:[%s325 + $0x70] sm:$0xff]
        %v351 = vld [vmem:[%s325 + $0x78] sm:$0xff]
        %v352 = vld [vmem:[%s325 + $0x80] sm:$0xff]
        %v353 = vld [vmem:[%s325 + $0x88] sm:$0xff]
        %v354 = vld [vmem:[%s325 + $0x90] sm:$0xff]
        %v355 = vld [vmem:[%s325 + $0x98] sm:$0xff]
        %v356 = vld [vmem:[%s325 + $0xa0] sm:$0xff]
        %v357 = vld [vmem:[%s325 + $0xa8] sm:$0xff]
        %v358 = vld [vmem:[%s325 + $0xb0] sm:$0xff]
        %v359 = vld [vmem:[%s325 + $0xb8] sm:$0xff]
        %v360 = vld [vmem:[%s325 + $0xc0] sm:$0xff]
        %v361 = vld [vmem:[%s325 + $0xc8] sm:$0xff]
        %v362 = vld [vmem:[%s325 + $0xd0] sm:$0xff]
        %v363 = vld [vmem:[%s325 + $0xd8] sm:$0xff]
        %v364 = vld [vmem:[%s325 + $0xe0] sm:$0xff]
        %v365 = vld [vmem:[%s325 + $0xe8] sm:$0xff]
        %v366 = vld [vmem:[%s325 + $0xf0] sm:$0xff]
        %v367 = vld [vmem:[%s325 + $0xf8] sm:$0xff]
        %v368 = vld [vmem:[%s2] sm:$0xff]
        %v369 = vld [vmem:[%s2 + $0x8] sm:$0xff]
        %v370 = vld [vmem:[%s2 + $0x10] sm:$0xff]
        %v371 = vld [vmem:[%s2 + $0x18] sm:$0xff]
        %v372 = vld [vmem:[%s2 + $0x20] sm:$0xff]
        %v373 = vld [vmem:[%s2 + $0x28] sm:$0xff]
        %v374 = vld [vmem:[%s2 + $0x30] sm:$0xff]
        %v375 = vld [vmem:[%s2 + $0x38] sm:$0xff]
        %v376 = vld [vmem:[%s2 + $0x40] sm:$0xff]
        %v377 = vld [vmem:[%s2 + $0x48] sm:$0xff]
        %v378 = vld [vmem:[%s2 + $0x50] sm:$0xff]
        %v379 = vld [vmem:[%s2 + $0x58] sm:$0xff]
        %v380 = vld [vmem:[%s2 + $0x60] sm:$0xff]
        %v381 = vld [vmem:[%s2 + $0x68] sm:$0xff]
        %v382 = vld [vmem:[%s2 + $0x70] sm:$0xff]
        %v383 = vld [vmem:[%s2 + $0x78] sm:$0xff]
        %v384 = vld [vmem:[%s2 + $0x80] sm:$0xff]
        %v385 = vld [vmem:[%s2 + $0x88] sm:$0xff]
        %v386 = vld [vmem:[%s2 + $0x90] sm:$0xff]
        %v387 = vld [vmem:[%s2 + $0x98] sm:$0xff]
        %v388 = vld [vmem:[%s2 + $0xa0] sm:$0xff]
        %v389 = vld [vmem:[%s2 + $0xa8] sm:$0xff]
        %v390 = vld [vmem:[%s2 + $0xb0] sm:$0xff]
        %v391 = vld [vmem:[%s2 + $0xb8] sm:$0xff]
        %v392 = vld [vmem:[%s2 + $0xc0] sm:$0xff]
        %v393 = vld [vmem:[%s2 + $0xc8] sm:$0xff]
        %v394 = vld [vmem:[%s2 + $0xd0] sm:$0xff]
        %v395 = vld [vmem:[%s2 + $0xd8] sm:$0xff]
        %v396 = vld [vmem:[%s2 + $0xe0] sm:$0xff]
        %v397 = vld [vmem:[%s2 + $0xe8] sm:$0xff]
        %v398 = vld [vmem:[%s2 + $0xf0] sm:$0xff]
        %v399 = vld [vmem:[%s2 + $0xf8] sm:$0xff]
        %v400 = vld [vmem:[%s2 + $0x100] sm:$0xff]
        %v401 = vld [vmem:[%s2 + $0x108] sm:$0xff]
        %v402 = vld [vmem:[%s2 + $0x110] sm:$0xff]
        %v403 = vld [vmem:[%s2 + $0x118] sm:$0xff]
        %v404 = vld [vmem:[%s2 + $0x120] sm:$0xff]
        %v405 = vld [vmem:[%s2 + $0x128] sm:$0xff]
        %v406 = vld [vmem:[%s2 + $0x130] sm:$0xff]
        %v407 = vld [vmem:[%s2 + $0x138] sm:$0xff]
        %v408 = vld [vmem:[%s2 + $0x140] sm:$0xff]
        %v409 = vld [vmem:[%s2 + $0x148] sm:$0xff]
        %v410 = vld [vmem:[%s2 + $0x150] sm:$0xff]
        %v411 = vld [vmem:[%s2 + $0x158] sm:$0xff]
        %v412 = vld [vmem:[%s2 + $0x160] sm:$0xff]
        %v413 = vld [vmem:[%s2 + $0x168] sm:$0xff]
        %v414 = vld [vmem:[%s2 + $0x170] sm:$0xff]
        %v415 = vld [vmem:[%s2 + $0x178] sm:$0xff]
        %v416 = vld [vmem:[%s2 + $0x180] sm:$0xff]
        %v417 = vld [vmem:[%s2 + $0x188] sm:$0xff]
        %v418 = vld [vmem:[%s2 + $0x190] sm:$0xff]
        %v419 = vld [vmem:[%s2 + $0x198] sm:$0xff]
        %v420 = vld [vmem:[%s2 + $0x1a0] sm:$0xff]
        %v421 = vld [vmem:[%s2 + $0x1a8] sm:$0xff]
        %v422 = vld [vmem:[%s2 + $0x1b0] sm:$0xff]
        %v423 = vld [vmem:[%s2 + $0x1b8] sm:$0xff]
        %v424 = vld [vmem:[%s2 + $0x1c0] sm:$0xff]
        %v425 = vld [vmem:[%s2 + $0x1c8] sm:$0xff]
        %v426 = vld [vmem:[%s2 + $0x1d0] sm:$0xff]
        %v427 = vld [vmem:[%s2 + $0x1d8] sm:$0xff]
        %v428 = vld [vmem:[%s2 + $0x1e0] sm:$0xff]
        %v429 = vld [vmem:[%s2 + $0x1e8] sm:$0xff]
        %v430 = vld [vmem:[%s2 + $0x1f0] sm:$0xff]
        %v431 = vld [vmem:[%s2 + $0x1f8] sm:$0xff]
        %v432 = vld [vmem:[%s2 + $0x200] sm:$0xff]
        %v433 = vld [vmem:[%s2 + $0x208] sm:$0xff]
        %v434 = vld [vmem:[%s2 + $0x210] sm:$0xff]
        %v435 = vld [vmem:[%s2 + $0x218] sm:$0xff]
        %v436 = vld [vmem:[%s2 + $0x220] sm:$0xff]
        %v437 = vld [vmem:[%s2 + $0x228] sm:$0xff]
        %v438 = vld [vmem:[%s2 + $0x230] sm:$0xff]
        %v439 = vld [vmem:[%s2 + $0x238] sm:$0xff]
        %v440 = vld [vmem:[%s2 + $0x240] sm:$0xff]
        %v441 = vld [vmem:[%s2 + $0x248] sm:$0xff]
        %v442 = vld [vmem:[%s2 + $0x250] sm:$0xff]
        %v443 = vld [vmem:[%s2 + $0x258] sm:$0xff]
        %v444 = vld [vmem:[%s2 + $0x260] sm:$0xff]
        %v445 = vld [vmem:[%s2 + $0x268] sm:$0xff]
        %v446 = vld [vmem:[%s2 + $0x270] sm:$0xff]
        %v447 = vld [vmem:[%s2 + $0x278] sm:$0xff]
        %v448 = vld [vmem:[%s2 + $0x280] sm:$0xff]
        %v449 = vld [vmem:[%s2 + $0x288] sm:$0xff]
        %v450 = vld [vmem:[%s2 + $0x290] sm:$0xff]
        %v451 = vld [vmem:[%s2 + $0x298] sm:$0xff]
        %v452 = vld [vmem:[%s2 + $0x2a0] sm:$0xff]
        %v453 = vld [vmem:[%s2 + $0x2a8] sm:$0xff]
        %v454 = vld [vmem:[%s2 + $0x2b0] sm:$0xff]
        %v455 = vld [vmem:[%s2 + $0x2b8] sm:$0xff]
        %v456 = vld [vmem:[%s2 + $0x2c0] sm:$0xff]
        %v457 = vld [vmem:[%s2 + $0x2c8] sm:$0xff]
        %v458 = vld [vmem:[%s2 + $0x2d0] sm:$0xff]
        %v459 = vld [vmem:[%s2 + $0x2d8] sm:$0xff]
        %v460 = vld [vmem:[%s2 + $0x2e0] sm:$0xff]
        %v461 = vld [vmem:[%s2 + $0x2e8] sm:$0xff]
        %v462 = vld [vmem:[%s2 + $0x2f0] sm:$0xff]
        %v463 = vld [vmem:[%s2 + $0x2f8] sm:$0xff]
        %v464 = vld [vmem:[%s2 + $0x300] sm:$0xff]
        %v465 = vld [vmem:[%s2 + $0x308] sm:$0xff]
        %v466 = vld [vmem:[%s2 + $0x310] sm:$0xff]
        %v467 = vld [vmem:[%s2 + $0x318] sm:$0xff]
        %v468 = vld [vmem:[%s2 + $0x320] sm:$0xff]
        %v469 = vld [vmem:[%s2 + $0x328] sm:$0xff]
        %v470 = vld [vmem:[%s2 + $0x330] sm:$0xff]
        %v471 = vld [vmem:[%s2 + $0x338] sm:$0xff]
        %v472 = vld [vmem:[%s2 + $0x340] sm:$0xff]
        %v473 = vld [vmem:[%s2 + $0x348] sm:$0xff]
        %v474 = vld [vmem:[%s2 + $0x350] sm:$0xff]
        %v475 = vld [vmem:[%s2 + $0x358] sm:$0xff]
        %v476 = vld [vmem:[%s2 + $0x360] sm:$0xff]
        %v477 = vld [vmem:[%s2 + $0x368] sm:$0xff]
        %v478 = vld [vmem:[%s2 + $0x370] sm:$0xff]
        %v479 = vld [vmem:[%s2 + $0x378] sm:$0xff]
        %v480 = vld [vmem:[%s2 + $0x380] sm:$0xff]
        %v481 = vld [vmem:[%s2 + $0x388] sm:$0xff]
        %v482 = vld [vmem:[%s2 + $0x390] sm:$0xff]
        %v483 = vld [vmem:[%s2 + $0x398] sm:$0xff]
        %v484 = vld [vmem:[%s2 + $0x3a0] sm:$0xff]
        %v485 = vld [vmem:[%s2 + $0x3a8] sm:$0xff]
        %v486 = vld [vmem:[%s2 + $0x3b0] sm:$0xff]
        %v487 = vld [vmem:[%s2 + $0x3b8] sm:$0xff]
        %v488 = vld [vmem:[%s2 + $0x3c0] sm:$0xff]
        %v489 = vld [vmem:[%s2 + $0x3c8] sm:$0xff]
        %v490 = vld [vmem:[%s2 + $0x3d0] sm:$0xff]
        %v491 = vld [vmem:[%s2 + $0x3d8] sm:$0xff]
        %v492 = vld [vmem:[%s2 + $0x3e0] sm:$0xff]
        %v493 = vld [vmem:[%s2 + $0x3e8] sm:$0xff]
        %v494 = vld [vmem:[%s2 + $0x3f0] sm:$0xff]
        %v495 = vld [vmem:[%s2 + $0x3f8] sm:$0xff]
        %v496 = vld [vmem:[%s3] sm:$0xf]
        %v498 = vlaneseq
        %v499 = vshrl.u32 %v498, 7
        %v500 = vsub.s32 0, %v499
        %v501 = vrot.slane %v496, %v500
        %v502 = vlaneseq
        %v503 = vshrl.u32 %v502, 7
        %v504 = vsub.s32 1, %v503
        %v505 = vrot.slane %v496, %v504
        %v506 = vlaneseq
        %v507 = vshrl.u32 %v506, 7
        %v508 = vsub.s32 2, %v507
        %v509 = vrot.slane %v496, %v508
        %v510 = vlaneseq
        %v511 = vshrl.u32 %v510, 7
        %v512 = vsub.s32 3, %v511
        %v513 = vrot.slane %v496, %v512
        %v550 = vunpack.c.l.b16 %v336
        %v551 = vunpack.c.h.b16 %v336
        %v552 = vunpack.c.l.b16 %v337
        %v553 = vunpack.c.h.b16 %v337
        %v554 = vunpack.c.l.b16 %v338
        %v555 = vunpack.c.h.b16 %v338
        %v556 = vunpack.c.l.b16 %v339
        %v557 = vunpack.c.h.b16 %v339
        %v558 = vunpack.c.l.b16 %v340
        %v559 = vunpack.c.h.b16 %v340
        %v560 = vunpack.c.l.b16 %v341
        %v561 = vunpack.c.h.b16 %v341
        %v562 = vunpack.c.l.b16 %v342
        %v563 = vunpack.c.h.b16 %v342
        %v564 = vunpack.c.l.b16 %v343
        %v565 = vunpack.c.h.b16 %v343
        %v566 = vunpack.c.l.b16 %v344
        %v567 = vunpack.c.h.b16 %v344
        %v568 = vunpack.c.l.b16 %v345
        %v569 = vunpack.c.h.b16 %v345
        %v570 = vunpack.c.l.b16 %v346
        %v571 = vunpack.c.h.b16 %v346
        %v572 = vunpack.c.l.b16 %v347
        %v573 = vunpack.c.h.b16 %v347
        %v574 = vunpack.c.l.b16 %v348
        %v575 = vunpack.c.h.b16 %v348
        %v576 = vunpack.c.l.b16 %v349
        %v577 = vunpack.c.h.b16 %v349
        %v578 = vunpack.c.l.b16 %v350
        %v579 = vunpack.c.h.b16 %v350
        %v580 = vunpack.c.l.b16 %v351
        %v581 = vunpack.c.h.b16 %v351
        %v582 = vunpack.c.l.b16 %v352
        %v583 = vunpack.c.h.b16 %v352
        %v584 = vunpack.c.l.b16 %v353
        %v585 = vunpack.c.h.b16 %v353
        %v586 = vunpack.c.l.b16 %v354
        %v587 = vunpack.c.h.b16 %v354
        %v588 = vunpack.c.l.b16 %v355
        %v589 = vunpack.c.h.b16 %v355
        %v590 = vunpack.c.l.b16 %v356
        %v591 = vunpack.c.h.b16 %v356
        %v592 = vunpack.c.l.b16 %v357
        %v593 = vunpack.c.h.b16 %v357
        %v594 = vunpack.c.l.b16 %v358
        %v595 = vunpack.c.h.b16 %v358
        %v596 = vunpack.c.l.b16 %v359
        %v597 = vunpack.c.h.b16 %v359
        %v598 = vunpack.c.l.b16 %v360
        %v599 = vunpack.c.h.b16 %v360
        %v600 = vunpack.c.l.b16 %v361
        %v601 = vunpack.c.h.b16 %v361
        %v602 = vunpack.c.l.b16 %v362
        %v603 = vunpack.c.h.b16 %v362
        %v604 = vunpack.c.l.b16 %v363
        %v605 = vunpack.c.h.b16 %v363
        %v606 = vunpack.c.l.b16 %v364
        %v607 = vunpack.c.h.b16 %v364
        %v608 = vunpack.c.l.b16 %v365
        %v609 = vunpack.c.h.b16 %v365
        %v610 = vunpack.c.l.b16 %v366
        %v611 = vunpack.c.h.b16 %v366
        %v612 = vunpack.c.l.b16 %v367
        %v613 = vunpack.c.h.b16 %v367
        %v614 = vpack.c.b16 %v554, %v550
        %v615 = vpack.c.b16 %v555, %v551
        %v616 = vpack.c.b16 %v556, %v552
        %v617 = vpack.c.b16 %v557, %v553
        %v618 = vpack.c.b16 %v562, %v558
        %v619 = vpack.c.b16 %v563, %v559
        %v620 = vpack.c.b16 %v564, %v560
        %v621 = vpack.c.b16 %v565, %v561
        %v622 = vpack.c.b16 %v570, %v566
        %v623 = vpack.c.b16 %v571, %v567
        %v624 = vpack.c.b16 %v572, %v568
        %v625 = vpack.c.b16 %v573, %v569
        %v626 = vpack.c.b16 %v578, %v574
        %v627 = vpack.c.b16 %v579, %v575
        %v628 = vpack.c.b16 %v580, %v576
        %v629 = vpack.c.b16 %v581, %v577
        %v630 = vpack.c.b16 %v586, %v582
        %v631 = vpack.c.b16 %v587, %v583
        %v632 = vpack.c.b16 %v588, %v584
        %v633 = vpack.c.b16 %v589, %v585
        %v634 = vpack.c.b16 %v594, %v590
        %v635 = vpack.c.b16 %v595, %v591
        %v636 = vpack.c.b16 %v596, %v592
        %v637 = vpack.c.b16 %v597, %v593
        %v638 = vpack.c.b16 %v602, %v598
        %v639 = vpack.c.b16 %v603, %v599
        %v640 = vpack.c.b16 %v604, %v600
        %v641 = vpack.c.b16 %v605, %v601
        %v642 = vpack.c.b16 %v610, %v606
        %v643 = vpack.c.b16 %v611, %v607
        %v644 = vpack.c.b16 %v612, %v608
        %v645 = vpack.c.b16 %v613, %v609
        %v806 = vunpack.c.l.b16 %v368
        %v807 = vunpack.c.h.b16 %v368
        %v808 = vunpack.c.l.b16 %v369
        %v809 = vunpack.c.h.b16 %v369
        %v810 = vunpack.c.l.b16 %v370
        %v811 = vunpack.c.h.b16 %v370
        %v812 = vunpack.c.l.b16 %v371
        %v813 = vunpack.c.h.b16 %v371
        %v814 = vunpack.c.l.b16 %v372
        %v815 = vunpack.c.h.b16 %v372
        %v816 = vunpack.c.l.b16 %v373
        %v817 = vunpack.c.h.b16 %v373
        %v818 = vunpack.c.l.b16 %v374
        %v819 = vunpack.c.h.b16 %v374
        %v820 = vunpack.c.l.b16 %v375
        %v821 = vunpack.c.h.b16 %v375
        %v822 = vunpack.c.l.b16 %v376
        %v823 = vunpack.c.h.b16 %v376
        %v824 = vunpack.c.l.b16 %v377
        %v825 = vunpack.c.h.b16 %v377
        %v826 = vunpack.c.l.b16 %v378
        %v827 = vunpack.c.h.b16 %v378
        %v828 = vunpack.c.l.b16 %v379
        %v829 = vunpack.c.h.b16 %v379
        %v830 = vunpack.c.l.b16 %v380
        %v831 = vunpack.c.h.b16 %v380
        %v832 = vunpack.c.l.b16 %v381
        %v833 = vunpack.c.h.b16 %v381
        %v834 = vunpack.c.l.b16 %v382
        %v835 = vunpack.c.h.b16 %v382
        %v836 = vunpack.c.l.b16 %v383
        %v837 = vunpack.c.h.b16 %v383
        %v838 = vunpack.c.l.b16 %v384
        %v839 = vunpack.c.h.b16 %v384
        %v840 = vunpack.c.l.b16 %v385
        %v841 = vunpack.c.h.b16 %v385
        %v842 = vunpack.c.l.b16 %v386
        %v843 = vunpack.c.h.b16 %v386
        %v844 = vunpack.c.l.b16 %v387
        %v845 = vunpack.c.h.b16 %v387
        %v846 = vunpack.c.l.b16 %v388
        %v847 = vunpack.c.h.b16 %v388
        %v848 = vunpack.c.l.b16 %v389
        %v849 = vunpack.c.h.b16 %v389
        %v850 = vunpack.c.l.b16 %v390
        %v851 = vunpack.c.h.b16 %v390
        %v852 = vunpack.c.l.b16 %v391
        %v853 = vunpack.c.h.b16 %v391
        %v854 = vunpack.c.l.b16 %v392
        %v855 = vunpack.c.h.b16 %v392
        %v856 = vunpack.c.l.b16 %v393
        %v857 = vunpack.c.h.b16 %v393
        %v858 = vunpack.c.l.b16 %v394
        %v859 = vunpack.c.h.b16 %v394
        %v860 = vunpack.c.l.b16 %v395
        %v861 = vunpack.c.h.b16 %v395
        %v862 = vunpack.c.l.b16 %v396
        %v863 = vunpack.c.h.b16 %v396
        %v864 = vunpack.c.l.b16 %v397
        %v865 = vunpack.c.h.b16 %v397
        %v866 = vunpack.c.l.b16 %v398
        %v867 = vunpack.c.h.b16 %v398
        %v868 = vunpack.c.l.b16 %v399
        %v869 = vunpack.c.h.b16 %v399
        %v870 = vunpack.c.l.b16 %v400
        %v871 = vunpack.c.h.b16 %v400
        %v872 = vunpack.c.l.b16 %v401
        %v873 = vunpack.c.h.b16 %v401
        %v874 = vunpack.c.l.b16 %v402
        %v875 = vunpack.c.h.b16 %v402
        %v876 = vunpack.c.l.b16 %v403
        %v877 = vunpack.c.h.b16 %v403
        %v878 = vunpack.c.l.b16 %v404
        %v879 = vunpack.c.h.b16 %v404
        %v880 = vunpack.c.l.b16 %v405
        %v881 = vunpack.c.h.b16 %v405
        %v882 = vunpack.c.l.b16 %v406
        %v883 = vunpack.c.h.b16 %v406
        %v884 = vunpack.c.l.b16 %v407
        %v885 = vunpack.c.h.b16 %v407
        %v886 = vunpack.c.l.b16 %v408
        %v887 = vunpack.c.h.b16 %v408
        %v888 = vunpack.c.l.b16 %v409
        %v889 = vunpack.c.h.b16 %v409
        %v890 = vunpack.c.l.b16 %v410
        %v891 = vunpack.c.h.b16 %v410
        %v892 = vunpack.c.l.b16 %v411
        %v893 = vunpack.c.h.b16 %v411
        %v894 = vunpack.c.l.b16 %v412
        %v895 = vunpack.c.h.b16 %v412
        %v896 = vunpack.c.l.b16 %v413
        %v897 = vunpack.c.h.b16 %v413
        %v898 = vunpack.c.l.b16 %v414
        %v899 = vunpack.c.h.b16 %v414
        %v900 = vunpack.c.l.b16 %v415
        %v901 = vunpack.c.h.b16 %v415
        %v902 = vunpack.c.l.b16 %v416
        %v903 = vunpack.c.h.b16 %v416
        %v904 = vunpack.c.l.b16 %v417
        %v905 = vunpack.c.h.b16 %v417
        %v906 = vunpack.c.l.b16 %v418
        %v907 = vunpack.c.h.b16 %v418
        %v908 = vunpack.c.l.b16 %v419
        %v909 = vunpack.c.h.b16 %v419
        %v910 = vunpack.c.l.b16 %v420
        %v911 = vunpack.c.h.b16 %v420
        %v912 = vunpack.c.l.b16 %v421
        %v913 = vunpack.c.h.b16 %v421
        %v914 = vunpack.c.l.b16 %v422
        %v915 = vunpack.c.h.b16 %v422
        %v916 = vunpack.c.l.b16 %v423
        %v917 = vunpack.c.h.b16 %v423
        %v918 = vunpack.c.l.b16 %v424
        %v919 = vunpack.c.h.b16 %v424
        %v920 = vunpack.c.l.b16 %v425
        %v921 = vunpack.c.h.b16 %v425
        %v922 = vunpack.c.l.b16 %v426
        %v923 = vunpack.c.h.b16 %v426
        %v924 = vunpack.c.l.b16 %v427
        %v925 = vunpack.c.h.b16 %v427
        %v926 = vunpack.c.l.b16 %v428
        %v927 = vunpack.c.h.b16 %v428
        %v928 = vunpack.c.l.b16 %v429
        %v929 = vunpack.c.h.b16 %v429
        %v930 = vunpack.c.l.b16 %v430
        %v931 = vunpack.c.h.b16 %v430
        %v932 = vunpack.c.l.b16 %v431
        %v933 = vunpack.c.h.b16 %v431
        %v934 = vunpack.c.l.b16 %v432
        %v935 = vunpack.c.h.b16 %v432
        %v936 = vunpack.c.l.b16 %v433
        %v937 = vunpack.c.h.b16 %v433
        %v938 = vunpack.c.l.b16 %v434
        %v939 = vunpack.c.h.b16 %v434
        %v940 = vunpack.c.l.b16 %v435
        %v941 = vunpack.c.h.b16 %v435
        %v942 = vunpack.c.l.b16 %v436
        %v943 = vunpack.c.h.b16 %v436
        %v944 = vunpack.c.l.b16 %v437
        %v945 = vunpack.c.h.b16 %v437
        %v946 = vunpack.c.l.b16 %v438
        %v947 = vunpack.c.h.b16 %v438
        %v948 = vunpack.c.l.b16 %v439
        %v949 = vunpack.c.h.b16 %v439
        %v950 = vunpack.c.l.b16 %v440
        %v951 = vunpack.c.h.b16 %v440
        %v952 = vunpack.c.l.b16 %v441
        %v953 = vunpack.c.h.b16 %v441
        %v954 = vunpack.c.l.b16 %v442
        %v955 = vunpack.c.h.b16 %v442
        %v956 = vunpack.c.l.b16 %v443
        %v957 = vunpack.c.h.b16 %v443
        %v958 = vunpack.c.l.b16 %v444
        %v959 = vunpack.c.h.b16 %v444
        %v960 = vunpack.c.l.b16 %v445
        %v961 = vunpack.c.h.b16 %v445
        %v962 = vunpack.c.l.b16 %v446
        %v963 = vunpack.c.h.b16 %v446
        %v964 = vunpack.c.l.b16 %v447
        %v965 = vunpack.c.h.b16 %v447
        %v966 = vunpack.c.l.b16 %v448
        %v967 = vunpack.c.h.b16 %v448
        %v968 = vunpack.c.l.b16 %v449
        %v969 = vunpack.c.h.b16 %v449
        %v970 = vunpack.c.l.b16 %v450
        %v971 = vunpack.c.h.b16 %v450
        %v972 = vunpack.c.l.b16 %v451
        %v973 = vunpack.c.h.b16 %v451
        %v974 = vunpack.c.l.b16 %v452
        %v975 = vunpack.c.h.b16 %v452
        %v976 = vunpack.c.l.b16 %v453
        %v977 = vunpack.c.h.b16 %v453
        %v978 = vunpack.c.l.b16 %v454
        %v979 = vunpack.c.h.b16 %v454
        %v980 = vunpack.c.l.b16 %v455
        %v981 = vunpack.c.h.b16 %v455
        %v982 = vunpack.c.l.b16 %v456
        %v983 = vunpack.c.h.b16 %v456
        %v984 = vunpack.c.l.b16 %v457
        %v985 = vunpack.c.h.b16 %v457
        %v986 = vunpack.c.l.b16 %v458
        %v987 = vunpack.c.h.b16 %v458
        %v988 = vunpack.c.l.b16 %v459
        %v989 = vunpack.c.h.b16 %v459
        %v990 = vunpack.c.l.b16 %v460
        %v991 = vunpack.c.h.b16 %v460
        %v992 = vunpack.c.l.b16 %v461
        %v993 = vunpack.c.h.b16 %v461
        %v994 = vunpack.c.l.b16 %v462
        %v995 = vunpack.c.h.b16 %v462
        %v996 = vunpack.c.l.b16 %v463
        %v997 = vunpack.c.h.b16 %v463
        %v998 = vunpack.c.l.b16 %v464
        %v999 = vunpack.c.h.b16 %v464
        %v1000 = vunpack.c.l.b16 %v465
        %v1001 = vunpack.c.h.b16 %v465
        %v1002 = vunpack.c.l.b16 %v466
        %v1003 = vunpack.c.h.b16 %v466
        %v1004 = vunpack.c.l.b16 %v467
        %v1005 = vunpack.c.h.b16 %v467
        %v1006 = vunpack.c.l.b16 %v468
        %v1007 = vunpack.c.h.b16 %v468
        %v1008 = vunpack.c.l.b16 %v469
        %v1009 = vunpack.c.h.b16 %v469
        %v1010 = vunpack.c.l.b16 %v470
        %v1011 = vunpack.c.h.b16 %v470
        %v1012 = vunpack.c.l.b16 %v471
        %v1013 = vunpack.c.h.b16 %v471
        %v1014 = vunpack.c.l.b16 %v472
        %v1015 = vunpack.c.h.b16 %v472
        %v1016 = vunpack.c.l.b16 %v473
        %v1017 = vunpack.c.h.b16 %v473
        %v1018 = vunpack.c.l.b16 %v474
        %v1019 = vunpack.c.h.b16 %v474
        %v1020 = vunpack.c.l.b16 %v475
        %v1021 = vunpack.c.h.b16 %v475
        %v1022 = vunpack.c.l.b16 %v476
        %v1023 = vunpack.c.h.b16 %v476
        %v1024 = vunpack.c.l.b16 %v477
        %v1025 = vunpack.c.h.b16 %v477
        %v1026 = vunpack.c.l.b16 %v478
        %v1027 = vunpack.c.h.b16 %v478
        %v1028 = vunpack.c.l.b16 %v479
        %v1029 = vunpack.c.h.b16 %v479
        %v1030 = vunpack.c.l.b16 %v480
        %v1031 = vunpack.c.h.b16 %v480
        %v1032 = vunpack.c.l.b16 %v481
        %v1033 = vunpack.c.h.b16 %v481
        %v1034 = vunpack.c.l.b16 %v482
        %v1035 = vunpack.c.h.b16 %v482
        %v1036 = vunpack.c.l.b16 %v483
        %v1037 = vunpack.c.h.b16 %v483
        %v1038 = vunpack.c.l.b16 %v484
        %v1039 = vunpack.c.h.b16 %v484
        %v1040 = vunpack.c.l.b16 %v485
        %v1041 = vunpack.c.h.b16 %v485
        %v1042 = vunpack.c.l.b16 %v486
        %v1043 = vunpack.c.h.b16 %v486
        %v1044 = vunpack.c.l.b16 %v487
        %v1045 = vunpack.c.h.b16 %v487
        %v1046 = vunpack.c.l.b16 %v488
        %v1047 = vunpack.c.h.b16 %v488
        %v1048 = vunpack.c.l.b16 %v489
        %v1049 = vunpack.c.h.b16 %v489
        %v1050 = vunpack.c.l.b16 %v490
        %v1051 = vunpack.c.h.b16 %v490
        %v1052 = vunpack.c.l.b16 %v491
        %v1053 = vunpack.c.h.b16 %v491
        %v1054 = vunpack.c.l.b16 %v492
        %v1055 = vunpack.c.h.b16 %v492
        %v1056 = vunpack.c.l.b16 %v493
        %v1057 = vunpack.c.h.b16 %v493
        %v1058 = vunpack.c.l.b16 %v494
        %v1059 = vunpack.c.h.b16 %v494
        %v1060 = vunpack.c.l.b16 %v495
        %v1061 = vunpack.c.h.b16 %v495
        %v1062 = vpack.c.b16 %v810, %v806
        %v1063 = vpack.c.b16 %v811, %v807
        %v1064 = vpack.c.b16 %v812, %v808
        %v1065 = vpack.c.b16 %v813, %v809
        %v1066 = vpack.c.b16 %v818, %v814
        %v1067 = vpack.c.b16 %v819, %v815
        %v1068 = vpack.c.b16 %v820, %v816
        %v1069 = vpack.c.b16 %v821, %v817
        %v1070 = vpack.c.b16 %v826, %v822
        %v1071 = vpack.c.b16 %v827, %v823
        %v1072 = vpack.c.b16 %v828, %v824
        %v1073 = vpack.c.b16 %v829, %v825
        %v1074 = vpack.c.b16 %v834, %v830
        %v1075 = vpack.c.b16 %v835, %v831
        %v1076 = vpack.c.b16 %v836, %v832
        %v1077 = vpack.c.b16 %v837, %v833
        %v1078 = vpack.c.b16 %v842, %v838
        %v1079 = vpack.c.b16 %v843, %v839
        %v1080 = vpack.c.b16 %v844, %v840
        %v1081 = vpack.c.b16 %v845, %v841
        %v1082 = vpack.c.b16 %v850, %v846
        %v1083 = vpack.c.b16 %v851, %v847
        %v1084 = vpack.c.b16 %v852, %v848
        %v1085 = vpack.c.b16 %v853, %v849
        %v1086 = vpack.c.b16 %v858, %v854
        %v1087 = vpack.c.b16 %v859, %v855
        %v1088 = vpack.c.b16 %v860, %v856
        %v1089 = vpack.c.b16 %v861, %v857
        %v1090 = vpack.c.b16 %v866, %v862
        %v1091 = vpack.c.b16 %v867, %v863
        %v1092 = vpack.c.b16 %v868, %v864
        %v1093 = vpack.c.b16 %v869, %v865
        %v1094 = vpack.c.b16 %v874, %v870
        %v1095 = vpack.c.b16 %v875, %v871
        %v1096 = vpack.c.b16 %v876, %v872
        %v1097 = vpack.c.b16 %v877, %v873
        %v1098 = vpack.c.b16 %v882, %v878
        %v1099 = vpack.c.b16 %v883, %v879
        %v1100 = vpack.c.b16 %v884, %v880
        %v1101 = vpack.c.b16 %v885, %v881
        %v1102 = vpack.c.b16 %v890, %v886
        %v1103 = vpack.c.b16 %v891, %v887
        %v1104 = vpack.c.b16 %v892, %v888
        %v1105 = vpack.c.b16 %v893, %v889
        %v1106 = vpack.c.b16 %v898, %v894
        %v1107 = vpack.c.b16 %v899, %v895
        %v1108 = vpack.c.b16 %v900, %v896
        %v1109 = vpack.c.b16 %v901, %v897
        %v1110 = vpack.c.b16 %v906, %v902
        %v1111 = vpack.c.b16 %v907, %v903
        %v1112 = vpack.c.b16 %v908, %v904
        %v1113 = vpack.c.b16 %v909, %v905
        %v1114 = vpack.c.b16 %v914, %v910
        %v1115 = vpack.c.b16 %v915, %v911
        %v1116 = vpack.c.b16 %v916, %v912
        %v1117 = vpack.c.b16 %v917, %v913
        %v1118 = vpack.c.b16 %v922, %v918
        %v1119 = vpack.c.b16 %v923, %v919
        %v1120 = vpack.c.b16 %v924, %v920
        %v1121 = vpack.c.b16 %v925, %v921
        %v1122 = vpack.c.b16 %v930, %v926
        %v1123 = vpack.c.b16 %v931, %v927
        %v1124 = vpack.c.b16 %v932, %v928
        %v1125 = vpack.c.b16 %v933, %v929
        %v1126 = vpack.c.b16 %v938, %v934
        %v1127 = vpack.c.b16 %v939, %v935
        %v1128 = vpack.c.b16 %v940, %v936
        %v1129 = vpack.c.b16 %v941, %v937
        %v1130 = vpack.c.b16 %v946, %v942
        %v1131 = vpack.c.b16 %v947, %v943
        %v1132 = vpack.c.b16 %v948, %v944
        %v1133 = vpack.c.b16 %v949, %v945
        %v1134 = vpack.c.b16 %v954, %v950
        %v1135 = vpack.c.b16 %v955, %v951
        %v1136 = vpack.c.b16 %v956, %v952
        %v1137 = vpack.c.b16 %v957, %v953
        %v1138 = vpack.c.b16 %v962, %v958
        %v1139 = vpack.c.b16 %v963, %v959
        %v1140 = vpack.c.b16 %v964, %v960
        %v1141 = vpack.c.b16 %v965, %v961
        %v1142 = vpack.c.b16 %v970, %v966
        %v1143 = vpack.c.b16 %v971, %v967
        %v1144 = vpack.c.b16 %v972, %v968
        %v1145 = vpack.c.b16 %v973, %v969
        %v1146 = vpack.c.b16 %v978, %v974
        %v1147 = vpack.c.b16 %v979, %v975
        %v1148 = vpack.c.b16 %v980, %v976
        %v1149 = vpack.c.b16 %v981, %v977
        %v1150 = vpack.c.b16 %v986, %v982
        %v1151 = vpack.c.b16 %v987, %v983
        %v1152 = vpack.c.b16 %v988, %v984
        %v1153 = vpack.c.b16 %v989, %v985
        %v1154 = vpack.c.b16 %v994, %v990
        %v1155 = vpack.c.b16 %v995, %v991
        %v1156 = vpack.c.b16 %v996, %v992
        %v1157 = vpack.c.b16 %v997, %v993
        %v1158 = vpack.c.b16 %v1002, %v998
        %v1159 = vpack.c.b16 %v1003, %v999
        %v1160 = vpack.c.b16 %v1004, %v1000
        %v1161 = vpack.c.b16 %v1005, %v1001
        %v1162 = vpack.c.b16 %v1010, %v1006
        %v1163 = vpack.c.b16 %v1011, %v1007
        %v1164 = vpack.c.b16 %v1012, %v1008
        %v1165 = vpack.c.b16 %v1013, %v1009
        %v1166 = vpack.c.b16 %v1018, %v1014
        %v1167 = vpack.c.b16 %v1019, %v1015
        %v1168 = vpack.c.b16 %v1020, %v1016
        %v1169 = vpack.c.b16 %v1021, %v1017
        %v1170 = vpack.c.b16 %v1026, %v1022
        %v1171 = vpack.c.b16 %v1027, %v1023
        %v1172 = vpack.c.b16 %v1028, %v1024
        %v1173 = vpack.c.b16 %v1029, %v1025
        %v1174 = vpack.c.b16 %v1034, %v1030
        %v1175 = vpack.c.b16 %v1035, %v1031
        %v1176 = vpack.c.b16 %v1036, %v1032
        %v1177 = vpack.c.b16 %v1037, %v1033
        %v1178 = vpack.c.b16 %v1042, %v1038
        %v1179 = vpack.c.b16 %v1043, %v1039
        %v1180 = vpack.c.b16 %v1044, %v1040
        %v1181 = vpack.c.b16 %v1045, %v1041
        %v1182 = vpack.c.b16 %v1050, %v1046
        %v1183 = vpack.c.b16 %v1051, %v1047
        %v1184 = vpack.c.b16 %v1052, %v1048
        %v1185 = vpack.c.b16 %v1053, %v1049
        %v1186 = vpack.c.b16 %v1058, %v1054
        %v1187 = vpack.c.b16 %v1059, %v1055
        %v1188 = vpack.c.b16 %v1060, %v1056
        %v1189 = vpack.c.b16 %v1061, %v1057
        %1318 = vmatprep.subr.bf16.mxu0 %v1063
        %1319 = vmatpush1.bf16.msra.mxu0 %v1062
        %1320 = vmatprep.subr.bf16.mxu0 %v1067
        %1321 = vmatpush1.bf16.msra.mxu0 %v1066
        %1322 = vmatprep.subr.bf16.mxu0 %v1071
        %1323 = vmatpush1.bf16.msra.mxu0 %v1070
        %1324 = vmatprep.subr.bf16.mxu0 %v1075
        %1325 = vmatpush1.bf16.msra.mxu0 %v1074
        %1326 = vmatprep.subr.bf16.mxu0 %v1079
        %1327 = vmatpush1.bf16.msra.mxu0 %v1078
        %1328 = vmatprep.subr.bf16.mxu0 %v1083
        %1329 = vmatpush1.bf16.msra.mxu0 %v1082
        %1330 = vmatprep.subr.bf16.mxu0 %v1087
        %1331 = vmatpush1.bf16.msra.mxu0 %v1086
        %1332 = vmatprep.subr.bf16.mxu0 %v1091
        %1333 = vmatpush1.bf16.msra.mxu0 %v1090
        %1334 = vmatprep.subr.bf16.mxu0 %v1095
        %1335 = vmatpush1.bf16.msra.mxu0 %v1094
        %1336 = vmatprep.subr.bf16.mxu0 %v1099
        %1337 = vmatpush1.bf16.msra.mxu0 %v1098
        %1338 = vmatprep.subr.bf16.mxu0 %v1103
        %1339 = vmatpush1.bf16.msra.mxu0 %v1102
        %1340 = vmatprep.subr.bf16.mxu0 %v1107
        %1341 = vmatpush1.bf16.msra.mxu0 %v1106
        %1342 = vmatprep.subr.bf16.mxu0 %v1111
        %1343 = vmatpush1.bf16.msra.mxu0 %v1110
        %1344 = vmatprep.subr.bf16.mxu0 %v1115
        %1345 = vmatpush1.bf16.msra.mxu0 %v1114
        %1346 = vmatprep.subr.bf16.mxu0 %v1119
        %1347 = vmatpush1.bf16.msra.mxu0 %v1118
        %1348 = vmatprep.subr.bf16.mxu0 %v1123
        %1349 = vmatpush1.bf16.msra.mxu0 %v1122
        %1350 = vmatprep.mubr.bf16.mxu0 %v615
        %1351 = vmatmul.mubr.bf16.gmra.mrb[0].mxu0 %v614
        %v1352 = vpop.f32.mrb[0].mxu0
        %v1353 = vadd.f32 %v501, %v1352
        %v1354 = vpop.f32.mrb[0].mxu0
        %v1355 = vadd.f32 %v505, %v1354
        %v1356 = vpop.f32.mrb[0].mxu0
        %v1357 = vadd.f32 %v501, %v1356
        %v1358 = vpop.f32.mrb[0].mxu0
        %v1359 = vadd.f32 %v505, %v1358
        %1360 = vmatprep.mubr.bf16.mxu0 %v619
        %1361 = vmatmul.mubr.bf16.gmra.mrb[0].mxu0 %v618
        %v1362 = vpop.f32.mrb[0].mxu0
        %v1363 = vadd.f32 %v501, %v1362
        %v1364 = vpop.f32.mrb[0].mxu0
        %v1365 = vadd.f32 %v505, %v1364
        %v1366 = vpop.f32.mrb[0].mxu0
        %v1367 = vadd.f32 %v501, %v1366
        %v1368 = vpop.f32.mrb[0].mxu0
        %v1369 = vadd.f32 %v505, %v1368
        %1370 = vmatprep.mubr.bf16.mxu0 %v623
        %1371 = vmatmul.mubr.bf16.gmra.mrb[0].mxu0 %v622
        %v1372 = vpop.f32.mrb[0].mxu0
        %v1373 = vadd.f32 %v501, %v1372
        %v1374 = vpop.f32.mrb[0].mxu0
        %v1375 = vadd.f32 %v505, %v1374
        %v1376 = vpop.f32.mrb[0].mxu0
        %v1377 = vadd.f32 %v501, %v1376
        %v1378 = vpop.f32.mrb[0].mxu0
        %v1379 = vadd.f32 %v505, %v1378
        %1380 = vmatprep.mubr.bf16.mxu0 %v627
        %1381 = vmatmul.mubr.bf16.gmra.mrb[0].mxu0 %v626
        %v1382 = vpop.f32.mrb[0].mxu0
        %v1383 = vadd.f32 %v501, %v1382
        %v1384 = vpop.f32.mrb[0].mxu0
        %v1385 = vadd.f32 %v505, %v1384
        %v1386 = vpop.f32.mrb[0].mxu0
        %v1387 = vadd.f32 %v501, %v1386
        %v1388 = vpop.f32.mrb[0].mxu0
        %v1389 = vadd.f32 %v505, %v1388
        %1390 = vmatprep.mubr.bf16.mxu0 %v631
        %1391 = vmatmul.mubr.bf16.gmra.mrb[0].mxu0 %v630
        %v1392 = vpop.f32.mrb[0].mxu0
        %v1393 = vadd.f32 %v501, %v1392
        %v1394 = vpop.f32.mrb[0].mxu0
        %v1395 = vadd.f32 %v505, %v1394
        %v1396 = vpop.f32.mrb[0].mxu0
        %v1397 = vadd.f32 %v501, %v1396
        %v1398 = vpop.f32.mrb[0].mxu0
        %v1399 = vadd.f32 %v505, %v1398
        %1400 = vmatprep.mubr.bf16.mxu0 %v635
        %1401 = vmatmul.mubr.bf16.gmra.mrb[0].mxu0 %v634
        %v1402 = vpop.f32.mrb[0].mxu0
        %v1403 = vadd.f32 %v501, %v1402
        %v1404 = vpop.f32.mrb[0].mxu0
        %v1405 = vadd.f32 %v505, %v1404
        %v1406 = vpop.f32.mrb[0].mxu0
        %v1407 = vadd.f32 %v501, %v1406
        %v1408 = vpop.f32.mrb[0].mxu0
        %v1409 = vadd.f32 %v505, %v1408
        %1410 = vmatprep.mubr.bf16.mxu0 %v639
        %1411 = vmatmul.mubr.bf16.gmra.mrb[0].mxu0 %v638
        %v1412 = vpop.f32.mrb[0].mxu0
        %v1413 = vadd.f32 %v501, %v1412
        %v1414 = vpop.f32.mrb[0].mxu0
        %v1415 = vadd.f32 %v505, %v1414
        %v1416 = vpop.f32.mrb[0].mxu0
        %v1417 = vadd.f32 %v501, %v1416
        %v1418 = vpop.f32.mrb[0].mxu0
        %v1419 = vadd.f32 %v505, %v1418
        %1420 = vmatprep.mubr.bf16.mxu0 %v643
        %1421 = vmatmul.mubr.bf16.gmra.mrb[0].mxu0 %v642
        %v1422 = vpop.f32.mrb[0].mxu0
        %v1423 = vadd.f32 %v501, %v1422
        %v1424 = vpop.f32.mrb[0].mxu0
        %v1425 = vadd.f32 %v505, %v1424
        %v1426 = vpop.f32.mrb[0].mxu0
        %v1427 = vadd.f32 %v501, %v1426
        %v1428 = vpop.f32.mrb[0].mxu0
        %v1429 = vadd.f32 %v505, %v1428
        %1430 = vdwg.mxu0
        %1431 = vmatprep.subr.bf16.mxu0 %v1127
        %1432 = vmatpush1.bf16.msra.mxu0 %v1126
        %1433 = vmatprep.subr.bf16.mxu0 %v1131
        %1434 = vmatpush1.bf16.msra.mxu0 %v1130
        %1435 = vmatprep.subr.bf16.mxu0 %v1135
        %1436 = vmatpush1.bf16.msra.mxu0 %v1134
        %1437 = vmatprep.subr.bf16.mxu0 %v1139
        %1438 = vmatpush1.bf16.msra.mxu0 %v1138
        %1439 = vmatprep.subr.bf16.mxu0 %v1143
        %1440 = vmatpush1.bf16.msra.mxu0 %v1142
        %1441 = vmatprep.subr.bf16.mxu0 %v1147
        %1442 = vmatpush1.bf16.msra.mxu0 %v1146
        %1443 = vmatprep.subr.bf16.mxu0 %v1151
        %1444 = vmatpush1.bf16.msra.mxu0 %v1150
        %1445 = vmatprep.subr.bf16.mxu0 %v1155
        %1446 = vmatpush1.bf16.msra.mxu0 %v1154
        %1447 = vmatprep.subr.bf16.mxu0 %v1159
        %1448 = vmatpush1.bf16.msra.mxu0 %v1158
        %1449 = vmatprep.subr.bf16.mxu0 %v1163
        %1450 = vmatpush1.bf16.msra.mxu0 %v1162
        %1451 = vmatprep.subr.bf16.mxu0 %v1167
        %1452 = vmatpush1.bf16.msra.mxu0 %v1166
        %1453 = vmatprep.subr.bf16.mxu0 %v1171
        %1454 = vmatpush1.bf16.msra.mxu0 %v1170
        %1455 = vmatprep.subr.bf16.mxu0 %v1175
        %1456 = vmatpush1.bf16.msra.mxu0 %v1174
        %1457 = vmatprep.subr.bf16.mxu0 %v1179
        %1458 = vmatpush1.bf16.msra.mxu0 %v1178
        %1459 = vmatprep.subr.bf16.mxu0 %v1183
        %1460 = vmatpush1.bf16.msra.mxu0 %v1182
        %1461 = vmatprep.subr.bf16.mxu0 %v1187
        %1462 = vmatpush1.bf16.msra.mxu0 %v1186
        %1463 = vmatprep.mubr.bf16.mxu0 %v617
        %1464 = vmatmul.mubr.bf16.gmra.mrb[0].mxu0 %v616
        %v1465 = vpop.f32.mrb[0].mxu0
        %v1466 = vadd.f32 %v1353, %v1465
        %v1467 = vpop.f32.mrb[0].mxu0
        %v1468 = vadd.f32 %v1355, %v1467
        %v1469 = vpop.f32.mrb[0].mxu0
        %v1470 = vadd.f32 %v1357, %v1469
        %v1471 = vpop.f32.mrb[0].mxu0
        %v1472 = vadd.f32 %v1359, %v1471
        %1473 = vmatprep.mubr.bf16.mxu0 %v621
        %1474 = vmatmul.mubr.bf16.gmra.mrb[0].mxu0 %v620
        %v1475 = vpop.f32.mrb[0].mxu0
        %v1476 = vadd.f32 %v1363, %v1475
        %v1477 = vpop.f32.mrb[0].mxu0
        %v1478 = vadd.f32 %v1365, %v1477
        %v1479 = vpop.f32.mrb[0].mxu0
        %v1480 = vadd.f32 %v1367, %v1479
        %v1481 = vpop.f32.mrb[0].mxu0
        %v1482 = vadd.f32 %v1369, %v1481
        %1483 = vmatprep.mubr.bf16.mxu0 %v625
        %1484 = vmatmul.mubr.bf16.gmra.mrb[0].mxu0 %v624
        %v1485 = vpop.f32.mrb[0].mxu0
        %v1486 = vadd.f32 %v1373, %v1485
        %v1487 = vpop.f32.mrb[0].mxu0
        %v1488 = vadd.f32 %v1375, %v1487
        %v1489 = vpop.f32.mrb[0].mxu0
        %v1490 = vadd.f32 %v1377, %v1489
        %v1491 = vpop.f32.mrb[0].mxu0
        %v1492 = vadd.f32 %v1379, %v1491
        %1493 = vmatprep.mubr.bf16.mxu0 %v629
        %1494 = vmatmul.mubr.bf16.gmra.mrb[0].mxu0 %v628
        %v1495 = vpop.f32.mrb[0].mxu0
        %v1496 = vadd.f32 %v1383, %v1495
        %v1497 = vpop.f32.mrb[0].mxu0
        %v1498 = vadd.f32 %v1385, %v1497
        %v1499 = vpop.f32.mrb[0].mxu0
        %v1500 = vadd.f32 %v1387, %v1499
        %v1501 = vpop.f32.mrb[0].mxu0
        %v1502 = vadd.f32 %v1389, %v1501
        %1503 = vmatprep.mubr.bf16.mxu0 %v633
        %1504 = vmatmul.mubr.bf16.gmra.mrb[0].mxu0 %v632
        %v1505 = vpop.f32.mrb[0].mxu0
        %v1506 = vadd.f32 %v1393, %v1505
        %v1507 = vpop.f32.mrb[0].mxu0
        %v1508 = vadd.f32 %v1395, %v1507
        %v1509 = vpop.f32.mrb[0].mxu0
        %v1510 = vadd.f32 %v1397, %v1509
        %v1511 = vpop.f32.mrb[0].mxu0
        %v1512 = vadd.f32 %v1399, %v1511
        %1513 = vmatprep.mubr.bf16.mxu0 %v637
        %1514 = vmatmul.mubr.bf16.gmra.mrb[0].mxu0 %v636
        %v1515 = vpop.f32.mrb[0].mxu0
        %v1516 = vadd.f32 %v1403, %v1515
        %v1517 = vpop.f32.mrb[0].mxu0
        %v1518 = vadd.f32 %v1405, %v1517
        %v1519 = vpop.f32.mrb[0].mxu0
        %v1520 = vadd.f32 %v1407, %v1519
        %v1521 = vpop.f32.mrb[0].mxu0
        %v1522 = vadd.f32 %v1409, %v1521
        %1523 = vmatprep.mubr.bf16.mxu0 %v641
        %1524 = vmatmul.mubr.bf16.gmra.mrb[0].mxu0 %v640
        %v1525 = vpop.f32.mrb[0].mxu0
        %v1526 = vadd.f32 %v1413, %v1525
        %v1527 = vpop.f32.mrb[0].mxu0
        %v1528 = vadd.f32 %v1415, %v1527
        %v1529 = vpop.f32.mrb[0].mxu0
        %v1530 = vadd.f32 %v1417, %v1529
        %v1531 = vpop.f32.mrb[0].mxu0
        %v1532 = vadd.f32 %v1419, %v1531
        %1533 = vmatprep.mubr.bf16.mxu0 %v645
        %1534 = vmatmul.mubr.bf16.gmra.mrb[0].mxu0 %v644
        %v1535 = vpop.f32.mrb[0].mxu0
        %v1536 = vadd.f32 %v1423, %v1535
        %v1537 = vpop.f32.mrb[0].mxu0
        %v1538 = vadd.f32 %v1425, %v1537
        %v1539 = vpop.f32.mrb[0].mxu0
        %v1540 = vadd.f32 %v1427, %v1539
        %v1541 = vpop.f32.mrb[0].mxu0
        %v1542 = vadd.f32 %v1429, %v1541
        %1543 = vdwg.mxu0
        %1544 = vmatprep.subr.bf16.mxu0 %v1065
        %1545 = vmatpush1.bf16.msra.mxu0 %v1064
        %1546 = vmatprep.subr.bf16.mxu0 %v1069
        %1547 = vmatpush1.bf16.msra.mxu0 %v1068
        %1548 = vmatprep.subr.bf16.mxu0 %v1073
        %1549 = vmatpush1.bf16.msra.mxu0 %v1072
        %1550 = vmatprep.subr.bf16.mxu0 %v1077
        %1551 = vmatpush1.bf16.msra.mxu0 %v1076
        %1552 = vmatprep.subr.bf16.mxu0 %v1081
        %1553 = vmatpush1.bf16.msra.mxu0 %v1080
        %1554 = vmatprep.subr.bf16.mxu0 %v1085
        %1555 = vmatpush1.bf16.msra.mxu0 %v1084
        %1556 = vmatprep.subr.bf16.mxu0 %v1089
        %1557 = vmatpush1.bf16.msra.mxu0 %v1088
        %1558 = vmatprep.subr.bf16.mxu0 %v1093
        %1559 = vmatpush1.bf16.msra.mxu0 %v1092
        %1560 = vmatprep.subr.bf16.mxu0 %v1097
        %1561 = vmatpush1.bf16.msra.mxu0 %v1096
        %1562 = vmatprep.subr.bf16.mxu0 %v1101
        %1563 = vmatpush1.bf16.msra.mxu0 %v1100
        %1564 = vmatprep.subr.bf16.mxu0 %v1105
        %1565 = vmatpush1.bf16.msra.mxu0 %v1104
        %1566 = vmatprep.subr.bf16.mxu0 %v1109
        %1567 = vmatpush1.bf16.msra.mxu0 %v1108
        %1568 = vmatprep.subr.bf16.mxu0 %v1113
        %1569 = vmatpush1.bf16.msra.mxu0 %v1112
        %1570 = vmatprep.subr.bf16.mxu0 %v1117
        %1571 = vmatpush1.bf16.msra.mxu0 %v1116
        %1572 = vmatprep.subr.bf16.mxu0 %v1121
        %1573 = vmatpush1.bf16.msra.mxu0 %v1120
        %1574 = vmatprep.subr.bf16.mxu0 %v1125
        %1575 = vmatpush1.bf16.msra.mxu0 %v1124
        %1576 = vmatprep.mubr.bf16.mxu0 %v615
        %1577 = vmatmul.mubr.bf16.gmra.mrb[0].mxu0 %v614
        %v1578 = vpop.f32.mrb[0].mxu0
        %v1579 = vadd.f32 %v509, %v1578
        %v1580 = vpop.f32.mrb[0].mxu0
        %v1581 = vadd.f32 %v513, %v1580
        %v1582 = vpop.f32.mrb[0].mxu0
        %v1583 = vadd.f32 %v509, %v1582
        %v1584 = vpop.f32.mrb[0].mxu0
        %v1585 = vadd.f32 %v513, %v1584
        %1586 = vmatprep.mubr.bf16.mxu0 %v619
        %1587 = vmatmul.mubr.bf16.gmra.mrb[0].mxu0 %v618
        %v1588 = vpop.f32.mrb[0].mxu0
        %v1589 = vadd.f32 %v509, %v1588
        %v1590 = vpop.f32.mrb[0].mxu0
        %v1591 = vadd.f32 %v513, %v1590
        %v1592 = vpop.f32.mrb[0].mxu0
        %v1593 = vadd.f32 %v509, %v1592
        %v1594 = vpop.f32.mrb[0].mxu0
        %v1595 = vadd.f32 %v513, %v1594
        %1596 = vmatprep.mubr.bf16.mxu0 %v623
        %1597 = vmatmul.mubr.bf16.gmra.mrb[0].mxu0 %v622
        %v1598 = vpop.f32.mrb[0].mxu0
        %v1599 = vadd.f32 %v509, %v1598
        %v1600 = vpop.f32.mrb[0].mxu0
        %v1601 = vadd.f32 %v513, %v1600
        %v1602 = vpop.f32.mrb[0].mxu0
        %v1603 = vadd.f32 %v509, %v1602
        %v1604 = vpop.f32.mrb[0].mxu0
        %v1605 = vadd.f32 %v513, %v1604
        %1606 = vmatprep.mubr.bf16.mxu0 %v627
        %1607 = vmatmul.mubr.bf16.gmra.mrb[0].mxu0 %v626
        %v1608 = vpop.f32.mrb[0].mxu0
        %v1609 = vadd.f32 %v509, %v1608
        %v1610 = vpop.f32.mrb[0].mxu0
        %v1611 = vadd.f32 %v513, %v1610
        %v1612 = vpop.f32.mrb[0].mxu0
        %v1613 = vadd.f32 %v509, %v1612
        %v1614 = vpop.f32.mrb[0].mxu0
        %v1615 = vadd.f32 %v513, %v1614
        %1616 = vmatprep.mubr.bf16.mxu0 %v631
        %1617 = vmatmul.mubr.bf16.gmra.mrb[0].mxu0 %v630
        %v1618 = vpop.f32.mrb[0].mxu0
        %v1619 = vadd.f32 %v509, %v1618
        %v1620 = vpop.f32.mrb[0].mxu0
        %v1621 = vadd.f32 %v513, %v1620
        %v1622 = vpop.f32.mrb[0].mxu0
        %v1623 = vadd.f32 %v509, %v1622
        %v1624 = vpop.f32.mrb[0].mxu0
        %v1625 = vadd.f32 %v513, %v1624
        %1626 = vmatprep.mubr.bf16.mxu0 %v635
        %1627 = vmatmul.mubr.bf16.gmra.mrb[0].mxu0 %v634
        %v1628 = vpop.f32.mrb[0].mxu0
        %v1629 = vadd.f32 %v509, %v1628
        %v1630 = vpop.f32.mrb[0].mxu0
        %v1631 = vadd.f32 %v513, %v1630
        %v1632 = vpop.f32.mrb[0].mxu0
        %v1633 = vadd.f32 %v509, %v1632
        %v1634 = vpop.f32.mrb[0].mxu0
        %v1635 = vadd.f32 %v513, %v1634
        %1636 = vmatprep.mubr.bf16.mxu0 %v639
        %1637 = vmatmul.mubr.bf16.gmra.mrb[0].mxu0 %v638
        %v1638 = vpop.f32.mrb[0].mxu0
        %v1639 = vadd.f32 %v509, %v1638
        %v1640 = vpop.f32.mrb[0].mxu0
        %v1641 = vadd.f32 %v513, %v1640
        %v1642 = vpop.f32.mrb[0].mxu0
        %v1643 = vadd.f32 %v509, %v1642
        %v1644 = vpop.f32.mrb[0].mxu0
        %v1645 = vadd.f32 %v513, %v1644
        %1646 = vmatprep.mubr.bf16.mxu0 %v643
        %1647 = vmatmul.mubr.bf16.gmra.mrb[0].mxu0 %v642
        %v1648 = vpop.f32.mrb[0].mxu0
        %v1649 = vadd.f32 %v509, %v1648
        %v1650 = vpop.f32.mrb[0].mxu0
        %v1651 = vadd.f32 %v513, %v1650
        %v1652 = vpop.f32.mrb[0].mxu0
        %v1653 = vadd.f32 %v509, %v1652
        %v1654 = vpop.f32.mrb[0].mxu0
        %v1655 = vadd.f32 %v513, %v1654
        %1656 = vdwg.mxu0
        %1657 = vmatprep.subr.bf16.mxu0 %v1129
        %1658 = vmatpush1.bf16.msra.mxu0 %v1128
        %1659 = vmatprep.subr.bf16.mxu0 %v1133
        %1660 = vmatpush1.bf16.msra.mxu0 %v1132
        %1661 = vmatprep.subr.bf16.mxu0 %v1137
        %1662 = vmatpush1.bf16.msra.mxu0 %v1136
        %1663 = vmatprep.subr.bf16.mxu0 %v1141
        %1664 = vmatpush1.bf16.msra.mxu0 %v1140
        %1665 = vmatprep.subr.bf16.mxu0 %v1145
        %1666 = vmatpush1.bf16.msra.mxu0 %v1144
        %1667 = vmatprep.subr.bf16.mxu0 %v1149
        %1668 = vmatpush1.bf16.msra.mxu0 %v1148
        %1669 = vmatprep.subr.bf16.mxu0 %v1153
        %1670 = vmatpush1.bf16.msra.mxu0 %v1152
        %1671 = vmatprep.subr.bf16.mxu0 %v1157
        %1672 = vmatpush1.bf16.msra.mxu0 %v1156
        %1673 = vmatprep.subr.bf16.mxu0 %v1161
        %1674 = vmatpush1.bf16.msra.mxu0 %v1160
        %1675 = vmatprep.subr.bf16.mxu0 %v1165
        %1676 = vmatpush1.bf16.msra.mxu0 %v1164
        %1677 = vmatprep.subr.bf16.mxu0 %v1169
        %1678 = vmatpush1.bf16.msra.mxu0 %v1168
        %1679 = vmatprep.subr.bf16.mxu0 %v1173
        %1680 = vmatpush1.bf16.msra.mxu0 %v1172
        %1681 = vmatprep.subr.bf16.mxu0 %v1177
        %1682 = vmatpush1.bf16.msra.mxu0 %v1176
        %1683 = vmatprep.subr.bf16.mxu0 %v1181
        %1684 = vmatpush1.bf16.msra.mxu0 %v1180
        %1685 = vmatprep.subr.bf16.mxu0 %v1185
        %1686 = vmatpush1.bf16.msra.mxu0 %v1184
        %1687 = vmatprep.subr.bf16.mxu0 %v1189
        %1688 = vmatpush1.bf16.msra.mxu0 %v1188
        %1689 = vmatprep.mubr.bf16.mxu0 %v617
        %1690 = vmatmul.mubr.bf16.gmra.mrb[0].mxu0 %v616
        %v1691 = vpop.f32.mrb[0].mxu0
        %v1692 = vadd.f32 %v1579, %v1691
        %v1693 = vpop.f32.mrb[0].mxu0
        %v1694 = vadd.f32 %v1581, %v1693
        %v1695 = vpop.f32.mrb[0].mxu0
        %v1696 = vadd.f32 %v1583, %v1695
        %v1697 = vpop.f32.mrb[0].mxu0
        %v1698 = vadd.f32 %v1585, %v1697
        %1699 = vmatprep.mubr.bf16.mxu0 %v621
        %1700 = vmatmul.mubr.bf16.gmra.mrb[0].mxu0 %v620
        %v1701 = vpop.f32.mrb[0].mxu0
        %v1702 = vadd.f32 %v1589, %v1701
        %v1703 = vpop.f32.mrb[0].mxu0
        %v1704 = vadd.f32 %v1591, %v1703
        %v1705 = vpop.f32.mrb[0].mxu0
        %v1706 = vadd.f32 %v1593, %v1705
        %v1707 = vpop.f32.mrb[0].mxu0
        %v1708 = vadd.f32 %v1595, %v1707
        %1709 = vmatprep.mubr.bf16.mxu0 %v625
        %1710 = vmatmul.mubr.bf16.gmra.mrb[0].mxu0 %v624
        %v1711 = vpop.f32.mrb[0].mxu0
        %v1712 = vadd.f32 %v1599, %v1711
        %v1713 = vpop.f32.mrb[0].mxu0
        %v1714 = vadd.f32 %v1601, %v1713
        %v1715 = vpop.f32.mrb[0].mxu0
        %v1716 = vadd.f32 %v1603, %v1715
        %v1717 = vpop.f32.mrb[0].mxu0
        %v1718 = vadd.f32 %v1605, %v1717
        %1719 = vmatprep.mubr.bf16.mxu0 %v629
        %1720 = vmatmul.mubr.bf16.gmra.mrb[0].mxu0 %v628
        %v1721 = vpop.f32.mrb[0].mxu0
        %v1722 = vadd.f32 %v1609, %v1721
        %v1723 = vpop.f32.mrb[0].mxu0
        %v1724 = vadd.f32 %v1611, %v1723
        %v1725 = vpop.f32.mrb[0].mxu0
        %v1726 = vadd.f32 %v1613, %v1725
        %v1727 = vpop.f32.mrb[0].mxu0
        %v1728 = vadd.f32 %v1615, %v1727
        %1729 = vmatprep.mubr.bf16.mxu0 %v633
        %1730 = vmatmul.mubr.bf16.gmra.mrb[0].mxu0 %v632
        %v1731 = vpop.f32.mrb[0].mxu0
        %v1732 = vadd.f32 %v1619, %v1731
        %v1733 = vpop.f32.mrb[0].mxu0
        %v1734 = vadd.f32 %v1621, %v1733
        %v1735 = vpop.f32.mrb[0].mxu0
        %v1736 = vadd.f32 %v1623, %v1735
        %v1737 = vpop.f32.mrb[0].mxu0
        %v1738 = vadd.f32 %v1625, %v1737
        %1739 = vmatprep.mubr.bf16.mxu0 %v637
        %1740 = vmatmul.mubr.bf16.gmra.mrb[0].mxu0 %v636
        %v1741 = vpop.f32.mrb[0].mxu0
        %v1742 = vadd.f32 %v1629, %v1741
        %v1743 = vpop.f32.mrb[0].mxu0
        %v1744 = vadd.f32 %v1631, %v1743
        %v1745 = vpop.f32.mrb[0].mxu0
        %v1746 = vadd.f32 %v1633, %v1745
        %v1747 = vpop.f32.mrb[0].mxu0
        %v1748 = vadd.f32 %v1635, %v1747
        %1749 = vmatprep.mubr.bf16.mxu0 %v641
        %1750 = vmatmul.mubr.bf16.gmra.mrb[0].mxu0 %v640
        %v1751 = vpop.f32.mrb[0].mxu0
        %v1752 = vadd.f32 %v1639, %v1751
        %v1753 = vpop.f32.mrb[0].mxu0
        %v1754 = vadd.f32 %v1641, %v1753
        %v1755 = vpop.f32.mrb[0].mxu0
        %v1756 = vadd.f32 %v1643, %v1755
        %v1757 = vpop.f32.mrb[0].mxu0
        %v1758 = vadd.f32 %v1645, %v1757
        %1759 = vmatprep.mubr.bf16.mxu0 %v645
        %1760 = vmatmul.mubr.bf16.gmra.mrb[0].mxu0 %v644
        %v1761 = vpop.f32.mrb[0].mxu0
        %v1762 = vadd.f32 %v1649, %v1761
        %v1763 = vpop.f32.mrb[0].mxu0
        %v1764 = vadd.f32 %v1651, %v1763
        %v1765 = vpop.f32.mrb[0].mxu0
        %v1766 = vadd.f32 %v1653, %v1765
        %v1767 = vpop.f32.mrb[0].mxu0
        %v1768 = vadd.f32 %v1655, %v1767
        %1769 = vdwg.mxu0
        %v1770 = vld [vmem:[%s332] sm:$0xff]
        %v1771 = vld [vmem:[%s332 + $0x8] sm:$0xff]
        %v1772 = vld [vmem:[%s332 + $0x10] sm:$0xff]
        %v1773 = vld [vmem:[%s332 + $0x18] sm:$0xff]
        %v1774 = vld [vmem:[%s332 + $0x20] sm:$0xff]
        %v1775 = vld [vmem:[%s332 + $0x28] sm:$0xff]
        %v1776 = vld [vmem:[%s332 + $0x30] sm:$0xff]
        %v1777 = vld [vmem:[%s332 + $0x38] sm:$0xff]
        %v1778 = vld [vmem:[%s332 + $0x40] sm:$0xff]
        %v1779 = vld [vmem:[%s332 + $0x48] sm:$0xff]
        %v1780 = vld [vmem:[%s332 + $0x50] sm:$0xff]
        %v1781 = vld [vmem:[%s332 + $0x58] sm:$0xff]
        %v1782 = vld [vmem:[%s332 + $0x60] sm:$0xff]
        %v1783 = vld [vmem:[%s332 + $0x68] sm:$0xff]
        %v1784 = vld [vmem:[%s332 + $0x70] sm:$0xff]
        %v1785 = vld [vmem:[%s332 + $0x78] sm:$0xff]
        %v1786 = vld [vmem:[%s332 + $0x80] sm:$0xff]
        %v1787 = vld [vmem:[%s332 + $0x88] sm:$0xff]
        %v1788 = vld [vmem:[%s332 + $0x90] sm:$0xff]
        %v1789 = vld [vmem:[%s332 + $0x98] sm:$0xff]
        %v1790 = vld [vmem:[%s332 + $0xa0] sm:$0xff]
        %v1791 = vld [vmem:[%s332 + $0xa8] sm:$0xff]
        %v1792 = vld [vmem:[%s332 + $0xb0] sm:$0xff]
        %v1793 = vld [vmem:[%s332 + $0xb8] sm:$0xff]
        %v1794 = vld [vmem:[%s332 + $0xc0] sm:$0xff]
        %v1795 = vld [vmem:[%s332 + $0xc8] sm:$0xff]
        %v1796 = vld [vmem:[%s332 + $0xd0] sm:$0xff]
        %v1797 = vld [vmem:[%s332 + $0xd8] sm:$0xff]
        %v1798 = vld [vmem:[%s332 + $0xe0] sm:$0xff]
        %v1799 = vld [vmem:[%s332 + $0xe8] sm:$0xff]
        %v1800 = vld [vmem:[%s332 + $0xf0] sm:$0xff]
        %v1801 = vld [vmem:[%s332 + $0xf8] sm:$0xff]
        %v1802 = vld [vmem:[%s4] sm:$0xff]
        %v1803 = vld [vmem:[%s4 + $0x8] sm:$0xff]
        %v1804 = vld [vmem:[%s4 + $0x10] sm:$0xff]
        %v1805 = vld [vmem:[%s4 + $0x18] sm:$0xff]
        %v1806 = vld [vmem:[%s4 + $0x20] sm:$0xff]
        %v1807 = vld [vmem:[%s4 + $0x28] sm:$0xff]
        %v1808 = vld [vmem:[%s4 + $0x30] sm:$0xff]
        %v1809 = vld [vmem:[%s4 + $0x38] sm:$0xff]
        %v1810 = vld [vmem:[%s4 + $0x40] sm:$0xff]
        %v1811 = vld [vmem:[%s4 + $0x48] sm:$0xff]
        %v1812 = vld [vmem:[%s4 + $0x50] sm:$0xff]
        %v1813 = vld [vmem:[%s4 + $0x58] sm:$0xff]
        %v1814 = vld [vmem:[%s4 + $0x60] sm:$0xff]
        %v1815 = vld [vmem:[%s4 + $0x68] sm:$0xff]
        %v1816 = vld [vmem:[%s4 + $0x70] sm:$0xff]
        %v1817 = vld [vmem:[%s4 + $0x78] sm:$0xff]
        %v1818 = vld [vmem:[%s4 + $0x80] sm:$0xff]
        %v1819 = vld [vmem:[%s4 + $0x88] sm:$0xff]
        %v1820 = vld [vmem:[%s4 + $0x90] sm:$0xff]
        %v1821 = vld [vmem:[%s4 + $0x98] sm:$0xff]
        %v1822 = vld [vmem:[%s4 + $0xa0] sm:$0xff]
        %v1823 = vld [vmem:[%s4 + $0xa8] sm:$0xff]
        %v1824 = vld [vmem:[%s4 + $0xb0] sm:$0xff]
        %v1825 = vld [vmem:[%s4 + $0xb8] sm:$0xff]
        %v1826 = vld [vmem:[%s4 + $0xc0] sm:$0xff]
        %v1827 = vld [vmem:[%s4 + $0xc8] sm:$0xff]
        %v1828 = vld [vmem:[%s4 + $0xd0] sm:$0xff]
        %v1829 = vld [vmem:[%s4 + $0xd8] sm:$0xff]
        %v1830 = vld [vmem:[%s4 + $0xe0] sm:$0xff]
        %v1831 = vld [vmem:[%s4 + $0xe8] sm:$0xff]
        %v1832 = vld [vmem:[%s4 + $0xf0] sm:$0xff]
        %v1833 = vld [vmem:[%s4 + $0xf8] sm:$0xff]
        %v1834 = vld [vmem:[%s4 + $0x100] sm:$0xff]
        %v1835 = vld [vmem:[%s4 + $0x108] sm:$0xff]
        %v1836 = vld [vmem:[%s4 + $0x110] sm:$0xff]
        %v1837 = vld [vmem:[%s4 + $0x118] sm:$0xff]
        %v1838 = vld [vmem:[%s4 + $0x120] sm:$0xff]
        %v1839 = vld [vmem:[%s4 + $0x128] sm:$0xff]
        %v1840 = vld [vmem:[%s4 + $0x130] sm:$0xff]
        %v1841 = vld [vmem:[%s4 + $0x138] sm:$0xff]
        %v1842 = vld [vmem:[%s4 + $0x140] sm:$0xff]
        %v1843 = vld [vmem:[%s4 + $0x148] sm:$0xff]
        %v1844 = vld [vmem:[%s4 + $0x150] sm:$0xff]
        %v1845 = vld [vmem:[%s4 + $0x158] sm:$0xff]
        %v1846 = vld [vmem:[%s4 + $0x160] sm:$0xff]
        %v1847 = vld [vmem:[%s4 + $0x168] sm:$0xff]
        %v1848 = vld [vmem:[%s4 + $0x170] sm:$0xff]
        %v1849 = vld [vmem:[%s4 + $0x178] sm:$0xff]
        %v1850 = vld [vmem:[%s4 + $0x180] sm:$0xff]
        %v1851 = vld [vmem:[%s4 + $0x188] sm:$0xff]
        %v1852 = vld [vmem:[%s4 + $0x190] sm:$0xff]
        %v1853 = vld [vmem:[%s4 + $0x198] sm:$0xff]
        %v1854 = vld [vmem:[%s4 + $0x1a0] sm:$0xff]
        %v1855 = vld [vmem:[%s4 + $0x1a8] sm:$0xff]
        %v1856 = vld [vmem:[%s4 + $0x1b0] sm:$0xff]
        %v1857 = vld [vmem:[%s4 + $0x1b8] sm:$0xff]
        %v1858 = vld [vmem:[%s4 + $0x1c0] sm:$0xff]
        %v1859 = vld [vmem:[%s4 + $0x1c8] sm:$0xff]
        %v1860 = vld [vmem:[%s4 + $0x1d0] sm:$0xff]
        %v1861 = vld [vmem:[%s4 + $0x1d8] sm:$0xff]
        %v1862 = vld [vmem:[%s4 + $0x1e0] sm:$0xff]
        %v1863 = vld [vmem:[%s4 + $0x1e8] sm:$0xff]
        %v1864 = vld [vmem:[%s4 + $0x1f0] sm:$0xff]
        %v1865 = vld [vmem:[%s4 + $0x1f8] sm:$0xff]
        %v1866 = vld [vmem:[%s4 + $0x200] sm:$0xff]
        %v1867 = vld [vmem:[%s4 + $0x208] sm:$0xff]
        %v1868 = vld [vmem:[%s4 + $0x210] sm:$0xff]
        %v1869 = vld [vmem:[%s4 + $0x218] sm:$0xff]
        %v1870 = vld [vmem:[%s4 + $0x220] sm:$0xff]
        %v1871 = vld [vmem:[%s4 + $0x228] sm:$0xff]
        %v1872 = vld [vmem:[%s4 + $0x230] sm:$0xff]
        %v1873 = vld [vmem:[%s4 + $0x238] sm:$0xff]
        %v1874 = vld [vmem:[%s4 + $0x240] sm:$0xff]
        %v1875 = vld [vmem:[%s4 + $0x248] sm:$0xff]
        %v1876 = vld [vmem:[%s4 + $0x250] sm:$0xff]
        %v1877 = vld [vmem:[%s4 + $0x258] sm:$0xff]
        %v1878 = vld [vmem:[%s4 + $0x260] sm:$0xff]
        %v1879 = vld [vmem:[%s4 + $0x268] sm:$0xff]
        %v1880 = vld [vmem:[%s4 + $0x270] sm:$0xff]
        %v1881 = vld [vmem:[%s4 + $0x278] sm:$0xff]
        %v1882 = vld [vmem:[%s4 + $0x280] sm:$0xff]
        %v1883 = vld [vmem:[%s4 + $0x288] sm:$0xff]
        %v1884 = vld [vmem:[%s4 + $0x290] sm:$0xff]
        %v1885 = vld [vmem:[%s4 + $0x298] sm:$0xff]
        %v1886 = vld [vmem:[%s4 + $0x2a0] sm:$0xff]
        %v1887 = vld [vmem:[%s4 + $0x2a8] sm:$0xff]
        %v1888 = vld [vmem:[%s4 + $0x2b0] sm:$0xff]
        %v1889 = vld [vmem:[%s4 + $0x2b8] sm:$0xff]
        %v1890 = vld [vmem:[%s4 + $0x2c0] sm:$0xff]
        %v1891 = vld [vmem:[%s4 + $0x2c8] sm:$0xff]
        %v1892 = vld [vmem:[%s4 + $0x2d0] sm:$0xff]
        %v1893 = vld [vmem:[%s4 + $0x2d8] sm:$0xff]
        %v1894 = vld [vmem:[%s4 + $0x2e0] sm:$0xff]
        %v1895 = vld [vmem:[%s4 + $0x2e8] sm:$0xff]
        %v1896 = vld [vmem:[%s4 + $0x2f0] sm:$0xff]
        %v1897 = vld [vmem:[%s4 + $0x2f8] sm:$0xff]
        %v1898 = vld [vmem:[%s4 + $0x300] sm:$0xff]
        %v1899 = vld [vmem:[%s4 + $0x308] sm:$0xff]
        %v1900 = vld [vmem:[%s4 + $0x310] sm:$0xff]
        %v1901 = vld [vmem:[%s4 + $0x318] sm:$0xff]
        %v1902 = vld [vmem:[%s4 + $0x320] sm:$0xff]
        %v1903 = vld [vmem:[%s4 + $0x328] sm:$0xff]
        %v1904 = vld [vmem:[%s4 + $0x330] sm:$0xff]
        %v1905 = vld [vmem:[%s4 + $0x338] sm:$0xff]
        %v1906 = vld [vmem:[%s4 + $0x340] sm:$0xff]
        %v1907 = vld [vmem:[%s4 + $0x348] sm:$0xff]
        %v1908 = vld [vmem:[%s4 + $0x350] sm:$0xff]
        %v1909 = vld [vmem:[%s4 + $0x358] sm:$0xff]
        %v1910 = vld [vmem:[%s4 + $0x360] sm:$0xff]
        %v1911 = vld [vmem:[%s4 + $0x368] sm:$0xff]
        %v1912 = vld [vmem:[%s4 + $0x370] sm:$0xff]
        %v1913 = vld [vmem:[%s4 + $0x378] sm:$0xff]
        %v1914 = vld [vmem:[%s4 + $0x380] sm:$0xff]
        %v1915 = vld [vmem:[%s4 + $0x388] sm:$0xff]
        %v1916 = vld [vmem:[%s4 + $0x390] sm:$0xff]
        %v1917 = vld [vmem:[%s4 + $0x398] sm:$0xff]
        %v1918 = vld [vmem:[%s4 + $0x3a0] sm:$0xff]
        %v1919 = vld [vmem:[%s4 + $0x3a8] sm:$0xff]
        %v1920 = vld [vmem:[%s4 + $0x3b0] sm:$0xff]
        %v1921 = vld [vmem:[%s4 + $0x3b8] sm:$0xff]
        %v1922 = vld [vmem:[%s4 + $0x3c0] sm:$0xff]
        %v1923 = vld [vmem:[%s4 + $0x3c8] sm:$0xff]
        %v1924 = vld [vmem:[%s4 + $0x3d0] sm:$0xff]
        %v1925 = vld [vmem:[%s4 + $0x3d8] sm:$0xff]
        %v1926 = vld [vmem:[%s4 + $0x3e0] sm:$0xff]
        %v1927 = vld [vmem:[%s4 + $0x3e8] sm:$0xff]
        %v1928 = vld [vmem:[%s4 + $0x3f0] sm:$0xff]
        %v1929 = vld [vmem:[%s4 + $0x3f8] sm:$0xff]
        %v1930 = vld [vmem:[%s5] sm:$0xf]
        %v1932 = vlaneseq
        %v1933 = vshrl.u32 %v1932, 7
        %v1934 = vsub.s32 0, %v1933
        %v1935 = vrot.slane %v1930, %v1934
        %v1936 = vlaneseq
        %v1937 = vshrl.u32 %v1936, 7
        %v1938 = vsub.s32 1, %v1937
        %v1939 = vrot.slane %v1930, %v1938
        %v1940 = vlaneseq
        %v1941 = vshrl.u32 %v1940, 7
        %v1942 = vsub.s32 2, %v1941
        %v1943 = vrot.slane %v1930, %v1942
        %v1944 = vlaneseq
        %v1945 = vshrl.u32 %v1944, 7
        %v1946 = vsub.s32 3, %v1945
        %v1947 = vrot.slane %v1930, %v1946
        %v1984 = vunpack.c.l.b16 %v1770
        %v1985 = vunpack.c.h.b16 %v1770
        %v1986 = vunpack.c.l.b16 %v1771
        %v1987 = vunpack.c.h.b16 %v1771
        %v1988 = vunpack.c.l.b16 %v1772
        %v1989 = vunpack.c.h.b16 %v1772
        %v1990 = vunpack.c.l.b16 %v1773
        %v1991 = vunpack.c.h.b16 %v1773
        %v1992 = vunpack.c.l.b16 %v1774
        %v1993 = vunpack.c.h.b16 %v1774
        %v1994 = vunpack.c.l.b16 %v1775
        %v1995 = vunpack.c.h.b16 %v1775
        %v1996 = vunpack.c.l.b16 %v1776
        %v1997 = vunpack.c.h.b16 %v1776
        %v1998 = vunpack.c.l.b16 %v1777
        %v1999 = vunpack.c.h.b16 %v1777
        %v2000 = vunpack.c.l.b16 %v1778
        %v2001 = vunpack.c.h.b16 %v1778
        %v2002 = vunpack.c.l.b16 %v1779
        %v2003 = vunpack.c.h.b16 %v1779
        %v2004 = vunpack.c.l.b16 %v1780
        %v2005 = vunpack.c.h.b16 %v1780
        %v2006 = vunpack.c.l.b16 %v1781
        %v2007 = vunpack.c.h.b16 %v1781
        %v2008 = vunpack.c.l.b16 %v1782
        %v2009 = vunpack.c.h.b16 %v1782
        %v2010 = vunpack.c.l.b16 %v1783
        %v2011 = vunpack.c.h.b16 %v1783
        %v2012 = vunpack.c.l.b16 %v1784
        %v2013 = vunpack.c.h.b16 %v1784
        %v2014 = vunpack.c.l.b16 %v1785
        %v2015 = vunpack.c.h.b16 %v1785
        %v2016 = vunpack.c.l.b16 %v1786
        %v2017 = vunpack.c.h.b16 %v1786
        %v2018 = vunpack.c.l.b16 %v1787
        %v2019 = vunpack.c.h.b16 %v1787
        %v2020 = vunpack.c.l.b16 %v1788
        %v2021 = vunpack.c.h.b16 %v1788
        %v2022 = vunpack.c.l.b16 %v1789
        %v2023 = vunpack.c.h.b16 %v1789
        %v2024 = vunpack.c.l.b16 %v1790
        %v2025 = vunpack.c.h.b16 %v1790
        %v2026 = vunpack.c.l.b16 %v1791
        %v2027 = vunpack.c.h.b16 %v1791
        %v2028 = vunpack.c.l.b16 %v1792
        %v2029 = vunpack.c.h.b16 %v1792
        %v2030 = vunpack.c.l.b16 %v1793
        %v2031 = vunpack.c.h.b16 %v1793
        %v2032 = vunpack.c.l.b16 %v1794
        %v2033 = vunpack.c.h.b16 %v1794
        %v2034 = vunpack.c.l.b16 %v1795
        %v2035 = vunpack.c.h.b16 %v1795
        %v2036 = vunpack.c.l.b16 %v1796
        %v2037 = vunpack.c.h.b16 %v1796
        %v2038 = vunpack.c.l.b16 %v1797
        %v2039 = vunpack.c.h.b16 %v1797
        %v2040 = vunpack.c.l.b16 %v1798
        %v2041 = vunpack.c.h.b16 %v1798
        %v2042 = vunpack.c.l.b16 %v1799
        %v2043 = vunpack.c.h.b16 %v1799
        %v2044 = vunpack.c.l.b16 %v1800
        %v2045 = vunpack.c.h.b16 %v1800
        %v2046 = vunpack.c.l.b16 %v1801
        %v2047 = vunpack.c.h.b16 %v1801
        %v2048 = vpack.c.b16 %v1988, %v1984
        %v2049 = vpack.c.b16 %v1989, %v1985
        %v2050 = vpack.c.b16 %v1990, %v1986
        %v2051 = vpack.c.b16 %v1991, %v1987
        %v2052 = vpack.c.b16 %v1996, %v1992
        %v2053 = vpack.c.b16 %v1997, %v1993
        %v2054 = vpack.c.b16 %v1998, %v1994
        %v2055 = vpack.c.b16 %v1999, %v1995
        %v2056 = vpack.c.b16 %v2004, %v2000
        %v2057 = vpack.c.b16 %v2005, %v2001
        %v2058 = vpack.c.b16 %v2006, %v2002
        %v2059 = vpack.c.b16 %v2007, %v2003
        %v2060 = vpack.c.b16 %v2012, %v2008
        %v2061 = vpack.c.b16 %v2013, %v2009
        %v2062 = vpack.c.b16 %v2014, %v2010
        %v2063 = vpack.c.b16 %v2015, %v2011
        %v2064 = vpack.c.b16 %v2020, %v2016
        %v2065 = vpack.c.b16 %v2021, %v2017
        %v2066 = vpack.c.b16 %v2022, %v2018
        %v2067 = vpack.c.b16 %v2023, %v2019
        %v2068 = vpack.c.b16 %v2028, %v2024
        %v2069 = vpack.c.b16 %v2029, %v2025
        %v2070 = vpack.c.b16 %v2030, %v2026
        %v2071 = vpack.c.b16 %v2031, %v2027
        %v2072 = vpack.c.b16 %v2036, %v2032
        %v2073 = vpack.c.b16 %v2037, %v2033
        %v2074 = vpack.c.b16 %v2038, %v2034
        %v2075 = vpack.c.b16 %v2039, %v2035
        %v2076 = vpack.c.b16 %v2044, %v2040
        %v2077 = vpack.c.b16 %v2045, %v2041
        %v2078 = vpack.c.b16 %v2046, %v2042
        %v2079 = vpack.c.b16 %v2047, %v2043
        %v2240 = vunpack.c.l.b16 %v1802
        %v2241 = vunpack.c.h.b16 %v1802
        %v2242 = vunpack.c.l.b16 %v1803
        %v2243 = vunpack.c.h.b16 %v1803
        %v2244 = vunpack.c.l.b16 %v1804
        %v2245 = vunpack.c.h.b16 %v1804
        %v2246 = vunpack.c.l.b16 %v1805
        %v2247 = vunpack.c.h.b16 %v1805
        %v2248 = vunpack.c.l.b16 %v1806
        %v2249 = vunpack.c.h.b16 %v1806
        %v2250 = vunpack.c.l.b16 %v1807
        %v2251 = vunpack.c.h.b16 %v1807
        %v2252 = vunpack.c.l.b16 %v1808
        %v2253 = vunpack.c.h.b16 %v1808
        %v2254 = vunpack.c.l.b16 %v1809
        %v2255 = vunpack.c.h.b16 %v1809
        %v2256 = vunpack.c.l.b16 %v1810
        %v2257 = vunpack.c.h.b16 %v1810
        %v2258 = vunpack.c.l.b16 %v1811
        %v2259 = vunpack.c.h.b16 %v1811
        %v2260 = vunpack.c.l.b16 %v1812
        %v2261 = vunpack.c.h.b16 %v1812
        %v2262 = vunpack.c.l.b16 %v1813
        %v2263 = vunpack.c.h.b16 %v1813
        %v2264 = vunpack.c.l.b16 %v1814
        %v2265 = vunpack.c.h.b16 %v1814
        %v2266 = vunpack.c.l.b16 %v1815
        %v2267 = vunpack.c.h.b16 %v1815
        %v2268 = vunpack.c.l.b16 %v1816
        %v2269 = vunpack.c.h.b16 %v1816
        %v2270 = vunpack.c.l.b16 %v1817
        %v2271 = vunpack.c.h.b16 %v1817
        %v2272 = vunpack.c.l.b16 %v1818
        %v2273 = vunpack.c.h.b16 %v1818
        %v2274 = vunpack.c.l.b16 %v1819
        %v2275 = vunpack.c.h.b16 %v1819
        %v2276 = vunpack.c.l.b16 %v1820
        %v2277 = vunpack.c.h.b16 %v1820
        %v2278 = vunpack.c.l.b16 %v1821
        %v2279 = vunpack.c.h.b16 %v1821
        %v2280 = vunpack.c.l.b16 %v1822
        %v2281 = vunpack.c.h.b16 %v1822
        %v2282 = vunpack.c.l.b16 %v1823
        %v2283 = vunpack.c.h.b16 %v1823
        %v2284 = vunpack.c.l.b16 %v1824
        %v2285 = vunpack.c.h.b16 %v1824
        %v2286 = vunpack.c.l.b16 %v1825
        %v2287 = vunpack.c.h.b16 %v1825
        %v2288 = vunpack.c.l.b16 %v1826
        %v2289 = vunpack.c.h.b16 %v1826
        %v2290 = vunpack.c.l.b16 %v1827
        %v2291 = vunpack.c.h.b16 %v1827
        %v2292 = vunpack.c.l.b16 %v1828
        %v2293 = vunpack.c.h.b16 %v1828
        %v2294 = vunpack.c.l.b16 %v1829
        %v2295 = vunpack.c.h.b16 %v1829
        %v2296 = vunpack.c.l.b16 %v1830
        %v2297 = vunpack.c.h.b16 %v1830
        %v2298 = vunpack.c.l.b16 %v1831
        %v2299 = vunpack.c.h.b16 %v1831
        %v2300 = vunpack.c.l.b16 %v1832
        %v2301 = vunpack.c.h.b16 %v1832
        %v2302 = vunpack.c.l.b16 %v1833
        %v2303 = vunpack.c.h.b16 %v1833
        %v2304 = vunpack.c.l.b16 %v1834
        %v2305 = vunpack.c.h.b16 %v1834
        %v2306 = vunpack.c.l.b16 %v1835
        %v2307 = vunpack.c.h.b16 %v1835
        %v2308 = vunpack.c.l.b16 %v1836
        %v2309 = vunpack.c.h.b16 %v1836
        %v2310 = vunpack.c.l.b16 %v1837
        %v2311 = vunpack.c.h.b16 %v1837
        %v2312 = vunpack.c.l.b16 %v1838
        %v2313 = vunpack.c.h.b16 %v1838
        %v2314 = vunpack.c.l.b16 %v1839
        %v2315 = vunpack.c.h.b16 %v1839
        %v2316 = vunpack.c.l.b16 %v1840
        %v2317 = vunpack.c.h.b16 %v1840
        %v2318 = vunpack.c.l.b16 %v1841
        %v2319 = vunpack.c.h.b16 %v1841
        %v2320 = vunpack.c.l.b16 %v1842
        %v2321 = vunpack.c.h.b16 %v1842
        %v2322 = vunpack.c.l.b16 %v1843
        %v2323 = vunpack.c.h.b16 %v1843
        %v2324 = vunpack.c.l.b16 %v1844
        %v2325 = vunpack.c.h.b16 %v1844
        %v2326 = vunpack.c.l.b16 %v1845
        %v2327 = vunpack.c.h.b16 %v1845
        %v2328 = vunpack.c.l.b16 %v1846
        %v2329 = vunpack.c.h.b16 %v1846
        %v2330 = vunpack.c.l.b16 %v1847
        %v2331 = vunpack.c.h.b16 %v1847
        %v2332 = vunpack.c.l.b16 %v1848
        %v2333 = vunpack.c.h.b16 %v1848
        %v2334 = vunpack.c.l.b16 %v1849
        %v2335 = vunpack.c.h.b16 %v1849
        %v2336 = vunpack.c.l.b16 %v1850
        %v2337 = vunpack.c.h.b16 %v1850
        %v2338 = vunpack.c.l.b16 %v1851
        %v2339 = vunpack.c.h.b16 %v1851
        %v2340 = vunpack.c.l.b16 %v1852
        %v2341 = vunpack.c.h.b16 %v1852
        %v2342 = vunpack.c.l.b16 %v1853
        %v2343 = vunpack.c.h.b16 %v1853
        %v2344 = vunpack.c.l.b16 %v1854
        %v2345 = vunpack.c.h.b16 %v1854
        %v2346 = vunpack.c.l.b16 %v1855
        %v2347 = vunpack.c.h.b16 %v1855
        %v2348 = vunpack.c.l.b16 %v1856
        %v2349 = vunpack.c.h.b16 %v1856
        %v2350 = vunpack.c.l.b16 %v1857
        %v2351 = vunpack.c.h.b16 %v1857
        %v2352 = vunpack.c.l.b16 %v1858
        %v2353 = vunpack.c.h.b16 %v1858
        %v2354 = vunpack.c.l.b16 %v1859
        %v2355 = vunpack.c.h.b16 %v1859
        %v2356 = vunpack.c.l.b16 %v1860
        %v2357 = vunpack.c.h.b16 %v1860
        %v2358 = vunpack.c.l.b16 %v1861
        %v2359 = vunpack.c.h.b16 %v1861
        %v2360 = vunpack.c.l.b16 %v1862
        %v2361 = vunpack.c.h.b16 %v1862
        %v2362 = vunpack.c.l.b16 %v1863
        %v2363 = vunpack.c.h.b16 %v1863
        %v2364 = vunpack.c.l.b16 %v1864
        %v2365 = vunpack.c.h.b16 %v1864
        %v2366 = vunpack.c.l.b16 %v1865
        %v2367 = vunpack.c.h.b16 %v1865
        %v2368 = vunpack.c.l.b16 %v1866
        %v2369 = vunpack.c.h.b16 %v1866
        %v2370 = vunpack.c.l.b16 %v1867
        %v2371 = vunpack.c.h.b16 %v1867
        %v2372 = vunpack.c.l.b16 %v1868
        %v2373 = vunpack.c.h.b16 %v1868
        %v2374 = vunpack.c.l.b16 %v1869
        %v2375 = vunpack.c.h.b16 %v1869
        %v2376 = vunpack.c.l.b16 %v1870
        %v2377 = vunpack.c.h.b16 %v1870
        %v2378 = vunpack.c.l.b16 %v1871
        %v2379 = vunpack.c.h.b16 %v1871
        %v2380 = vunpack.c.l.b16 %v1872
        %v2381 = vunpack.c.h.b16 %v1872
        %v2382 = vunpack.c.l.b16 %v1873
        %v2383 = vunpack.c.h.b16 %v1873
        %v2384 = vunpack.c.l.b16 %v1874
        %v2385 = vunpack.c.h.b16 %v1874
        %v2386 = vunpack.c.l.b16 %v1875
        %v2387 = vunpack.c.h.b16 %v1875
        %v2388 = vunpack.c.l.b16 %v1876
        %v2389 = vunpack.c.h.b16 %v1876
        %v2390 = vunpack.c.l.b16 %v1877
        %v2391 = vunpack.c.h.b16 %v1877
        %v2392 = vunpack.c.l.b16 %v1878
        %v2393 = vunpack.c.h.b16 %v1878
        %v2394 = vunpack.c.l.b16 %v1879
        %v2395 = vunpack.c.h.b16 %v1879
        %v2396 = vunpack.c.l.b16 %v1880
        %v2397 = vunpack.c.h.b16 %v1880
        %v2398 = vunpack.c.l.b16 %v1881
        %v2399 = vunpack.c.h.b16 %v1881
        %v2400 = vunpack.c.l.b16 %v1882
        %v2401 = vunpack.c.h.b16 %v1882
        %v2402 = vunpack.c.l.b16 %v1883
        %v2403 = vunpack.c.h.b16 %v1883
        %v2404 = vunpack.c.l.b16 %v1884
        %v2405 = vunpack.c.h.b16 %v1884
        %v2406 = vunpack.c.l.b16 %v1885
        %v2407 = vunpack.c.h.b16 %v1885
        %v2408 = vunpack.c.l.b16 %v1886
        %v2409 = vunpack.c.h.b16 %v1886
        %v2410 = vunpack.c.l.b16 %v1887
        %v2411 = vunpack.c.h.b16 %v1887
        %v2412 = vunpack.c.l.b16 %v1888
        %v2413 = vunpack.c.h.b16 %v1888
        %v2414 = vunpack.c.l.b16 %v1889
        %v2415 = vunpack.c.h.b16 %v1889
        %v2416 = vunpack.c.l.b16 %v1890
        %v2417 = vunpack.c.h.b16 %v1890
        %v2418 = vunpack.c.l.b16 %v1891
        %v2419 = vunpack.c.h.b16 %v1891
        %v2420 = vunpack.c.l.b16 %v1892
        %v2421 = vunpack.c.h.b16 %v1892
        %v2422 = vunpack.c.l.b16 %v1893
        %v2423 = vunpack.c.h.b16 %v1893
        %v2424 = vunpack.c.l.b16 %v1894
        %v2425 = vunpack.c.h.b16 %v1894
        %v2426 = vunpack.c.l.b16 %v1895
        %v2427 = vunpack.c.h.b16 %v1895
        %v2428 = vunpack.c.l.b16 %v1896
        %v2429 = vunpack.c.h.b16 %v1896
        %v2430 = vunpack.c.l.b16 %v1897
        %v2431 = vunpack.c.h.b16 %v1897
        %v2432 = vunpack.c.l.b16 %v1898
        %v2433 = vunpack.c.h.b16 %v1898
        %v2434 = vunpack.c.l.b16 %v1899
        %v2435 = vunpack.c.h.b16 %v1899
        %v2436 = vunpack.c.l.b16 %v1900
        %v2437 = vunpack.c.h.b16 %v1900
        %v2438 = vunpack.c.l.b16 %v1901
        %v2439 = vunpack.c.h.b16 %v1901
        %v2440 = vunpack.c.l.b16 %v1902
        %v2441 = vunpack.c.h.b16 %v1902
        %v2442 = vunpack.c.l.b16 %v1903
        %v2443 = vunpack.c.h.b16 %v1903
        %v2444 = vunpack.c.l.b16 %v1904
        %v2445 = vunpack.c.h.b16 %v1904
        %v2446 = vunpack.c.l.b16 %v1905
        %v2447 = vunpack.c.h.b16 %v1905
        %v2448 = vunpack.c.l.b16 %v1906
        %v2449 = vunpack.c.h.b16 %v1906
        %v2450 = vunpack.c.l.b16 %v1907
        %v2451 = vunpack.c.h.b16 %v1907
        %v2452 = vunpack.c.l.b16 %v1908
        %v2453 = vunpack.c.h.b16 %v1908
        %v2454 = vunpack.c.l.b16 %v1909
        %v2455 = vunpack.c.h.b16 %v1909
        %v2456 = vunpack.c.l.b16 %v1910
        %v2457 = vunpack.c.h.b16 %v1910
        %v2458 = vunpack.c.l.b16 %v1911
        %v2459 = vunpack.c.h.b16 %v1911
        %v2460 = vunpack.c.l.b16 %v1912
        %v2461 = vunpack.c.h.b16 %v1912
        %v2462 = vunpack.c.l.b16 %v1913
        %v2463 = vunpack.c.h.b16 %v1913
        %v2464 = vunpack.c.l.b16 %v1914
        %v2465 = vunpack.c.h.b16 %v1914
        %v2466 = vunpack.c.l.b16 %v1915
        %v2467 = vunpack.c.h.b16 %v1915
        %v2468 = vunpack.c.l.b16 %v1916
        %v2469 = vunpack.c.h.b16 %v1916
        %v2470 = vunpack.c.l.b16 %v1917
        %v2471 = vunpack.c.h.b16 %v1917
        %v2472 = vunpack.c.l.b16 %v1918
        %v2473 = vunpack.c.h.b16 %v1918
        %v2474 = vunpack.c.l.b16 %v1919
        %v2475 = vunpack.c.h.b16 %v1919
        %v2476 = vunpack.c.l.b16 %v1920
        %v2477 = vunpack.c.h.b16 %v1920
        %v2478 = vunpack.c.l.b16 %v1921
        %v2479 = vunpack.c.h.b16 %v1921
        %v2480 = vunpack.c.l.b16 %v1922
        %v2481 = vunpack.c.h.b16 %v1922
        %v2482 = vunpack.c.l.b16 %v1923
        %v2483 = vunpack.c.h.b16 %v1923
        %v2484 = vunpack.c.l.b16 %v1924
        %v2485 = vunpack.c.h.b16 %v1924
        %v2486 = vunpack.c.l.b16 %v1925
        %v2487 = vunpack.c.h.b16 %v1925
        %v2488 = vunpack.c.l.b16 %v1926
        %v2489 = vunpack.c.h.b16 %v1926
        %v2490 = vunpack.c.l.b16 %v1927
        %v2491 = vunpack.c.h.b16 %v1927
        %v2492 = vunpack.c.l.b16 %v1928
        %v2493 = vunpack.c.h.b16 %v1928
        %v2494 = vunpack.c.l.b16 %v1929
        %v2495 = vunpack.c.h.b16 %v1929
        %v2496 = vpack.c.b16 %v2244, %v2240
        %v2497 = vpack.c.b16 %v2245, %v2241
        %v2498 = vpack.c.b16 %v2246, %v2242
        %v2499 = vpack.c.b16 %v2247, %v2243
        %v2500 = vpack.c.b16 %v2252, %v2248
        %v2501 = vpack.c.b16 %v2253, %v2249
        %v2502 = vpack.c.b16 %v2254, %v2250
        %v2503 = vpack.c.b16 %v2255, %v2251
        %v2504 = vpack.c.b16 %v2260, %v2256
        %v2505 = vpack.c.b16 %v2261, %v2257
        %v2506 = vpack.c.b16 %v2262, %v2258
        %v2507 = vpack.c.b16 %v2263, %v2259
        %v2508 = vpack.c.b16 %v2268, %v2264
        %v2509 = vpack.c.b16 %v2269, %v2265
        %v2510 = vpack.c.b16 %v2270, %v2266
        %v2511 = vpack.c.b16 %v2271, %v2267
        %v2512 = vpack.c.b16 %v2276, %v2272
        %v2513 = vpack.c.b16 %v2277, %v2273
        %v2514 = vpack.c.b16 %v2278, %v2274
        %v2515 = vpack.c.b16 %v2279, %v2275
        %v2516 = vpack.c.b16 %v2284, %v2280
        %v2517 = vpack.c.b16 %v2285, %v2281
        %v2518 = vpack.c.b16 %v2286, %v2282
        %v2519 = vpack.c.b16 %v2287, %v2283
        %v2520 = vpack.c.b16 %v2292, %v2288
        %v2521 = vpack.c.b16 %v2293, %v2289
        %v2522 = vpack.c.b16 %v2294, %v2290
        %v2523 = vpack.c.b16 %v2295, %v2291
        %v2524 = vpack.c.b16 %v2300, %v2296
        %v2525 = vpack.c.b16 %v2301, %v2297
        %v2526 = vpack.c.b16 %v2302, %v2298
        %v2527 = vpack.c.b16 %v2303, %v2299
        %v2528 = vpack.c.b16 %v2308, %v2304
        %v2529 = vpack.c.b16 %v2309, %v2305
        %v2530 = vpack.c.b16 %v2310, %v2306
        %v2531 = vpack.c.b16 %v2311, %v2307
        %v2532 = vpack.c.b16 %v2316, %v2312
        %v2533 = vpack.c.b16 %v2317, %v2313
        %v2534 = vpack.c.b16 %v2318, %v2314
        %v2535 = vpack.c.b16 %v2319, %v2315
        %v2536 = vpack.c.b16 %v2324, %v2320
        %v2537 = vpack.c.b16 %v2325, %v2321
        %v2538 = vpack.c.b16 %v2326, %v2322
        %v2539 = vpack.c.b16 %v2327, %v2323
        %v2540 = vpack.c.b16 %v2332, %v2328
        %v2541 = vpack.c.b16 %v2333, %v2329
        %v2542 = vpack.c.b16 %v2334, %v2330
        %v2543 = vpack.c.b16 %v2335, %v2331
        %v2544 = vpack.c.b16 %v2340, %v2336
        %v2545 = vpack.c.b16 %v2341, %v2337
        %v2546 = vpack.c.b16 %v2342, %v2338
        %v2547 = vpack.c.b16 %v2343, %v2339
        %v2548 = vpack.c.b16 %v2348, %v2344
        %v2549 = vpack.c.b16 %v2349, %v2345
        %v2550 = vpack.c.b16 %v2350, %v2346
        %v2551 = vpack.c.b16 %v2351, %v2347
        %v2552 = vpack.c.b16 %v2356, %v2352
        %v2553 = vpack.c.b16 %v2357, %v2353
        %v2554 = vpack.c.b16 %v2358, %v2354
        %v2555 = vpack.c.b16 %v2359, %v2355
        %v2556 = vpack.c.b16 %v2364, %v2360
        %v2557 = vpack.c.b16 %v2365, %v2361
        %v2558 = vpack.c.b16 %v2366, %v2362
        %v2559 = vpack.c.b16 %v2367, %v2363
        %v2560 = vpack.c.b16 %v2372, %v2368
        %v2561 = vpack.c.b16 %v2373, %v2369
        %v2562 = vpack.c.b16 %v2374, %v2370
        %v2563 = vpack.c.b16 %v2375, %v2371
        %v2564 = vpack.c.b16 %v2380, %v2376
        %v2565 = vpack.c.b16 %v2381, %v2377
        %v2566 = vpack.c.b16 %v2382, %v2378
        %v2567 = vpack.c.b16 %v2383, %v2379
        %v2568 = vpack.c.b16 %v2388, %v2384
        %v2569 = vpack.c.b16 %v2389, %v2385
        %v2570 = vpack.c.b16 %v2390, %v2386
        %v2571 = vpack.c.b16 %v2391, %v2387
        %v2572 = vpack.c.b16 %v2396, %v2392
        %v2573 = vpack.c.b16 %v2397, %v2393
        %v2574 = vpack.c.b16 %v2398, %v2394
        %v2575 = vpack.c.b16 %v2399, %v2395
        %v2576 = vpack.c.b16 %v2404, %v2400
        %v2577 = vpack.c.b16 %v2405, %v2401
        %v2578 = vpack.c.b16 %v2406, %v2402
        %v2579 = vpack.c.b16 %v2407, %v2403
        %v2580 = vpack.c.b16 %v2412, %v2408
        %v2581 = vpack.c.b16 %v2413, %v2409
        %v2582 = vpack.c.b16 %v2414, %v2410
        %v2583 = vpack.c.b16 %v2415, %v2411
        %v2584 = vpack.c.b16 %v2420, %v2416
        %v2585 = vpack.c.b16 %v2421, %v2417
        %v2586 = vpack.c.b16 %v2422, %v2418
        %v2587 = vpack.c.b16 %v2423, %v2419
        %v2588 = vpack.c.b16 %v2428, %v2424
        %v2589 = vpack.c.b16 %v2429, %v2425
        %v2590 = vpack.c.b16 %v2430, %v2426
        %v2591 = vpack.c.b16 %v2431, %v2427
        %v2592 = vpack.c.b16 %v2436, %v2432
        %v2593 = vpack.c.b16 %v2437, %v2433
        %v2594 = vpack.c.b16 %v2438, %v2434
        %v2595 = vpack.c.b16 %v2439, %v2435
        %v2596 = vpack.c.b16 %v2444, %v2440
        %v2597 = vpack.c.b16 %v2445, %v2441
        %v2598 = vpack.c.b16 %v2446, %v2442
        %v2599 = vpack.c.b16 %v2447, %v2443
        %v2600 = vpack.c.b16 %v2452, %v2448
        %v2601 = vpack.c.b16 %v2453, %v2449
        %v2602 = vpack.c.b16 %v2454, %v2450
        %v2603 = vpack.c.b16 %v2455, %v2451
        %v2604 = vpack.c.b16 %v2460, %v2456
        %v2605 = vpack.c.b16 %v2461, %v2457
        %v2606 = vpack.c.b16 %v2462, %v2458
        %v2607 = vpack.c.b16 %v2463, %v2459
        %v2608 = vpack.c.b16 %v2468, %v2464
        %v2609 = vpack.c.b16 %v2469, %v2465
        %v2610 = vpack.c.b16 %v2470, %v2466
        %v2611 = vpack.c.b16 %v2471, %v2467
        %v2612 = vpack.c.b16 %v2476, %v2472
        %v2613 = vpack.c.b16 %v2477, %v2473
        %v2614 = vpack.c.b16 %v2478, %v2474
        %v2615 = vpack.c.b16 %v2479, %v2475
        %v2616 = vpack.c.b16 %v2484, %v2480
        %v2617 = vpack.c.b16 %v2485, %v2481
        %v2618 = vpack.c.b16 %v2486, %v2482
        %v2619 = vpack.c.b16 %v2487, %v2483
        %v2620 = vpack.c.b16 %v2492, %v2488
        %v2621 = vpack.c.b16 %v2493, %v2489
        %v2622 = vpack.c.b16 %v2494, %v2490
        %v2623 = vpack.c.b16 %v2495, %v2491
        %2752 = vmatprep.subr.bf16.mxu0 %v2497
        %2753 = vmatpush1.bf16.msra.mxu0 %v2496
        %2754 = vmatprep.subr.bf16.mxu0 %v2501
        %2755 = vmatpush1.bf16.msra.mxu0 %v2500
        %2756 = vmatprep.subr.bf16.mxu0 %v2505
        %2757 = vmatpush1.bf16.msra.mxu0 %v2504
        %2758 = vmatprep.subr.bf16.mxu0 %v2509
        %2759 = vmatpush1.bf16.msra.mxu0 %v2508
        %2760 = vmatprep.subr.bf16.mxu0 %v2513
        %2761 = vmatpush1.bf16.msra.mxu0 %v2512
        %2762 = vmatprep.subr.bf16.mxu0 %v2517
        %2763 = vmatpush1.bf16.msra.mxu0 %v2516
        %2764 = vmatprep.subr.bf16.mxu0 %v2521
        %2765 = vmatpush1.bf16.msra.mxu0 %v2520
        %2766 = vmatprep.subr.bf16.mxu0 %v2525
        %2767 = vmatpush1.bf16.msra.mxu0 %v2524
        %2768 = vmatprep.subr.bf16.mxu0 %v2529
        %2769 = vmatpush1.bf16.msra.mxu0 %v2528
        %2770 = vmatprep.subr.bf16.mxu0 %v2533
        %2771 = vmatpush1.bf16.msra.mxu0 %v2532
        %2772 = vmatprep.subr.bf16.mxu0 %v2537
        %2773 = vmatpush1.bf16.msra.mxu0 %v2536
        %2774 = vmatprep.subr.bf16.mxu0 %v2541
        %2775 = vmatpush1.bf16.msra.mxu0 %v2540
        %2776 = vmatprep.subr.bf16.mxu0 %v2545
        %2777 = vmatpush1.bf16.msra.mxu0 %v2544
        %2778 = vmatprep.subr.bf16.mxu0 %v2549
        %2779 = vmatpush1.bf16.msra.mxu0 %v2548
        %2780 = vmatprep.subr.bf16.mxu0 %v2553
        %2781 = vmatpush1.bf16.msra.mxu0 %v2552
        %2782 = vmatprep.subr.bf16.mxu0 %v2557
        %2783 = vmatpush1.bf16.msra.mxu0 %v2556
        %2784 = vmatprep.mubr.bf16.mxu0 %v2049
        %2785 = vmatmul.mubr.bf16.gmra.mrb[0].mxu0 %v2048
        %v2786 = vpop.f32.mrb[0].mxu0
        %v2787 = vadd.f32 %v1935, %v2786
        %v2788 = vpop.f32.mrb[0].mxu0
        %v2789 = vadd.f32 %v1939, %v2788
        %v2790 = vpop.f32.mrb[0].mxu0
        %v2791 = vadd.f32 %v1935, %v2790
        %v2792 = vpop.f32.mrb[0].mxu0
        %v2793 = vadd.f32 %v1939, %v2792
        %2794 = vmatprep.mubr.bf16.mxu0 %v2053
        %2795 = vmatmul.mubr.bf16.gmra.mrb[0].mxu0 %v2052
        %v2796 = vpop.f32.mrb[0].mxu0
        %v2797 = vadd.f32 %v1935, %v2796
        %v2798 = vpop.f32.mrb[0].mxu0
        %v2799 = vadd.f32 %v1939, %v2798
        %v2800 = vpop.f32.mrb[0].mxu0
        %v2801 = vadd.f32 %v1935, %v2800
        %v2802 = vpop.f32.mrb[0].mxu0
        %v2803 = vadd.f32 %v1939, %v2802
        %2804 = vmatprep.mubr.bf16.mxu0 %v2057
        %2805 = vmatmul.mubr.bf16.gmra.mrb[0].mxu0 %v2056
        %v2806 = vpop.f32.mrb[0].mxu0
        %v2807 = vadd.f32 %v1935, %v2806
        %v2808 = vpop.f32.mrb[0].mxu0
        %v2809 = vadd.f32 %v1939, %v2808
        %v2810 = vpop.f32.mrb[0].mxu0
        %v2811 = vadd.f32 %v1935, %v2810
        %v2812 = vpop.f32.mrb[0].mxu0
        %v2813 = vadd.f32 %v1939, %v2812
        %2814 = vmatprep.mubr.bf16.mxu0 %v2061
        %2815 = vmatmul.mubr.bf16.gmra.mrb[0].mxu0 %v2060
        %v2816 = vpop.f32.mrb[0].mxu0
        %v2817 = vadd.f32 %v1935, %v2816
        %v2818 = vpop.f32.mrb[0].mxu0
        %v2819 = vadd.f32 %v1939, %v2818
        %v2820 = vpop.f32.mrb[0].mxu0
        %v2821 = vadd.f32 %v1935, %v2820
        %v2822 = vpop.f32.mrb[0].mxu0
        %v2823 = vadd.f32 %v1939, %v2822
        %2824 = vmatprep.mubr.bf16.mxu0 %v2065
        %2825 = vmatmul.mubr.bf16.gmra.mrb[0].mxu0 %v2064
        %v2826 = vpop.f32.mrb[0].mxu0
        %v2827 = vadd.f32 %v1935, %v2826
        %v2828 = vpop.f32.mrb[0].mxu0
        %v2829 = vadd.f32 %v1939, %v2828
        %v2830 = vpop.f32.mrb[0].mxu0
        %v2831 = vadd.f32 %v1935, %v2830
        %v2832 = vpop.f32.mrb[0].mxu0
        %v2833 = vadd.f32 %v1939, %v2832
        %2834 = vmatprep.mubr.bf16.mxu0 %v2069
        %2835 = vmatmul.mubr.bf16.gmra.mrb[0].mxu0 %v2068
        %v2836 = vpop.f32.mrb[0].mxu0
        %v2837 = vadd.f32 %v1935, %v2836
        %v2838 = vpop.f32.mrb[0].mxu0
        %v2839 = vadd.f32 %v1939, %v2838
        %v2840 = vpop.f32.mrb[0].mxu0
        %v2841 = vadd.f32 %v1935, %v2840
        %v2842 = vpop.f32.mrb[0].mxu0
        %v2843 = vadd.f32 %v1939, %v2842
        %2844 = vmatprep.mubr.bf16.mxu0 %v2073
        %2845 = vmatmul.mubr.bf16.gmra.mrb[0].mxu0 %v2072
        %v2846 = vpop.f32.mrb[0].mxu0
        %v2847 = vadd.f32 %v1935, %v2846
        %v2848 = vpop.f32.mrb[0].mxu0
        %v2849 = vadd.f32 %v1939, %v2848
        %v2850 = vpop.f32.mrb[0].mxu0
        %v2851 = vadd.f32 %v1935, %v2850
        %v2852 = vpop.f32.mrb[0].mxu0
        %v2853 = vadd.f32 %v1939, %v2852
        %2854 = vmatprep.mubr.bf16.mxu0 %v2077
        %2855 = vmatmul.mubr.bf16.gmra.mrb[0].mxu0 %v2076
        %v2856 = vpop.f32.mrb[0].mxu0
        %v2857 = vadd.f32 %v1935, %v2856
        %v2858 = vpop.f32.mrb[0].mxu0
        %v2859 = vadd.f32 %v1939, %v2858
        %v2860 = vpop.f32.mrb[0].mxu0
        %v2861 = vadd.f32 %v1935, %v2860
        %v2862 = vpop.f32.mrb[0].mxu0
        %v2863 = vadd.f32 %v1939, %v2862
        %2864 = vdwg.mxu0
        %2865 = vmatprep.subr.bf16.mxu0 %v2561
        %2866 = vmatpush1.bf16.msra.mxu0 %v2560
        %2867 = vmatprep.subr.bf16.mxu0 %v2565
        %2868 = vmatpush1.bf16.msra.mxu0 %v2564
        %2869 = vmatprep.subr.bf16.mxu0 %v2569
        %2870 = vmatpush1.bf16.msra.mxu0 %v2568
        %2871 = vmatprep.subr.bf16.mxu0 %v2573
        %2872 = vmatpush1.bf16.msra.mxu0 %v2572
        %2873 = vmatprep.subr.bf16.mxu0 %v2577
        %2874 = vmatpush1.bf16.msra.mxu0 %v2576
        %2875 = vmatprep.subr.bf16.mxu0 %v2581
        %2876 = vmatpush1.bf16.msra.mxu0 %v2580
        %2877 = vmatprep.subr.bf16.mxu0 %v2585
        %2878 = vmatpush1.bf16.msra.mxu0 %v2584
        %2879 = vmatprep.subr.bf16.mxu0 %v2589
        %2880 = vmatpush1.bf16.msra.mxu0 %v2588
        %2881 = vmatprep.subr.bf16.mxu0 %v2593
        %2882 = vmatpush1.bf16.msra.mxu0 %v2592
        %2883 = vmatprep.subr.bf16.mxu0 %v2597
        %2884 = vmatpush1.bf16.msra.mxu0 %v2596
        %2885 = vmatprep.subr.bf16.mxu0 %v2601
        %2886 = vmatpush1.bf16.msra.mxu0 %v2600
        %2887 = vmatprep.subr.bf16.mxu0 %v2605
        %2888 = vmatpush1.bf16.msra.mxu0 %v2604
        %2889 = vmatprep.subr.bf16.mxu0 %v2609
        %2890 = vmatpush1.bf16.msra.mxu0 %v2608
        %2891 = vmatprep.subr.bf16.mxu0 %v2613
        %2892 = vmatpush1.bf16.msra.mxu0 %v2612
        %2893 = vmatprep.subr.bf16.mxu0 %v2617
        %2894 = vmatpush1.bf16.msra.mxu0 %v2616
        %2895 = vmatprep.subr.bf16.mxu0 %v2621
        %2896 = vmatpush1.bf16.msra.mxu0 %v2620
        %2897 = vmatprep.mubr.bf16.mxu0 %v2051
        %2898 = vmatmul.mubr.bf16.gmra.mrb[0].mxu0 %v2050
        %v2899 = vpop.f32.mrb[0].mxu0
        %v2900 = vadd.f32 %v2787, %v2899
        %v2901 = vpop.f32.mrb[0].mxu0
        %v2902 = vadd.f32 %v2789, %v2901
        %v2903 = vpop.f32.mrb[0].mxu0
        %v2904 = vadd.f32 %v2791, %v2903
        %v2905 = vpop.f32.mrb[0].mxu0
        %v2906 = vadd.f32 %v2793, %v2905
        %2907 = vmatprep.mubr.bf16.mxu0 %v2055
        %2908 = vmatmul.mubr.bf16.gmra.mrb[0].mxu0 %v2054
        %v2909 = vpop.f32.mrb[0].mxu0
        %v2910 = vadd.f32 %v2797, %v2909
        %v2911 = vpop.f32.mrb[0].mxu0
        %v2912 = vadd.f32 %v2799, %v2911
        %v2913 = vpop.f32.mrb[0].mxu0
        %v2914 = vadd.f32 %v2801, %v2913
        %v2915 = vpop.f32.mrb[0].mxu0
        %v2916 = vadd.f32 %v2803, %v2915
        %2917 = vmatprep.mubr.bf16.mxu0 %v2059
        %2918 = vmatmul.mubr.bf16.gmra.mrb[0].mxu0 %v2058
        %v2919 = vpop.f32.mrb[0].mxu0
        %v2920 = vadd.f32 %v2807, %v2919
        %v2921 = vpop.f32.mrb[0].mxu0
        %v2922 = vadd.f32 %v2809, %v2921
        %v2923 = vpop.f32.mrb[0].mxu0
        %v2924 = vadd.f32 %v2811, %v2923
        %v2925 = vpop.f32.mrb[0].mxu0
        %v2926 = vadd.f32 %v2813, %v2925
        %2927 = vmatprep.mubr.bf16.mxu0 %v2063
        %2928 = vmatmul.mubr.bf16.gmra.mrb[0].mxu0 %v2062
        %v2929 = vpop.f32.mrb[0].mxu0
        %v2930 = vadd.f32 %v2817, %v2929
        %v2931 = vpop.f32.mrb[0].mxu0
        %v2932 = vadd.f32 %v2819, %v2931
        %v2933 = vpop.f32.mrb[0].mxu0
        %v2934 = vadd.f32 %v2821, %v2933
        %v2935 = vpop.f32.mrb[0].mxu0
        %v2936 = vadd.f32 %v2823, %v2935
        %2937 = vmatprep.mubr.bf16.mxu0 %v2067
        %2938 = vmatmul.mubr.bf16.gmra.mrb[0].mxu0 %v2066
        %v2939 = vpop.f32.mrb[0].mxu0
        %v2940 = vadd.f32 %v2827, %v2939
        %v2941 = vpop.f32.mrb[0].mxu0
        %v2942 = vadd.f32 %v2829, %v2941
        %v2943 = vpop.f32.mrb[0].mxu0
        %v2944 = vadd.f32 %v2831, %v2943
        %v2945 = vpop.f32.mrb[0].mxu0
        %v2946 = vadd.f32 %v2833, %v2945
        %2947 = vmatprep.mubr.bf16.mxu0 %v2071
        %2948 = vmatmul.mubr.bf16.gmra.mrb[0].mxu0 %v2070
        %v2949 = vpop.f32.mrb[0].mxu0
        %v2950 = vadd.f32 %v2837, %v2949
        %v2951 = vpop.f32.mrb[0].mxu0
        %v2952 = vadd.f32 %v2839, %v2951
        %v2953 = vpop.f32.mrb[0].mxu0
        %v2954 = vadd.f32 %v2841, %v2953
        %v2955 = vpop.f32.mrb[0].mxu0
        %v2956 = vadd.f32 %v2843, %v2955
        %2957 = vmatprep.mubr.bf16.mxu0 %v2075
        %2958 = vmatmul.mubr.bf16.gmra.mrb[0].mxu0 %v2074
        %v2959 = vpop.f32.mrb[0].mxu0
        %v2960 = vadd.f32 %v2847, %v2959
        %v2961 = vpop.f32.mrb[0].mxu0
        %v2962 = vadd.f32 %v2849, %v2961
        %v2963 = vpop.f32.mrb[0].mxu0
        %v2964 = vadd.f32 %v2851, %v2963
        %v2965 = vpop.f32.mrb[0].mxu0
        %v2966 = vadd.f32 %v2853, %v2965
        %2967 = vmatprep.mubr.bf16.mxu0 %v2079
        %2968 = vmatmul.mubr.bf16.gmra.mrb[0].mxu0 %v2078
        %v2969 = vpop.f32.mrb[0].mxu0
        %v2970 = vadd.f32 %v2857, %v2969
        %v2971 = vpop.f32.mrb[0].mxu0
        %v2972 = vadd.f32 %v2859, %v2971
        %v2973 = vpop.f32.mrb[0].mxu0
        %v2974 = vadd.f32 %v2861, %v2973
        %v2975 = vpop.f32.mrb[0].mxu0
        %v2976 = vadd.f32 %v2863, %v2975
        %2977 = vdwg.mxu0
        %2978 = vmatprep.subr.bf16.mxu0 %v2499
        %2979 = vmatpush1.bf16.msra.mxu0 %v2498
        %2980 = vmatprep.subr.bf16.mxu0 %v2503
        %2981 = vmatpush1.bf16.msra.mxu0 %v2502
        %2982 = vmatprep.subr.bf16.mxu0 %v2507
        %2983 = vmatpush1.bf16.msra.mxu0 %v2506
        %2984 = vmatprep.subr.bf16.mxu0 %v2511
        %2985 = vmatpush1.bf16.msra.mxu0 %v2510
        %2986 = vmatprep.subr.bf16.mxu0 %v2515
        %2987 = vmatpush1.bf16.msra.mxu0 %v2514
        %2988 = vmatprep.subr.bf16.mxu0 %v2519
        %2989 = vmatpush1.bf16.msra.mxu0 %v2518
        %2990 = vmatprep.subr.bf16.mxu0 %v2523
        %2991 = vmatpush1.bf16.msra.mxu0 %v2522
        %2992 = vmatprep.subr.bf16.mxu0 %v2527
        %2993 = vmatpush1.bf16.msra.mxu0 %v2526
        %2994 = vmatprep.subr.bf16.mxu0 %v2531
        %2995 = vmatpush1.bf16.msra.mxu0 %v2530
        %2996 = vmatprep.subr.bf16.mxu0 %v2535
        %2997 = vmatpush1.bf16.msra.mxu0 %v2534
        %2998 = vmatprep.subr.bf16.mxu0 %v2539
        %2999 = vmatpush1.bf16.msra.mxu0 %v2538
        %3000 = vmatprep.subr.bf16.mxu0 %v2543
        %3001 = vmatpush1.bf16.msra.mxu0 %v2542
        %3002 = vmatprep.subr.bf16.mxu0 %v2547
        %3003 = vmatpush1.bf16.msra.mxu0 %v2546
        %3004 = vmatprep.subr.bf16.mxu0 %v2551
        %3005 = vmatpush1.bf16.msra.mxu0 %v2550
        %3006 = vmatprep.subr.bf16.mxu0 %v2555
        %3007 = vmatpush1.bf16.msra.mxu0 %v2554
        %3008 = vmatprep.subr.bf16.mxu0 %v2559
        %3009 = vmatpush1.bf16.msra.mxu0 %v2558
        %3010 = vmatprep.mubr.bf16.mxu0 %v2049
        %3011 = vmatmul.mubr.bf16.gmra.mrb[0].mxu0 %v2048
        %v3012 = vpop.f32.mrb[0].mxu0
        %v3013 = vadd.f32 %v1943, %v3012
        %v3014 = vpop.f32.mrb[0].mxu0
        %v3015 = vadd.f32 %v1947, %v3014
        %v3016 = vpop.f32.mrb[0].mxu0
        %v3017 = vadd.f32 %v1943, %v3016
        %v3018 = vpop.f32.mrb[0].mxu0
        %v3019 = vadd.f32 %v1947, %v3018
        %3020 = vmatprep.mubr.bf16.mxu0 %v2053
        %3021 = vmatmul.mubr.bf16.gmra.mrb[0].mxu0 %v2052
        %v3022 = vpop.f32.mrb[0].mxu0
        %v3023 = vadd.f32 %v1943, %v3022
        %v3024 = vpop.f32.mrb[0].mxu0
        %v3025 = vadd.f32 %v1947, %v3024
        %v3026 = vpop.f32.mrb[0].mxu0
        %v3027 = vadd.f32 %v1943, %v3026
        %v3028 = vpop.f32.mrb[0].mxu0
        %v3029 = vadd.f32 %v1947, %v3028
        %3030 = vmatprep.mubr.bf16.mxu0 %v2057
        %3031 = vmatmul.mubr.bf16.gmra.mrb[0].mxu0 %v2056
        %v3032 = vpop.f32.mrb[0].mxu0
        %v3033 = vadd.f32 %v1943, %v3032
        %v3034 = vpop.f32.mrb[0].mxu0
        %v3035 = vadd.f32 %v1947, %v3034
        %v3036 = vpop.f32.mrb[0].mxu0
        %v3037 = vadd.f32 %v1943, %v3036
        %v3038 = vpop.f32.mrb[0].mxu0
        %v3039 = vadd.f32 %v1947, %v3038
        %3040 = vmatprep.mubr.bf16.mxu0 %v2061
        %3041 = vmatmul.mubr.bf16.gmra.mrb[0].mxu0 %v2060
        %v3042 = vpop.f32.mrb[0].mxu0
        %v3043 = vadd.f32 %v1943, %v3042
        %v3044 = vpop.f32.mrb[0].mxu0
        %v3045 = vadd.f32 %v1947, %v3044
        %v3046 = vpop.f32.mrb[0].mxu0
        %v3047 = vadd.f32 %v1943, %v3046
        %v3048 = vpop.f32.mrb[0].mxu0
        %v3049 = vadd.f32 %v1947, %v3048
        %3050 = vmatprep.mubr.bf16.mxu0 %v2065
        %3051 = vmatmul.mubr.bf16.gmra.mrb[0].mxu0 %v2064
        %v3052 = vpop.f32.mrb[0].mxu0
        %v3053 = vadd.f32 %v1943, %v3052
        %v3054 = vpop.f32.mrb[0].mxu0
        %v3055 = vadd.f32 %v1947, %v3054
        %v3056 = vpop.f32.mrb[0].mxu0
        %v3057 = vadd.f32 %v1943, %v3056
        %v3058 = vpop.f32.mrb[0].mxu0
        %v3059 = vadd.f32 %v1947, %v3058
        %3060 = vmatprep.mubr.bf16.mxu0 %v2069
        %3061 = vmatmul.mubr.bf16.gmra.mrb[0].mxu0 %v2068
        %v3062 = vpop.f32.mrb[0].mxu0
        %v3063 = vadd.f32 %v1943, %v3062
        %v3064 = vpop.f32.mrb[0].mxu0
        %v3065 = vadd.f32 %v1947, %v3064
        %v3066 = vpop.f32.mrb[0].mxu0
        %v3067 = vadd.f32 %v1943, %v3066
        %v3068 = vpop.f32.mrb[0].mxu0
        %v3069 = vadd.f32 %v1947, %v3068
        %3070 = vmatprep.mubr.bf16.mxu0 %v2073
        %3071 = vmatmul.mubr.bf16.gmra.mrb[0].mxu0 %v2072
        %v3072 = vpop.f32.mrb[0].mxu0
        %v3073 = vadd.f32 %v1943, %v3072
        %v3074 = vpop.f32.mrb[0].mxu0
        %v3075 = vadd.f32 %v1947, %v3074
        %v3076 = vpop.f32.mrb[0].mxu0
        %v3077 = vadd.f32 %v1943, %v3076
        %v3078 = vpop.f32.mrb[0].mxu0
        %v3079 = vadd.f32 %v1947, %v3078
        %3080 = vmatprep.mubr.bf16.mxu0 %v2077
        %3081 = vmatmul.mubr.bf16.gmra.mrb[0].mxu0 %v2076
        %v3082 = vpop.f32.mrb[0].mxu0
        %v3083 = vadd.f32 %v1943, %v3082
        %v3084 = vpop.f32.mrb[0].mxu0
        %v3085 = vadd.f32 %v1947, %v3084
        %v3086 = vpop.f32.mrb[0].mxu0
        %v3087 = vadd.f32 %v1943, %v3086
        %v3088 = vpop.f32.mrb[0].mxu0
        %v3089 = vadd.f32 %v1947, %v3088
        %3090 = vdwg.mxu0
        %3091 = vmatprep.subr.bf16.mxu0 %v2563
        %3092 = vmatpush1.bf16.msra.mxu0 %v2562
        %3093 = vmatprep.subr.bf16.mxu0 %v2567
        %3094 = vmatpush1.bf16.msra.mxu0 %v2566
        %3095 = vmatprep.subr.bf16.mxu0 %v2571
        %3096 = vmatpush1.bf16.msra.mxu0 %v2570
        %3097 = vmatprep.subr.bf16.mxu0 %v2575
        %3098 = vmatpush1.bf16.msra.mxu0 %v2574
        %3099 = vmatprep.subr.bf16.mxu0 %v2579
        %3100 = vmatpush1.bf16.msra.mxu0 %v2578
        %3101 = vmatprep.subr.bf16.mxu0 %v2583
        %3102 = vmatpush1.bf16.msra.mxu0 %v2582
        %3103 = vmatprep.subr.bf16.mxu0 %v2587
        %3104 = vmatpush1.bf16.msra.mxu0 %v2586
        %3105 = vmatprep.subr.bf16.mxu0 %v2591
        %3106 = vmatpush1.bf16.msra.mxu0 %v2590
        %3107 = vmatprep.subr.bf16.mxu0 %v2595
        %3108 = vmatpush1.bf16.msra.mxu0 %v2594
        %3109 = vmatprep.subr.bf16.mxu0 %v2599
        %3110 = vmatpush1.bf16.msra.mxu0 %v2598
        %3111 = vmatprep.subr.bf16.mxu0 %v2603
        %3112 = vmatpush1.bf16.msra.mxu0 %v2602
        %3113 = vmatprep.subr.bf16.mxu0 %v2607
        %3114 = vmatpush1.bf16.msra.mxu0 %v2606
        %3115 = vmatprep.subr.bf16.mxu0 %v2611
        %3116 = vmatpush1.bf16.msra.mxu0 %v2610
        %3117 = vmatprep.subr.bf16.mxu0 %v2615
        %3118 = vmatpush1.bf16.msra.mxu0 %v2614
        %3119 = vmatprep.subr.bf16.mxu0 %v2619
        %3120 = vmatpush1.bf16.msra.mxu0 %v2618
        %3121 = vmatprep.subr.bf16.mxu0 %v2623
        %3122 = vmatpush1.bf16.msra.mxu0 %v2622
        %3123 = vmatprep.mubr.bf16.mxu0 %v2051
        %3124 = vmatmul.mubr.bf16.gmra.mrb[0].mxu0 %v2050
        %v3125 = vpop.f32.mrb[0].mxu0
        %v3126 = vadd.f32 %v3013, %v3125
        %v3127 = vpop.f32.mrb[0].mxu0
        %v3128 = vadd.f32 %v3015, %v3127
        %v3129 = vpop.f32.mrb[0].mxu0
        %v3130 = vadd.f32 %v3017, %v3129
        %v3131 = vpop.f32.mrb[0].mxu0
        %v3132 = vadd.f32 %v3019, %v3131
        %3133 = vmatprep.mubr.bf16.mxu0 %v2055
        %3134 = vmatmul.mubr.bf16.gmra.mrb[0].mxu0 %v2054
        %v3135 = vpop.f32.mrb[0].mxu0
        %v3136 = vadd.f32 %v3023, %v3135
        %v3137 = vpop.f32.mrb[0].mxu0
        %v3138 = vadd.f32 %v3025, %v3137
        %v3139 = vpop.f32.mrb[0].mxu0
        %v3140 = vadd.f32 %v3027, %v3139
        %v3141 = vpop.f32.mrb[0].mxu0
        %v3142 = vadd.f32 %v3029, %v3141
        %3143 = vmatprep.mubr.bf16.mxu0 %v2059
        %3144 = vmatmul.mubr.bf16.gmra.mrb[0].mxu0 %v2058
        %v3145 = vpop.f32.mrb[0].mxu0
        %v3146 = vadd.f32 %v3033, %v3145
        %v3147 = vpop.f32.mrb[0].mxu0
        %v3148 = vadd.f32 %v3035, %v3147
        %v3149 = vpop.f32.mrb[0].mxu0
        %v3150 = vadd.f32 %v3037, %v3149
        %v3151 = vpop.f32.mrb[0].mxu0
        %v3152 = vadd.f32 %v3039, %v3151
        %3153 = vmatprep.mubr.bf16.mxu0 %v2063
        %3154 = vmatmul.mubr.bf16.gmra.mrb[0].mxu0 %v2062
        %v3155 = vpop.f32.mrb[0].mxu0
        %v3156 = vadd.f32 %v3043, %v3155
        %v3157 = vpop.f32.mrb[0].mxu0
        %v3158 = vadd.f32 %v3045, %v3157
        %v3159 = vpop.f32.mrb[0].mxu0
        %v3160 = vadd.f32 %v3047, %v3159
        %v3161 = vpop.f32.mrb[0].mxu0
        %v3162 = vadd.f32 %v3049, %v3161
        %3163 = vmatprep.mubr.bf16.mxu0 %v2067
        %3164 = vmatmul.mubr.bf16.gmra.mrb[0].mxu0 %v2066
        %v3165 = vpop.f32.mrb[0].mxu0
        %v3166 = vadd.f32 %v3053, %v3165
        %v3167 = vpop.f32.mrb[0].mxu0
        %v3168 = vadd.f32 %v3055, %v3167
        %v3169 = vpop.f32.mrb[0].mxu0
        %v3170 = vadd.f32 %v3057, %v3169
        %v3171 = vpop.f32.mrb[0].mxu0
        %v3172 = vadd.f32 %v3059, %v3171
        %3173 = vmatprep.mubr.bf16.mxu0 %v2071
        %3174 = vmatmul.mubr.bf16.gmra.mrb[0].mxu0 %v2070
        %v3175 = vpop.f32.mrb[0].mxu0
        %v3176 = vadd.f32 %v3063, %v3175
        %v3177 = vpop.f32.mrb[0].mxu0
        %v3178 = vadd.f32 %v3065, %v3177
        %v3179 = vpop.f32.mrb[0].mxu0
        %v3180 = vadd.f32 %v3067, %v3179
        %v3181 = vpop.f32.mrb[0].mxu0
        %v3182 = vadd.f32 %v3069, %v3181
        %3183 = vmatprep.mubr.bf16.mxu0 %v2075
        %3184 = vmatmul.mubr.bf16.gmra.mrb[0].mxu0 %v2074
        %v3185 = vpop.f32.mrb[0].mxu0
        %v3186 = vadd.f32 %v3073, %v3185
        %v3187 = vpop.f32.mrb[0].mxu0
        %v3188 = vadd.f32 %v3075, %v3187
        %v3189 = vpop.f32.mrb[0].mxu0
        %v3190 = vadd.f32 %v3077, %v3189
        %v3191 = vpop.f32.mrb[0].mxu0
        %v3192 = vadd.f32 %v3079, %v3191
        %3193 = vmatprep.mubr.bf16.mxu0 %v2079
        %3194 = vmatmul.mubr.bf16.gmra.mrb[0].mxu0 %v2078
        %v3195 = vpop.f32.mrb[0].mxu0
        %v3196 = vadd.f32 %v3083, %v3195
        %v3197 = vpop.f32.mrb[0].mxu0
        %v3198 = vadd.f32 %v3085, %v3197
        %v3199 = vpop.f32.mrb[0].mxu0
        %v3200 = vadd.f32 %v3087, %v3199
        %v3201 = vpop.f32.mrb[0].mxu0
        %v3202 = vadd.f32 %v3089, %v3201
        %3203 = vdwg.mxu0
        %vm3204 = vcmp.ge.f32.partialorder %v1466, 0.0
        %vm3205 = vcmp.ge.f32.partialorder %v1468, 0.0
        %vm3206 = vcmp.ge.f32.partialorder %v1692, 0.0
        %vm3207 = vcmp.ge.f32.partialorder %v1694, 0.0
        %vm3208 = vcmp.ge.f32.partialorder %v1470, 0.0
        %vm3209 = vcmp.ge.f32.partialorder %v1472, 0.0
        %vm3210 = vcmp.ge.f32.partialorder %v1696, 0.0
        %vm3211 = vcmp.ge.f32.partialorder %v1698, 0.0
        %vm3212 = vcmp.ge.f32.partialorder %v1476, 0.0
        %vm3213 = vcmp.ge.f32.partialorder %v1478, 0.0
        %vm3214 = vcmp.ge.f32.partialorder %v1702, 0.0
        %vm3215 = vcmp.ge.f32.partialorder %v1704, 0.0
        %vm3216 = vcmp.ge.f32.partialorder %v1480, 0.0
        %vm3217 = vcmp.ge.f32.partialorder %v1482, 0.0
        %vm3218 = vcmp.ge.f32.partialorder %v1706, 0.0
        %vm3219 = vcmp.ge.f32.partialorder %v1708, 0.0
        %vm3220 = vcmp.ge.f32.partialorder %v1486, 0.0
        %vm3221 = vcmp.ge.f32.partialorder %v1488, 0.0
        %vm3222 = vcmp.ge.f32.partialorder %v1712, 0.0
        %vm3223 = vcmp.ge.f32.partialorder %v1714, 0.0
        %vm3224 = vcmp.ge.f32.partialorder %v1490, 0.0
        %vm3225 = vcmp.ge.f32.partialorder %v1492, 0.0
        %vm3226 = vcmp.ge.f32.partialorder %v1716, 0.0
        %vm3227 = vcmp.ge.f32.partialorder %v1718, 0.0
        %vm3228 = vcmp.ge.f32.partialorder %v1496, 0.0
        %vm3229 = vcmp.ge.f32.partialorder %v1498, 0.0
        %vm3230 = vcmp.ge.f32.partialorder %v1722, 0.0
        %vm3231 = vcmp.ge.f32.partialorder %v1724, 0.0
        %vm3232 = vcmp.ge.f32.partialorder %v1500, 0.0
        %vm3233 = vcmp.ge.f32.partialorder %v1502, 0.0
        %vm3234 = vcmp.ge.f32.partialorder %v1726, 0.0
        %vm3235 = vcmp.ge.f32.partialorder %v1728, 0.0
        %vm3236 = vcmp.ge.f32.partialorder %v1506, 0.0
        %vm3237 = vcmp.ge.f32.partialorder %v1508, 0.0
        %vm3238 = vcmp.ge.f32.partialorder %v1732, 0.0
        %vm3239 = vcmp.ge.f32.partialorder %v1734, 0.0
        %vm3240 = vcmp.ge.f32.partialorder %v1510, 0.0
        %vm3241 = vcmp.ge.f32.partialorder %v1512, 0.0
        %vm3242 = vcmp.ge.f32.partialorder %v1736, 0.0
        %vm3243 = vcmp.ge.f32.partialorder %v1738, 0.0
        %vm3244 = vcmp.ge.f32.partialorder %v1516, 0.0
        %vm3245 = vcmp.ge.f32.partialorder %v1518, 0.0
        %vm3246 = vcmp.ge.f32.partialorder %v1742, 0.0
        %vm3247 = vcmp.ge.f32.partialorder %v1744, 0.0
        %vm3248 = vcmp.ge.f32.partialorder %v1520, 0.0
        %vm3249 = vcmp.ge.f32.partialorder %v1522, 0.0
        %vm3250 = vcmp.ge.f32.partialorder %v1746, 0.0
        %vm3251 = vcmp.ge.f32.partialorder %v1748, 0.0
        %vm3252 = vcmp.ge.f32.partialorder %v1526, 0.0
        %vm3253 = vcmp.ge.f32.partialorder %v1528, 0.0
        %vm3254 = vcmp.ge.f32.partialorder %v1752, 0.0
        %vm3255 = vcmp.ge.f32.partialorder %v1754, 0.0
        %vm3256 = vcmp.ge.f32.partialorder %v1530, 0.0
        %vm3257 = vcmp.ge.f32.partialorder %v1532, 0.0
        %vm3258 = vcmp.ge.f32.partialorder %v1756, 0.0
        %vm3259 = vcmp.ge.f32.partialorder %v1758, 0.0
        %vm3260 = vcmp.ge.f32.partialorder %v1536, 0.0
        %vm3261 = vcmp.ge.f32.partialorder %v1538, 0.0
        %vm3262 = vcmp.ge.f32.partialorder %v1762, 0.0
        %vm3263 = vcmp.ge.f32.partialorder %v1764, 0.0
        %vm3264 = vcmp.ge.f32.partialorder %v1540, 0.0
        %vm3265 = vcmp.ge.f32.partialorder %v1542, 0.0
        %vm3266 = vcmp.ge.f32.partialorder %v1766, 0.0
        %vm3267 = vcmp.ge.f32.partialorder %v1768, 0.0
        %v3268 = vmul.f32 %v1466, 0.01
        %v3269 = vmul.f32 %v1468, 0.01
        %v3270 = vmul.f32 %v1692, 0.01
        %v3271 = vmul.f32 %v1694, 0.01
        %v3272 = vmul.f32 %v1470, 0.01
        %v3273 = vmul.f32 %v1472, 0.01
        %v3274 = vmul.f32 %v1696, 0.01
        %v3275 = vmul.f32 %v1698, 0.01
        %v3276 = vmul.f32 %v1476, 0.01
        %v3277 = vmul.f32 %v1478, 0.01
        %v3278 = vmul.f32 %v1702, 0.01
        %v3279 = vmul.f32 %v1704, 0.01
        %v3280 = vmul.f32 %v1480, 0.01
        %v3281 = vmul.f32 %v1482, 0.01
        %v3282 = vmul.f32 %v1706, 0.01
        %v3283 = vmul.f32 %v1708, 0.01
        %v3284 = vmul.f32 %v1486, 0.01
        %v3285 = vmul.f32 %v1488, 0.01
        %v3286 = vmul.f32 %v1712, 0.01
        %v3287 = vmul.f32 %v1714, 0.01
        %v3288 = vmul.f32 %v1490, 0.01
        %v3289 = vmul.f32 %v1492, 0.01
        %v3290 = vmul.f32 %v1716, 0.01
        %v3291 = vmul.f32 %v1718, 0.01
        %v3292 = vmul.f32 %v1496, 0.01
        %v3293 = vmul.f32 %v1498, 0.01
        %v3294 = vmul.f32 %v1722, 0.01
        %v3295 = vmul.f32 %v1724, 0.01
        %v3296 = vmul.f32 %v1500, 0.01
        %v3297 = vmul.f32 %v1502, 0.01
        %v3298 = vmul.f32 %v1726, 0.01
        %v3299 = vmul.f32 %v1728, 0.01
        %v3300 = vmul.f32 %v1506, 0.01
        %v3301 = vmul.f32 %v1508, 0.01
        %v3302 = vmul.f32 %v1732, 0.01
        %v3303 = vmul.f32 %v1734, 0.01
        %v3304 = vmul.f32 %v1510, 0.01
        %v3305 = vmul.f32 %v1512, 0.01
        %v3306 = vmul.f32 %v1736, 0.01
        %v3307 = vmul.f32 %v1738, 0.01
        %v3308 = vmul.f32 %v1516, 0.01
        %v3309 = vmul.f32 %v1518, 0.01
        %v3310 = vmul.f32 %v1742, 0.01
        %v3311 = vmul.f32 %v1744, 0.01
        %v3312 = vmul.f32 %v1520, 0.01
        %v3313 = vmul.f32 %v1522, 0.01
        %v3314 = vmul.f32 %v1746, 0.01
        %v3315 = vmul.f32 %v1748, 0.01
        %v3316 = vmul.f32 %v1526, 0.01
        %v3317 = vmul.f32 %v1528, 0.01
        %v3318 = vmul.f32 %v1752, 0.01
        %v3319 = vmul.f32 %v1754, 0.01
        %v3320 = vmul.f32 %v1530, 0.01
        %v3321 = vmul.f32 %v1532, 0.01
        %v3322 = vmul.f32 %v1756, 0.01
        %v3323 = vmul.f32 %v1758, 0.01
        %v3324 = vmul.f32 %v1536, 0.01
        %v3325 = vmul.f32 %v1538, 0.01
        %v3326 = vmul.f32 %v1762, 0.01
        %v3327 = vmul.f32 %v1764, 0.01
        %v3328 = vmul.f32 %v1540, 0.01
        %v3329 = vmul.f32 %v1542, 0.01
        %v3330 = vmul.f32 %v1766, 0.01
        %v3331 = vmul.f32 %v1768, 0.01
        %v3332 = vsel %vm3204, %v1466, %v3268
        %v3333 = vsel %vm3205, %v1468, %v3269
        %v3334 = vsel %vm3206, %v1692, %v3270
        %v3335 = vsel %vm3207, %v1694, %v3271
        %v3336 = vsel %vm3208, %v1470, %v3272
        %v3337 = vsel %vm3209, %v1472, %v3273
        %v3338 = vsel %vm3210, %v1696, %v3274
        %v3339 = vsel %vm3211, %v1698, %v3275
        %v3340 = vsel %vm3212, %v1476, %v3276
        %v3341 = vsel %vm3213, %v1478, %v3277
        %v3342 = vsel %vm3214, %v1702, %v3278
        %v3343 = vsel %vm3215, %v1704, %v3279
        %v3344 = vsel %vm3216, %v1480, %v3280
        %v3345 = vsel %vm3217, %v1482, %v3281
        %v3346 = vsel %vm3218, %v1706, %v3282
        %v3347 = vsel %vm3219, %v1708, %v3283
        %v3348 = vsel %vm3220, %v1486, %v3284
        %v3349 = vsel %vm3221, %v1488, %v3285
        %v3350 = vsel %vm3222, %v1712, %v3286
        %v3351 = vsel %vm3223, %v1714, %v3287
        %v3352 = vsel %vm3224, %v1490, %v3288
        %v3353 = vsel %vm3225, %v1492, %v3289
        %v3354 = vsel %vm3226, %v1716, %v3290
        %v3355 = vsel %vm3227, %v1718, %v3291
        %v3356 = vsel %vm3228, %v1496, %v3292
        %v3357 = vsel %vm3229, %v1498, %v3293
        %v3358 = vsel %vm3230, %v1722, %v3294
        %v3359 = vsel %vm3231, %v1724, %v3295
        %v3360 = vsel %vm3232, %v1500, %v3296
        %v3361 = vsel %vm3233, %v1502, %v3297
        %v3362 = vsel %vm3234, %v1726, %v3298
        %v3363 = vsel %vm3235, %v1728, %v3299
        %v3364 = vsel %vm3236, %v1506, %v3300
        %v3365 = vsel %vm3237, %v1508, %v3301
        %v3366 = vsel %vm3238, %v1732, %v3302
        %v3367 = vsel %vm3239, %v1734, %v3303
        %v3368 = vsel %vm3240, %v1510, %v3304
        %v3369 = vsel %vm3241, %v1512, %v3305
        %v3370 = vsel %vm3242, %v1736, %v3306
        %v3371 = vsel %vm3243, %v1738, %v3307
        %v3372 = vsel %vm3244, %v1516, %v3308
        %v3373 = vsel %vm3245, %v1518, %v3309
        %v3374 = vsel %vm3246, %v1742, %v3310
        %v3375 = vsel %vm3247, %v1744, %v3311
        %v3376 = vsel %vm3248, %v1520, %v3312
        %v3377 = vsel %vm3249, %v1522, %v3313
        %v3378 = vsel %vm3250, %v1746, %v3314
        %v3379 = vsel %vm3251, %v1748, %v3315
        %v3380 = vsel %vm3252, %v1526, %v3316
        %v3381 = vsel %vm3253, %v1528, %v3317
        %v3382 = vsel %vm3254, %v1752, %v3318
        %v3383 = vsel %vm3255, %v1754, %v3319
        %v3384 = vsel %vm3256, %v1530, %v3320
        %v3385 = vsel %vm3257, %v1532, %v3321
        %v3386 = vsel %vm3258, %v1756, %v3322
        %v3387 = vsel %vm3259, %v1758, %v3323
        %v3388 = vsel %vm3260, %v1536, %v3324
        %v3389 = vsel %vm3261, %v1538, %v3325
        %v3390 = vsel %vm3262, %v1762, %v3326
        %v3391 = vsel %vm3263, %v1764, %v3327
        %v3392 = vsel %vm3264, %v1540, %v3328
        %v3393 = vsel %vm3265, %v1542, %v3329
        %v3394 = vsel %vm3266, %v1766, %v3330
        %v3395 = vsel %vm3267, %v1768, %v3331
        %vm3396 = vcmp.ge.f32.partialorder %v2900, 0.0
        %vm3397 = vcmp.ge.f32.partialorder %v2902, 0.0
        %vm3398 = vcmp.ge.f32.partialorder %v3126, 0.0
        %vm3399 = vcmp.ge.f32.partialorder %v3128, 0.0
        %vm3400 = vcmp.ge.f32.partialorder %v2904, 0.0
        %vm3401 = vcmp.ge.f32.partialorder %v2906, 0.0
        %vm3402 = vcmp.ge.f32.partialorder %v3130, 0.0
        %vm3403 = vcmp.ge.f32.partialorder %v3132, 0.0
        %vm3404 = vcmp.ge.f32.partialorder %v2910, 0.0
        %vm3405 = vcmp.ge.f32.partialorder %v2912, 0.0
        %vm3406 = vcmp.ge.f32.partialorder %v3136, 0.0
        %vm3407 = vcmp.ge.f32.partialorder %v3138, 0.0
        %vm3408 = vcmp.ge.f32.partialorder %v2914, 0.0
        %vm3409 = vcmp.ge.f32.partialorder %v2916, 0.0
        %vm3410 = vcmp.ge.f32.partialorder %v3140, 0.0
        %vm3411 = vcmp.ge.f32.partialorder %v3142, 0.0
        %vm3412 = vcmp.ge.f32.partialorder %v2920, 0.0
        %vm3413 = vcmp.ge.f32.partialorder %v2922, 0.0
        %vm3414 = vcmp.ge.f32.partialorder %v3146, 0.0
        %vm3415 = vcmp.ge.f32.partialorder %v3148, 0.0
        %vm3416 = vcmp.ge.f32.partialorder %v2924, 0.0
        %vm3417 = vcmp.ge.f32.partialorder %v2926, 0.0
        %vm3418 = vcmp.ge.f32.partialorder %v3150, 0.0
        %vm3419 = vcmp.ge.f32.partialorder %v3152, 0.0
        %vm3420 = vcmp.ge.f32.partialorder %v2930, 0.0
        %vm3421 = vcmp.ge.f32.partialorder %v2932, 0.0
        %vm3422 = vcmp.ge.f32.partialorder %v3156, 0.0
        %vm3423 = vcmp.ge.f32.partialorder %v3158, 0.0
        %vm3424 = vcmp.ge.f32.partialorder %v2934, 0.0
        %vm3425 = vcmp.ge.f32.partialorder %v2936, 0.0
        %vm3426 = vcmp.ge.f32.partialorder %v3160, 0.0
        %vm3427 = vcmp.ge.f32.partialorder %v3162, 0.0
        %vm3428 = vcmp.ge.f32.partialorder %v2940, 0.0
        %vm3429 = vcmp.ge.f32.partialorder %v2942, 0.0
        %vm3430 = vcmp.ge.f32.partialorder %v3166, 0.0
        %vm3431 = vcmp.ge.f32.partialorder %v3168, 0.0
        %vm3432 = vcmp.ge.f32.partialorder %v2944, 0.0
        %vm3433 = vcmp.ge.f32.partialorder %v2946, 0.0
        %vm3434 = vcmp.ge.f32.partialorder %v3170, 0.0
        %vm3435 = vcmp.ge.f32.partialorder %v3172, 0.0
        %vm3436 = vcmp.ge.f32.partialorder %v2950, 0.0
        %vm3437 = vcmp.ge.f32.partialorder %v2952, 0.0
        %vm3438 = vcmp.ge.f32.partialorder %v3176, 0.0
        %vm3439 = vcmp.ge.f32.partialorder %v3178, 0.0
        %vm3440 = vcmp.ge.f32.partialorder %v2954, 0.0
        %vm3441 = vcmp.ge.f32.partialorder %v2956, 0.0
        %vm3442 = vcmp.ge.f32.partialorder %v3180, 0.0
        %vm3443 = vcmp.ge.f32.partialorder %v3182, 0.0
        %vm3444 = vcmp.ge.f32.partialorder %v2960, 0.0
        %vm3445 = vcmp.ge.f32.partialorder %v2962, 0.0
        %vm3446 = vcmp.ge.f32.partialorder %v3186, 0.0
        %vm3447 = vcmp.ge.f32.partialorder %v3188, 0.0
        %vm3448 = vcmp.ge.f32.partialorder %v2964, 0.0
        %vm3449 = vcmp.ge.f32.partialorder %v2966, 0.0
        %vm3450 = vcmp.ge.f32.partialorder %v3190, 0.0
        %vm3451 = vcmp.ge.f32.partialorder %v3192, 0.0
        %vm3452 = vcmp.ge.f32.partialorder %v2970, 0.0
        %vm3453 = vcmp.ge.f32.partialorder %v2972, 0.0
        %vm3454 = vcmp.ge.f32.partialorder %v3196, 0.0
        %vm3455 = vcmp.ge.f32.partialorder %v3198, 0.0
        %vm3456 = vcmp.ge.f32.partialorder %v2974, 0.0
        %vm3457 = vcmp.ge.f32.partialorder %v2976, 0.0
        %vm3458 = vcmp.ge.f32.partialorder %v3200, 0.0
        %vm3459 = vcmp.ge.f32.partialorder %v3202, 0.0
        %v3460 = vmul.f32 %v2900, 0.01
        %v3461 = vmul.f32 %v2902, 0.01
        %v3462 = vmul.f32 %v3126, 0.01
        %v3463 = vmul.f32 %v3128, 0.01
        %v3464 = vmul.f32 %v2904, 0.01
        %v3465 = vmul.f32 %v2906, 0.01
        %v3466 = vmul.f32 %v3130, 0.01
        %v3467 = vmul.f32 %v3132, 0.01
        %v3468 = vmul.f32 %v2910, 0.01
        %v3469 = vmul.f32 %v2912, 0.01
        %v3470 = vmul.f32 %v3136, 0.01
        %v3471 = vmul.f32 %v3138, 0.01
        %v3472 = vmul.f32 %v2914, 0.01
        %v3473 = vmul.f32 %v2916, 0.01
        %v3474 = vmul.f32 %v3140, 0.01
        %v3475 = vmul.f32 %v3142, 0.01
        %v3476 = vmul.f32 %v2920, 0.01
        %v3477 = vmul.f32 %v2922, 0.01
        %v3478 = vmul.f32 %v3146, 0.01
        %v3479 = vmul.f32 %v3148, 0.01
        %v3480 = vmul.f32 %v2924, 0.01
        %v3481 = vmul.f32 %v2926, 0.01
        %v3482 = vmul.f32 %v3150, 0.01
        %v3483 = vmul.f32 %v3152, 0.01
        %v3484 = vmul.f32 %v2930, 0.01
        %v3485 = vmul.f32 %v2932, 0.01
        %v3486 = vmul.f32 %v3156, 0.01
        %v3487 = vmul.f32 %v3158, 0.01
        %v3488 = vmul.f32 %v2934, 0.01
        %v3489 = vmul.f32 %v2936, 0.01
        %v3490 = vmul.f32 %v3160, 0.01
        %v3491 = vmul.f32 %v3162, 0.01
        %v3492 = vmul.f32 %v2940, 0.01
        %v3493 = vmul.f32 %v2942, 0.01
        %v3494 = vmul.f32 %v3166, 0.01
        %v3495 = vmul.f32 %v3168, 0.01
        %v3496 = vmul.f32 %v2944, 0.01
        %v3497 = vmul.f32 %v2946, 0.01
        %v3498 = vmul.f32 %v3170, 0.01
        %v3499 = vmul.f32 %v3172, 0.01
        %v3500 = vmul.f32 %v2950, 0.01
        %v3501 = vmul.f32 %v2952, 0.01
        %v3502 = vmul.f32 %v3176, 0.01
        %v3503 = vmul.f32 %v3178, 0.01
        %v3504 = vmul.f32 %v2954, 0.01
        %v3505 = vmul.f32 %v2956, 0.01
        %v3506 = vmul.f32 %v3180, 0.01
        %v3507 = vmul.f32 %v3182, 0.01
        %v3508 = vmul.f32 %v2960, 0.01
        %v3509 = vmul.f32 %v2962, 0.01
        %v3510 = vmul.f32 %v3186, 0.01
        %v3511 = vmul.f32 %v3188, 0.01
        %v3512 = vmul.f32 %v2964, 0.01
        %v3513 = vmul.f32 %v2966, 0.01
        %v3514 = vmul.f32 %v3190, 0.01
        %v3515 = vmul.f32 %v3192, 0.01
        %v3516 = vmul.f32 %v2970, 0.01
        %v3517 = vmul.f32 %v2972, 0.01
        %v3518 = vmul.f32 %v3196, 0.01
        %v3519 = vmul.f32 %v3198, 0.01
        %v3520 = vmul.f32 %v2974, 0.01
        %v3521 = vmul.f32 %v2976, 0.01
        %v3522 = vmul.f32 %v3200, 0.01
        %v3523 = vmul.f32 %v3202, 0.01
        %v3524 = vsel %vm3396, %v2900, %v3460
        %v3525 = vsel %vm3397, %v2902, %v3461
        %v3526 = vsel %vm3398, %v3126, %v3462
        %v3527 = vsel %vm3399, %v3128, %v3463
        %v3528 = vsel %vm3400, %v2904, %v3464
        %v3529 = vsel %vm3401, %v2906, %v3465
        %v3530 = vsel %vm3402, %v3130, %v3466
        %v3531 = vsel %vm3403, %v3132, %v3467
        %v3532 = vsel %vm3404, %v2910, %v3468
        %v3533 = vsel %vm3405, %v2912, %v3469
        %v3534 = vsel %vm3406, %v3136, %v3470
        %v3535 = vsel %vm3407, %v3138, %v3471
        %v3536 = vsel %vm3408, %v2914, %v3472
        %v3537 = vsel %vm3409, %v2916, %v3473
        %v3538 = vsel %vm3410, %v3140, %v3474
        %v3539 = vsel %vm3411, %v3142, %v3475
        %v3540 = vsel %vm3412, %v2920, %v3476
        %v3541 = vsel %vm3413, %v2922, %v3477
        %v3542 = vsel %vm3414, %v3146, %v3478
        %v3543 = vsel %vm3415, %v3148, %v3479
        %v3544 = vsel %vm3416, %v2924, %v3480
        %v3545 = vsel %vm3417, %v2926, %v3481
        %v3546 = vsel %vm3418, %v3150, %v3482
        %v3547 = vsel %vm3419, %v3152, %v3483
        %v3548 = vsel %vm3420, %v2930, %v3484
        %v3549 = vsel %vm3421, %v2932, %v3485
        %v3550 = vsel %vm3422, %v3156, %v3486
        %v3551 = vsel %vm3423, %v3158, %v3487
        %v3552 = vsel %vm3424, %v2934, %v3488
        %v3553 = vsel %vm3425, %v2936, %v3489
        %v3554 = vsel %vm3426, %v3160, %v3490
        %v3555 = vsel %vm3427, %v3162, %v3491
        %v3556 = vsel %vm3428, %v2940, %v3492
        %v3557 = vsel %vm3429, %v2942, %v3493
        %v3558 = vsel %vm3430, %v3166, %v3494
        %v3559 = vsel %vm3431, %v3168, %v3495
        %v3560 = vsel %vm3432, %v2944, %v3496
        %v3561 = vsel %vm3433, %v2946, %v3497
        %v3562 = vsel %vm3434, %v3170, %v3498
        %v3563 = vsel %vm3435, %v3172, %v3499
        %v3564 = vsel %vm3436, %v2950, %v3500
        %v3565 = vsel %vm3437, %v2952, %v3501
        %v3566 = vsel %vm3438, %v3176, %v3502
        %v3567 = vsel %vm3439, %v3178, %v3503
        %v3568 = vsel %vm3440, %v2954, %v3504
        %v3569 = vsel %vm3441, %v2956, %v3505
        %v3570 = vsel %vm3442, %v3180, %v3506
        %v3571 = vsel %vm3443, %v3182, %v3507
        %v3572 = vsel %vm3444, %v2960, %v3508
        %v3573 = vsel %vm3445, %v2962, %v3509
        %v3574 = vsel %vm3446, %v3186, %v3510
        %v3575 = vsel %vm3447, %v3188, %v3511
        %v3576 = vsel %vm3448, %v2964, %v3512
        %v3577 = vsel %vm3449, %v2966, %v3513
        %v3578 = vsel %vm3450, %v3190, %v3514
        %v3579 = vsel %vm3451, %v3192, %v3515
        %v3580 = vsel %vm3452, %v2970, %v3516
        %v3581 = vsel %vm3453, %v2972, %v3517
        %v3582 = vsel %vm3454, %v3196, %v3518
        %v3583 = vsel %vm3455, %v3198, %v3519
        %v3584 = vsel %vm3456, %v2974, %v3520
        %v3585 = vsel %vm3457, %v2976, %v3521
        %v3586 = vsel %vm3458, %v3200, %v3522
        %v3587 = vsel %vm3459, %v3202, %v3523
        %3652 = vrot.lane.b32.xlu0 %v3524, 16
        %v3653 = vpop.permute.xlu0 %3652
        %3654 = vrot.lane.b32.xlu0 %v3525, 16
        %v3655 = vpop.permute.xlu0 %3654
        %3656 = vrot.lane.b32.xlu0 %v3526, 16
        %v3657 = vpop.permute.xlu0 %3656
        %3658 = vrot.lane.b32.xlu0 %v3527, 16
        %v3659 = vpop.permute.xlu0 %3658
        %3660 = vrot.lane.b32.xlu0 %v3528, 16
        %v3661 = vpop.permute.xlu0 %3660
        %3662 = vrot.lane.b32.xlu0 %v3529, 16
        %v3663 = vpop.permute.xlu0 %3662
        %3664 = vrot.lane.b32.xlu0 %v3530, 16
        %v3665 = vpop.permute.xlu0 %3664
        %3666 = vrot.lane.b32.xlu0 %v3531, 16
        %v3667 = vpop.permute.xlu0 %3666
        %3668 = vrot.lane.b32.xlu0 %v3532, 16
        %v3669 = vpop.permute.xlu0 %3668
        %3670 = vrot.lane.b32.xlu0 %v3533, 16
        %v3671 = vpop.permute.xlu0 %3670
        %3672 = vrot.lane.b32.xlu0 %v3534, 16
        %v3673 = vpop.permute.xlu0 %3672
        %3674 = vrot.lane.b32.xlu0 %v3535, 16
        %v3675 = vpop.permute.xlu0 %3674
        %3676 = vrot.lane.b32.xlu0 %v3536, 16
        %v3677 = vpop.permute.xlu0 %3676
        %3678 = vrot.lane.b32.xlu0 %v3537, 16
        %v3679 = vpop.permute.xlu0 %3678
        %3680 = vrot.lane.b32.xlu0 %v3538, 16
        %v3681 = vpop.permute.xlu0 %3680
        %3682 = vrot.lane.b32.xlu0 %v3539, 16
        %v3683 = vpop.permute.xlu0 %3682
        %3684 = vrot.lane.b32.xlu0 %v3540, 16
        %v3685 = vpop.permute.xlu0 %3684
        %3686 = vrot.lane.b32.xlu0 %v3541, 16
        %v3687 = vpop.permute.xlu0 %3686
        %3688 = vrot.lane.b32.xlu0 %v3542, 16
        %v3689 = vpop.permute.xlu0 %3688
        %3690 = vrot.lane.b32.xlu0 %v3543, 16
        %v3691 = vpop.permute.xlu0 %3690
        %3692 = vrot.lane.b32.xlu0 %v3544, 16
        %v3693 = vpop.permute.xlu0 %3692
        %3694 = vrot.lane.b32.xlu0 %v3545, 16
        %v3695 = vpop.permute.xlu0 %3694
        %3696 = vrot.lane.b32.xlu0 %v3546, 16
        %v3697 = vpop.permute.xlu0 %3696
        %3698 = vrot.lane.b32.xlu0 %v3547, 16
        %v3699 = vpop.permute.xlu0 %3698
        %3700 = vrot.lane.b32.xlu0 %v3548, 16
        %v3701 = vpop.permute.xlu0 %3700
        %3702 = vrot.lane.b32.xlu0 %v3549, 16
        %v3703 = vpop.permute.xlu0 %3702
        %3704 = vrot.lane.b32.xlu0 %v3550, 16
        %v3705 = vpop.permute.xlu0 %3704
        %3706 = vrot.lane.b32.xlu0 %v3551, 16
        %v3707 = vpop.permute.xlu0 %3706
        %3708 = vrot.lane.b32.xlu0 %v3552, 16
        %v3709 = vpop.permute.xlu0 %3708
        %3710 = vrot.lane.b32.xlu0 %v3553, 16
        %v3711 = vpop.permute.xlu0 %3710
        %3712 = vrot.lane.b32.xlu0 %v3554, 16
        %v3713 = vpop.permute.xlu0 %3712
        %3714 = vrot.lane.b32.xlu0 %v3555, 16
        %v3715 = vpop.permute.xlu0 %3714
        %3716 = vrot.lane.b32.xlu0 %v3556, 16
        %v3717 = vpop.permute.xlu0 %3716
        %3718 = vrot.lane.b32.xlu0 %v3557, 16
        %v3719 = vpop.permute.xlu0 %3718
        %3720 = vrot.lane.b32.xlu0 %v3558, 16
        %v3721 = vpop.permute.xlu0 %3720
        %3722 = vrot.lane.b32.xlu0 %v3559, 16
        %v3723 = vpop.permute.xlu0 %3722
        %3724 = vrot.lane.b32.xlu0 %v3560, 16
        %v3725 = vpop.permute.xlu0 %3724
        %3726 = vrot.lane.b32.xlu0 %v3561, 16
        %v3727 = vpop.permute.xlu0 %3726
        %3728 = vrot.lane.b32.xlu0 %v3562, 16
        %v3729 = vpop.permute.xlu0 %3728
        %3730 = vrot.lane.b32.xlu0 %v3563, 16
        %v3731 = vpop.permute.xlu0 %3730
        %3732 = vrot.lane.b32.xlu0 %v3564, 16
        %v3733 = vpop.permute.xlu0 %3732
        %3734 = vrot.lane.b32.xlu0 %v3565, 16
        %v3735 = vpop.permute.xlu0 %3734
        %3736 = vrot.lane.b32.xlu0 %v3566, 16
        %v3737 = vpop.permute.xlu0 %3736
        %3738 = vrot.lane.b32.xlu0 %v3567, 16
        %v3739 = vpop.permute.xlu0 %3738
        %3740 = vrot.lane.b32.xlu0 %v3568, 16
        %v3741 = vpop.permute.xlu0 %3740
        %3742 = vrot.lane.b32.xlu0 %v3569, 16
        %v3743 = vpop.permute.xlu0 %3742
        %3744 = vrot.lane.b32.xlu0 %v3570, 16
        %v3745 = vpop.permute.xlu0 %3744
        %3746 = vrot.lane.b32.xlu0 %v3571, 16
        %v3747 = vpop.permute.xlu0 %3746
        %3748 = vrot.lane.b32.xlu0 %v3572, 16
        %v3749 = vpop.permute.xlu0 %3748
        %3750 = vrot.lane.b32.xlu0 %v3573, 16
        %v3751 = vpop.permute.xlu0 %3750
        %3752 = vrot.lane.b32.xlu0 %v3574, 16
        %v3753 = vpop.permute.xlu0 %3752
        %3754 = vrot.lane.b32.xlu0 %v3575, 16
        %v3755 = vpop.permute.xlu0 %3754
        %3756 = vrot.lane.b32.xlu0 %v3576, 16
        %v3757 = vpop.permute.xlu0 %3756
        %3758 = vrot.lane.b32.xlu0 %v3577, 16
        %v3759 = vpop.permute.xlu0 %3758
        %3760 = vrot.lane.b32.xlu0 %v3578, 16
        %v3761 = vpop.permute.xlu0 %3760
        %3762 = vrot.lane.b32.xlu0 %v3579, 16
        %v3763 = vpop.permute.xlu0 %3762
        %3764 = vrot.lane.b32.xlu0 %v3580, 16
        %v3765 = vpop.permute.xlu0 %3764
        %3766 = vrot.lane.b32.xlu0 %v3581, 16
        %v3767 = vpop.permute.xlu0 %3766
        %3768 = vrot.lane.b32.xlu0 %v3582, 16
        %v3769 = vpop.permute.xlu0 %3768
        %3770 = vrot.lane.b32.xlu0 %v3583, 16
        %v3771 = vpop.permute.xlu0 %3770
        %3772 = vrot.lane.b32.xlu0 %v3584, 16
        %v3773 = vpop.permute.xlu0 %3772
        %3774 = vrot.lane.b32.xlu0 %v3585, 16
        %v3775 = vpop.permute.xlu0 %3774
        %3776 = vrot.lane.b32.xlu0 %v3586, 16
        %v3777 = vpop.permute.xlu0 %3776
        %3778 = vrot.lane.b32.xlu0 %v3587, 16
        %v3779 = vpop.permute.xlu0 %3778
        %vm3780 = vcmask 130048
        %v3781 = vsel %vm3780, %v3653, %v3655
        %v3782 = vsel %vm3780, %v3655, %v3657
        %v3783 = vsel %vm3780, %v3657, %v3659
        %v3784 = vsel %vm3780, %v3661, %v3663
        %v3785 = vsel %vm3780, %v3663, %v3665
        %v3786 = vsel %vm3780, %v3665, %v3667
        %v3787 = vsel %vm3780, %v3669, %v3671
        %v3788 = vsel %vm3780, %v3671, %v3673
        %v3789 = vsel %vm3780, %v3673, %v3675
        %v3790 = vsel %vm3780, %v3677, %v3679
        %v3791 = vsel %vm3780, %v3679, %v3681
        %v3792 = vsel %vm3780, %v3681, %v3683
        %v3793 = vsel %vm3780, %v3685, %v3687
        %v3794 = vsel %vm3780, %v3687, %v3689
        %v3795 = vsel %vm3780, %v3689, %v3691
        %v3796 = vsel %vm3780, %v3693, %v3695
        %v3797 = vsel %vm3780, %v3695, %v3697
        %v3798 = vsel %vm3780, %v3697, %v3699
        %v3799 = vsel %vm3780, %v3701, %v3703
        %v3800 = vsel %vm3780, %v3703, %v3705
        %v3801 = vsel %vm3780, %v3705, %v3707
        %v3802 = vsel %vm3780, %v3709, %v3711
        %v3803 = vsel %vm3780, %v3711, %v3713
        %v3804 = vsel %vm3780, %v3713, %v3715
        %v3805 = vsel %vm3780, %v3717, %v3719
        %v3806 = vsel %vm3780, %v3719, %v3721
        %v3807 = vsel %vm3780, %v3721, %v3723
        %v3808 = vsel %vm3780, %v3725, %v3727
        %v3809 = vsel %vm3780, %v3727, %v3729
        %v3810 = vsel %vm3780, %v3729, %v3731
        %v3811 = vsel %vm3780, %v3733, %v3735
        %v3812 = vsel %vm3780, %v3735, %v3737
        %v3813 = vsel %vm3780, %v3737, %v3739
        %v3814 = vsel %vm3780, %v3741, %v3743
        %v3815 = vsel %vm3780, %v3743, %v3745
        %v3816 = vsel %vm3780, %v3745, %v3747
        %v3817 = vsel %vm3780, %v3749, %v3751
        %v3818 = vsel %vm3780, %v3751, %v3753
        %v3819 = vsel %vm3780, %v3753, %v3755
        %v3820 = vsel %vm3780, %v3757, %v3759
        %v3821 = vsel %vm3780, %v3759, %v3761
        %v3822 = vsel %vm3780, %v3761, %v3763
        %v3823 = vsel %vm3780, %v3765, %v3767
        %v3824 = vsel %vm3780, %v3767, %v3769
        %v3825 = vsel %vm3780, %v3769, %v3771
        %v3826 = vsel %vm3780, %v3773, %v3775
        %v3827 = vsel %vm3780, %v3775, %v3777
        %v3828 = vsel %vm3780, %v3777, %v3779
        %v3893 = vsel %vm3780, %v3335, %v3653
        %v3894 = vsel %vm3780, %v3339, %v3661
        %v3895 = vsel %vm3780, %v3343, %v3669
        %v3896 = vsel %vm3780, %v3347, %v3677
        %v3897 = vsel %vm3780, %v3351, %v3685
        %v3898 = vsel %vm3780, %v3355, %v3693
        %v3899 = vsel %vm3780, %v3359, %v3701
        %v3900 = vsel %vm3780, %v3363, %v3709
        %v3901 = vsel %vm3780, %v3367, %v3717
        %v3902 = vsel %vm3780, %v3371, %v3725
        %v3903 = vsel %vm3780, %v3375, %v3733
        %v3904 = vsel %vm3780, %v3379, %v3741
        %v3905 = vsel %vm3780, %v3383, %v3749
        %v3906 = vsel %vm3780, %v3387, %v3757
        %v3907 = vsel %vm3780, %v3391, %v3765
        %v3908 = vsel %vm3780, %v3395, %v3773
        %v3909 = vpack.c.bf16 %v3336, %v3332
        %v3910 = vpack.c.bf16 %v3337, %v3333
        %v3911 = vpack.c.bf16 %v3338, %v3334
        %v3912 = vpack.c.bf16 %v3894, %v3893
        %v3913 = vpack.c.bf16 %v3784, %v3781
        %v3914 = vpack.c.bf16 %v3785, %v3782
        %v3915 = vpack.c.bf16 %v3786, %v3783
        %v3916 = vpack.c.bf16 %v3344, %v3340
        %v3917 = vpack.c.bf16 %v3345, %v3341
        %v3918 = vpack.c.bf16 %v3346, %v3342
        %v3919 = vpack.c.bf16 %v3896, %v3895
        %v3920 = vpack.c.bf16 %v3790, %v3787
        %v3921 = vpack.c.bf16 %v3791, %v3788
        %v3922 = vpack.c.bf16 %v3792, %v3789
        %v3923 = vpack.c.bf16 %v3352, %v3348
        %v3924 = vpack.c.bf16 %v3353, %v3349
        %v3925 = vpack.c.bf16 %v3354, %v3350
        %v3926 = vpack.c.bf16 %v3898, %v3897
        %v3927 = vpack.c.bf16 %v3796, %v3793
        %v3928 = vpack.c.bf16 %v3797, %v3794
        %v3929 = vpack.c.bf16 %v3798, %v3795
        %v3930 = vpack.c.bf16 %v3360, %v3356
        %v3931 = vpack.c.bf16 %v3361, %v3357
        %v3932 = vpack.c.bf16 %v3362, %v3358
        %v3933 = vpack.c.bf16 %v3900, %v3899
        %v3934 = vpack.c.bf16 %v3802, %v3799
        %v3935 = vpack.c.bf16 %v3803, %v3800
        %v3936 = vpack.c.bf16 %v3804, %v3801
        %v3937 = vpack.c.bf16 %v3368, %v3364
        %v3938 = vpack.c.bf16 %v3369, %v3365
        %v3939 = vpack.c.bf16 %v3370, %v3366
        %v3940 = vpack.c.bf16 %v3902, %v3901
        %v3941 = vpack.c.bf16 %v3808, %v3805
        %v3942 = vpack.c.bf16 %v3809, %v3806
        %v3943 = vpack.c.bf16 %v3810, %v3807
        %v3944 = vpack.c.bf16 %v3376, %v3372
        %v3945 = vpack.c.bf16 %v3377, %v3373
        %v3946 = vpack.c.bf16 %v3378, %v3374
        %v3947 = vpack.c.bf16 %v3904, %v3903
        %v3948 = vpack.c.bf16 %v3814, %v3811
        %v3949 = vpack.c.bf16 %v3815, %v3812
        %v3950 = vpack.c.bf16 %v3816, %v3813
        %v3951 = vpack.c.bf16 %v3384, %v3380
        %v3952 = vpack.c.bf16 %v3385, %v3381
        %v3953 = vpack.c.bf16 %v3386, %v3382
        %v3954 = vpack.c.bf16 %v3906, %v3905
        %v3955 = vpack.c.bf16 %v3820, %v3817
        %v3956 = vpack.c.bf16 %v3821, %v3818
        %v3957 = vpack.c.bf16 %v3822, %v3819
        %v3958 = vpack.c.bf16 %v3392, %v3388
        %v3959 = vpack.c.bf16 %v3393, %v3389
        %v3960 = vpack.c.bf16 %v3394, %v3390
        %v3961 = vpack.c.bf16 %v3908, %v3907
        %v3962 = vpack.c.bf16 %v3826, %v3823
        %v3963 = vpack.c.bf16 %v3827, %v3824
        %v3964 = vpack.c.bf16 %v3828, %v3825
        %v3965 = vld [vmem:[%s6] sm:$0xf]
        %v3966 = vld [vmem:[%s6 + $0x4] sm:$0xf]
        %v3967 = vld [vmem:[%s6 + $0x8] sm:$0xf]
        %v3968 = vld [vmem:[%s6 + $0xc] sm:$0xf]
        %v3969 = vld [vmem:[%s6 + $0x10] sm:$0xf]
        %v3970 = vld [vmem:[%s6 + $0x14] sm:$0xf]
        %v3971 = vld [vmem:[%s6 + $0x18] sm:$0xf]
        %v3972 = vld [vmem:[%s6 + $0x1c] sm:$0xf]
        %v3973 = vld [vmem:[%s6 + $0x20] sm:$0xf]
        %v3974 = vld [vmem:[%s6 + $0x24] sm:$0xf]
        %v3975 = vld [vmem:[%s6 + $0x28] sm:$0xf]
        %v3976 = vld [vmem:[%s6 + $0x2c] sm:$0xf]
        %v3977 = vld [vmem:[%s6 + $0x30] sm:$0xf]
        %v3978 = vld [vmem:[%s6 + $0x34] sm:$0xf]
        %v3979 = vld [vmem:[%s6 + $0x38] sm:$0xf]
        %v3980 = vld [vmem:[%s6 + $0x3c] sm:$0xf]
        %v3981 = vld [vmem:[%s6 + $0x40] sm:$0xf]
        %v3982 = vld [vmem:[%s6 + $0x44] sm:$0xf]
        %v3983 = vld [vmem:[%s6 + $0x48] sm:$0xf]
        %v3984 = vld [vmem:[%s6 + $0x4c] sm:$0xf]
        %v3985 = vld [vmem:[%s6 + $0x50] sm:$0xf]
        %v3986 = vld [vmem:[%s6 + $0x54] sm:$0xf]
        %v3987 = vld [vmem:[%s6 + $0x58] sm:$0xf]
        %v3988 = vld [vmem:[%s6 + $0x5c] sm:$0xf]
        %v3989 = vld [vmem:[%s6 + $0x60] sm:$0xf]
        %v3990 = vld [vmem:[%s6 + $0x64] sm:$0xf]
        %v3991 = vld [vmem:[%s6 + $0x68] sm:$0xf]
        %v3992 = vld [vmem:[%s6 + $0x6c] sm:$0xf]
        %v3993 = vld [vmem:[%s6 + $0x70] sm:$0xf]
        %v3994 = vld [vmem:[%s6 + $0x74] sm:$0xf]
        %v3995 = vld [vmem:[%s6 + $0x78] sm:$0xf]
        %v3996 = vld [vmem:[%s6 + $0x7c] sm:$0xf]
        %v3997 = vld [vmem:[%s6 + $0x80] sm:$0xf]
        %v3998 = vld [vmem:[%s6 + $0x84] sm:$0xf]
        %v3999 = vld [vmem:[%s6 + $0x88] sm:$0xf]
        %v4000 = vld [vmem:[%s6 + $0x8c] sm:$0xf]
        %v4001 = vld [vmem:[%s6 + $0x90] sm:$0xf]
        %v4002 = vld [vmem:[%s6 + $0x94] sm:$0xf]
        %v4003 = vld [vmem:[%s6 + $0x98] sm:$0xf]
        %v4004 = vld [vmem:[%s6 + $0x9c] sm:$0xf]
        %v4005 = vld [vmem:[%s6 + $0xa0] sm:$0xf]
        %v4006 = vld [vmem:[%s6 + $0xa4] sm:$0xf]
        %v4007 = vld [vmem:[%s6 + $0xa8] sm:$0xf]
        %v4008 = vld [vmem:[%s6 + $0xac] sm:$0xf]
        %v4009 = vld [vmem:[%s6 + $0xb0] sm:$0xf]
        %v4010 = vld [vmem:[%s6 + $0xb4] sm:$0xf]
        %v4011 = vld [vmem:[%s6 + $0xb8] sm:$0xf]
        %v4012 = vld [vmem:[%s6 + $0xbc] sm:$0xf]
        %v4013 = vld [vmem:[%s6 + $0xc0] sm:$0xf]
        %v4014 = vld [vmem:[%s6 + $0xc4] sm:$0xf]
        %v4015 = vld [vmem:[%s6 + $0xc8] sm:$0xf]
        %v4016 = vld [vmem:[%s6 + $0xcc] sm:$0xf]
        %v4017 = vld [vmem:[%s6 + $0xd0] sm:$0xf]
        %v4018 = vld [vmem:[%s6 + $0xd4] sm:$0xf]
        %v4019 = vld [vmem:[%s6 + $0xd8] sm:$0xf]
        %v4020 = vld [vmem:[%s6 + $0xdc] sm:$0xf]
        %v4021 = vld [vmem:[%s6 + $0xe0] sm:$0xf]
        %v4022 = vld [vmem:[%s6 + $0xe4] sm:$0xf]
        %v4023 = vld [vmem:[%s6 + $0xe8] sm:$0xf]
        %v4024 = vld [vmem:[%s6 + $0xec] sm:$0xf]
        %v4025 = vld [vmem:[%s6 + $0xf0] sm:$0xf]
        %v4026 = vld [vmem:[%s6 + $0xf4] sm:$0xf]
        %v4027 = vld [vmem:[%s6 + $0xf8] sm:$0xf]
        %v4028 = vld [vmem:[%s6 + $0xfc] sm:$0xf]
        %v4029 = vld [vmem:[%s6 + $0x100] sm:$0xf]
        %v4030 = vld [vmem:[%s6 + $0x104] sm:$0xf]
        %v4031 = vld [vmem:[%s6 + $0x108] sm:$0xf]
        %v4032 = vld [vmem:[%s6 + $0x10c] sm:$0xf]
        %v4033 = vld [vmem:[%s6 + $0x110] sm:$0xf]
        %v4034 = vld [vmem:[%s6 + $0x114] sm:$0xf]
        %v4035 = vld [vmem:[%s6 + $0x118] sm:$0xf]
        %v4036 = vld [vmem:[%s6 + $0x11c] sm:$0xf]
        %v4037 = vld [vmem:[%s6 + $0x120] sm:$0xf]
        %v4038 = vld [vmem:[%s6 + $0x124] sm:$0xf]
        %v4039 = vld [vmem:[%s6 + $0x128] sm:$0xf]
        %v4040 = vld [vmem:[%s6 + $0x12c] sm:$0xf]
        %v4041 = vld [vmem:[%s6 + $0x130] sm:$0xf]
        %v4042 = vld [vmem:[%s6 + $0x134] sm:$0xf]
        %v4043 = vld [vmem:[%s6 + $0x138] sm:$0xf]
        %v4044 = vld [vmem:[%s6 + $0x13c] sm:$0xf]
        %v4045 = vld [vmem:[%s6 + $0x140] sm:$0xf]
        %v4046 = vld [vmem:[%s6 + $0x144] sm:$0xf]
        %v4047 = vld [vmem:[%s6 + $0x148] sm:$0xf]
        %v4048 = vld [vmem:[%s6 + $0x14c] sm:$0xf]
        %v4049 = vld [vmem:[%s6 + $0x150] sm:$0xf]
        %v4050 = vld [vmem:[%s6 + $0x154] sm:$0xf]
        %v4051 = vld [vmem:[%s6 + $0x158] sm:$0xf]
        %v4052 = vld [vmem:[%s6 + $0x15c] sm:$0xf]
        %v4053 = vld [vmem:[%s6 + $0x160] sm:$0xf]
        %v4054 = vld [vmem:[%s6 + $0x164] sm:$0xf]
        %v4055 = vld [vmem:[%s6 + $0x168] sm:$0xf]
        %v4056 = vld [vmem:[%s6 + $0x16c] sm:$0xf]
        %v4057 = vld [vmem:[%s6 + $0x170] sm:$0xf]
        %v4058 = vld [vmem:[%s6 + $0x174] sm:$0xf]
        %v4059 = vld [vmem:[%s6 + $0x178] sm:$0xf]
        %v4060 = vld [vmem:[%s6 + $0x17c] sm:$0xf]
        %v4061 = vld [vmem:[%s6 + $0x180] sm:$0xf]
        %v4062 = vld [vmem:[%s6 + $0x184] sm:$0xf]
        %v4063 = vld [vmem:[%s6 + $0x188] sm:$0xf]
        %v4064 = vld [vmem:[%s6 + $0x18c] sm:$0xf]
        %v4065 = vld [vmem:[%s7] sm:$0x1]
        %v4067 = vlaneseq
        %v4068 = vshrl.u32 %v4067, 7
        %v4069 = vsub.s32 0, %v4068
        %v4070 = vrot.slane %v4065, %v4069
        %v4172 = vunpack.c.l.b16 %v3965
        %v4173 = vunpack.c.l.b16 %v3966
        %v4174 = vunpack.c.l.b16 %v3967
        %v4175 = vunpack.c.l.b16 %v3968
        %v4176 = vunpack.c.l.b16 %v3969
        %v4177 = vunpack.c.l.b16 %v3970
        %v4178 = vunpack.c.l.b16 %v3971
        %v4179 = vunpack.c.l.b16 %v3972
        %v4180 = vunpack.c.l.b16 %v3973
        %v4181 = vunpack.c.l.b16 %v3974
        %v4182 = vunpack.c.l.b16 %v3975
        %v4183 = vunpack.c.l.b16 %v3976
        %v4184 = vunpack.c.l.b16 %v3977
        %v4185 = vunpack.c.l.b16 %v3978
        %v4186 = vunpack.c.l.b16 %v3979
        %v4187 = vunpack.c.l.b16 %v3980
        %v4188 = vunpack.c.l.b16 %v3981
        %v4189 = vunpack.c.l.b16 %v3982
        %v4190 = vunpack.c.l.b16 %v3983
        %v4191 = vunpack.c.l.b16 %v3984
        %v4192 = vunpack.c.l.b16 %v3985
        %v4193 = vunpack.c.l.b16 %v3986
        %v4194 = vunpack.c.l.b16 %v3987
        %v4195 = vunpack.c.l.b16 %v3988
        %v4196 = vunpack.c.l.b16 %v3989
        %v4197 = vunpack.c.l.b16 %v3990
        %v4198 = vunpack.c.l.b16 %v3991
        %v4199 = vunpack.c.l.b16 %v3992
        %v4200 = vunpack.c.l.b16 %v3993
        %v4201 = vunpack.c.l.b16 %v3994
        %v4202 = vunpack.c.l.b16 %v3995
        %v4203 = vunpack.c.l.b16 %v3996
        %v4204 = vunpack.c.l.b16 %v3997
        %v4205 = vunpack.c.l.b16 %v3998
        %v4206 = vunpack.c.l.b16 %v3999
        %v4207 = vunpack.c.l.b16 %v4000
        %v4208 = vunpack.c.l.b16 %v4001
        %v4209 = vunpack.c.l.b16 %v4002
        %v4210 = vunpack.c.l.b16 %v4003
        %v4211 = vunpack.c.l.b16 %v4004
        %v4212 = vunpack.c.l.b16 %v4005
        %v4213 = vunpack.c.l.b16 %v4006
        %v4214 = vunpack.c.l.b16 %v4007
        %v4215 = vunpack.c.l.b16 %v4008
        %v4216 = vunpack.c.l.b16 %v4009
        %v4217 = vunpack.c.l.b16 %v4010
        %v4218 = vunpack.c.l.b16 %v4011
        %v4219 = vunpack.c.l.b16 %v4012
        %v4220 = vunpack.c.l.b16 %v4013
        %v4221 = vunpack.c.l.b16 %v4014
        %v4222 = vunpack.c.l.b16 %v4015
        %v4223 = vunpack.c.l.b16 %v4016
        %v4224 = vunpack.c.l.b16 %v4017
        %v4225 = vunpack.c.l.b16 %v4018
        %v4226 = vunpack.c.l.b16 %v4019
        %v4227 = vunpack.c.l.b16 %v4020
        %v4228 = vunpack.c.l.b16 %v4021
        %v4229 = vunpack.c.l.b16 %v4022
        %v4230 = vunpack.c.l.b16 %v4023
        %v4231 = vunpack.c.l.b16 %v4024
        %v4232 = vunpack.c.l.b16 %v4025
        %v4233 = vunpack.c.l.b16 %v4026
        %v4234 = vunpack.c.l.b16 %v4027
        %v4235 = vunpack.c.l.b16 %v4028
        %v4236 = vunpack.c.l.b16 %v4029
        %v4237 = vunpack.c.l.b16 %v4030
        %v4238 = vunpack.c.l.b16 %v4031
        %v4239 = vunpack.c.l.b16 %v4032
        %v4240 = vunpack.c.l.b16 %v4033
        %v4241 = vunpack.c.l.b16 %v4034
        %v4242 = vunpack.c.l.b16 %v4035
        %v4243 = vunpack.c.l.b16 %v4036
        %v4244 = vunpack.c.l.b16 %v4037
        %v4245 = vunpack.c.l.b16 %v4038
        %v4246 = vunpack.c.l.b16 %v4039
        %v4247 = vunpack.c.l.b16 %v4040
        %v4248 = vunpack.c.l.b16 %v4041
        %v4249 = vunpack.c.l.b16 %v4042
        %v4250 = vunpack.c.l.b16 %v4043
        %v4251 = vunpack.c.l.b16 %v4044
        %v4252 = vunpack.c.l.b16 %v4045
        %v4253 = vunpack.c.l.b16 %v4046
        %v4254 = vunpack.c.l.b16 %v4047
        %v4255 = vunpack.c.l.b16 %v4048
        %v4256 = vunpack.c.l.b16 %v4049
        %v4257 = vunpack.c.l.b16 %v4050
        %v4258 = vunpack.c.l.b16 %v4051
        %v4259 = vunpack.c.l.b16 %v4052
        %v4260 = vunpack.c.l.b16 %v4053
        %v4261 = vunpack.c.l.b16 %v4054
        %v4262 = vunpack.c.l.b16 %v4055
        %v4263 = vunpack.c.l.b16 %v4056
        %v4264 = vunpack.c.l.b16 %v4057
        %v4265 = vunpack.c.l.b16 %v4058
        %v4266 = vunpack.c.l.b16 %v4059
        %v4267 = vunpack.c.l.b16 %v4060
        %v4268 = vunpack.c.l.b16 %v4061
        %v4269 = vunpack.c.l.b16 %v4062
        %v4270 = vunpack.c.l.b16 %v4063
        %v4271 = vunpack.c.l.b16 %v4064
        %v4272 = vpack.c.b16 %v4173, %v4172
        %v4273 = vpack.c.b16 %v4175, %v4174
        %v4274 = vpack.c.b16 %v4177, %v4176
        %v4275 = vpack.c.b16 %v4179, %v4178
        %v4276 = vpack.c.b16 %v4181, %v4180
        %v4277 = vpack.c.b16 %v4183, %v4182
        %v4278 = vpack.c.b16 %v4185, %v4184
        %v4279 = vpack.c.b16 %v4187, %v4186
        %v4280 = vpack.c.b16 %v4189, %v4188
        %v4281 = vpack.c.b16 %v4191, %v4190
        %v4282 = vpack.c.b16 %v4193, %v4192
        %v4283 = vpack.c.b16 %v4195, %v4194
        %v4284 = vpack.c.b16 %v4197, %v4196
        %v4285 = vpack.c.b16 %v4199, %v4198
        %v4286 = vpack.c.b16 %v4201, %v4200
        %v4287 = vpack.c.b16 %v4203, %v4202
        %v4288 = vpack.c.b16 %v4205, %v4204
        %v4289 = vpack.c.b16 %v4207, %v4206
        %v4290 = vpack.c.b16 %v4209, %v4208
        %v4291 = vpack.c.b16 %v4211, %v4210
        %v4292 = vpack.c.b16 %v4213, %v4212
        %v4293 = vpack.c.b16 %v4215, %v4214
        %v4294 = vpack.c.b16 %v4217, %v4216
        %v4295 = vpack.c.b16 %v4219, %v4218
        %v4296 = vpack.c.b16 %v4221, %v4220
        %v4297 = vpack.c.b16 %v4223, %v4222
        %v4298 = vpack.c.b16 %v4225, %v4224
        %v4299 = vpack.c.b16 %v4227, %v4226
        %v4300 = vpack.c.b16 %v4229, %v4228
        %v4301 = vpack.c.b16 %v4231, %v4230
        %v4302 = vpack.c.b16 %v4233, %v4232
        %v4303 = vpack.c.b16 %v4235, %v4234
        %v4304 = vpack.c.b16 %v4237, %v4236
        %v4305 = vpack.c.b16 %v4239, %v4238
        %v4306 = vpack.c.b16 %v4241, %v4240
        %v4307 = vpack.c.b16 %v4243, %v4242
        %v4308 = vpack.c.b16 %v4245, %v4244
        %v4309 = vpack.c.b16 %v4247, %v4246
        %v4310 = vpack.c.b16 %v4249, %v4248
        %v4311 = vpack.c.b16 %v4251, %v4250
        %v4312 = vpack.c.b16 %v4253, %v4252
        %v4313 = vpack.c.b16 %v4255, %v4254
        %v4314 = vpack.c.b16 %v4257, %v4256
        %v4315 = vpack.c.b16 %v4259, %v4258
        %v4316 = vpack.c.b16 %v4261, %v4260
        %v4317 = vpack.c.b16 %v4263, %v4262
        %v4318 = vpack.c.b16 %v4265, %v4264
        %v4319 = vpack.c.b16 %v4267, %v4266
        %v4320 = vpack.c.b16 %v4269, %v4268
        %v4321 = vpack.c.b16 %v4271, %v4270
        %vm4372 = vcmask 261120
        %v4374 = vsel %vm4372, %v3915, 0
        %v4377 = vsel %vm4372, %v3922, 0
        %v4380 = vsel %vm4372, %v3929, 0
        %v4383 = vsel %vm4372, %v3936, 0
        %v4386 = vsel %vm4372, %v3943, 0
        %v4389 = vsel %vm4372, %v3950, 0
        %v4392 = vsel %vm4372, %v3957, 0
        %v4395 = vsel %vm4372, %v3964, 0
        %4397 = vmatprep.subr.bf16.mxu0 0
        %4398 = vmatpush1.bf16.msra.mxu0 %v4272
        %4399 = vmatprep.subr.bf16.mxu0 0
        %4400 = vmatpush1.bf16.msra.mxu0 %v4273
        %4401 = vmatprep.subr.bf16.mxu0 0
        %4402 = vmatpush1.bf16.msra.mxu0 %v4274
        %4403 = vmatprep.subr.bf16.mxu0 0
        %4404 = vmatpush1.bf16.msra.mxu0 %v4275
        %4405 = vmatprep.subr.bf16.mxu0 0
        %4406 = vmatpush1.bf16.msra.mxu0 %v4276
        %4407 = vmatprep.subr.bf16.mxu0 0
        %4408 = vmatpush1.bf16.msra.mxu0 %v4277
        %4409 = vmatprep.subr.bf16.mxu0 0
        %4410 = vmatpush1.bf16.msra.mxu0 %v4278
        %4411 = vmatprep.subr.bf16.mxu0 0
        %4412 = vmatpush1.bf16.msra.mxu0 %v4279
        %4413 = vmatprep.subr.bf16.mxu0 0
        %4414 = vmatpush1.bf16.msra.mxu0 %v4280
        %4415 = vmatprep.subr.bf16.mxu0 0
        %4416 = vmatpush1.bf16.msra.mxu0 %v4281
        %4417 = vmatprep.subr.bf16.mxu0 0
        %4418 = vmatpush1.bf16.msra.mxu0 %v4282
        %4419 = vmatprep.subr.bf16.mxu0 0
        %4420 = vmatpush1.bf16.msra.mxu0 %v4283
        %4421 = vmatprep.subr.bf16.mxu0 0
        %4422 = vmatpush1.bf16.msra.mxu0 %v4284
        %4423 = vmatprep.subr.bf16.mxu0 0
        %4424 = vmatpush1.bf16.msra.mxu0 %v4285
        %4425 = vmatprep.subr.bf16.mxu0 0
        %4426 = vmatpush1.bf16.msra.mxu0 %v4286
        %4427 = vmatprep.subr.bf16.mxu0 0
        %4428 = vmatpush1.bf16.msra.mxu0 %v4287
        %4429 = vmatprep.mubr.bf16.mxu0 %v3910
        %4430 = vmatmul.mubr.bf16.gmra.mrb[0].mxu0 %v3909
        %v4431 = vpop.f32.mrb[0].mxu0
        %v4432 = vadd.f32 %v4070, %v4431
        %v4433 = vpop.f32.mrb[0].mxu0
        %v4434 = vpop.f32.mrb[0].mxu0
        %v4435 = vadd.f32 %v4070, %v4434
        %v4436 = vpop.f32.mrb[0].mxu0
        %4437 = vmatprep.mubr.bf16.mxu0 %v3917
        %4438 = vmatmul.mubr.bf16.gmra.mrb[0].mxu0 %v3916
        %v4439 = vpop.f32.mrb[0].mxu0
        %v4440 = vadd.f32 %v4070, %v4439
        %v4441 = vpop.f32.mrb[0].mxu0
        %v4442 = vpop.f32.mrb[0].mxu0
        %v4443 = vadd.f32 %v4070, %v4442
        %v4444 = vpop.f32.mrb[0].mxu0
        %4445 = vmatprep.mubr.bf16.mxu0 %v3924
        %4446 = vmatmul.mubr.bf16.gmra.mrb[0].mxu0 %v3923
        %v4447 = vpop.f32.mrb[0].mxu0
        %v4448 = vadd.f32 %v4070, %v4447
        %v4449 = vpop.f32.mrb[0].mxu0
        %v4450 = vpop.f32.mrb[0].mxu0
        %v4451 = vadd.f32 %v4070, %v4450
        %v4452 = vpop.f32.mrb[0].mxu0
        %4453 = vmatprep.mubr.bf16.mxu0 %v3931
        %4454 = vmatmul.mubr.bf16.gmra.mrb[0].mxu0 %v3930
        %v4455 = vpop.f32.mrb[0].mxu0
        %v4456 = vadd.f32 %v4070, %v4455
        %v4457 = vpop.f32.mrb[0].mxu0
        %v4458 = vpop.f32.mrb[0].mxu0
        %v4459 = vadd.f32 %v4070, %v4458
        %v4460 = vpop.f32.mrb[0].mxu0
        %4461 = vmatprep.mubr.bf16.mxu0 %v3938
        %4462 = vmatmul.mubr.bf16.gmra.mrb[0].mxu0 %v3937
        %v4463 = vpop.f32.mrb[0].mxu0
        %v4464 = vadd.f32 %v4070, %v4463
        %v4465 = vpop.f32.mrb[0].mxu0
        %v4466 = vpop.f32.mrb[0].mxu0
        %v4467 = vadd.f32 %v4070, %v4466
        %v4468 = vpop.f32.mrb[0].mxu0
        %4469 = vmatprep.mubr.bf16.mxu0 %v3945
        %4470 = vmatmul.mubr.bf16.gmra.mrb[0].mxu0 %v3944
        %v4471 = vpop.f32.mrb[0].mxu0
        %v4472 = vadd.f32 %v4070, %v4471
        %v4473 = vpop.f32.mrb[0].mxu0
        %v4474 = vpop.f32.mrb[0].mxu0
        %v4475 = vadd.f32 %v4070, %v4474
        %v4476 = vpop.f32.mrb[0].mxu0
        %4477 = vmatprep.mubr.bf16.mxu0 %v3952
        %4478 = vmatmul.mubr.bf16.gmra.mrb[0].mxu0 %v3951
        %v4479 = vpop.f32.mrb[0].mxu0
        %v4480 = vadd.f32 %v4070, %v4479
        %v4481 = vpop.f32.mrb[0].mxu0
        %v4482 = vpop.f32.mrb[0].mxu0
        %v4483 = vadd.f32 %v4070, %v4482
        %v4484 = vpop.f32.mrb[0].mxu0
        %4485 = vmatprep.mubr.bf16.mxu0 %v3959
        %4486 = vmatmul.mubr.bf16.gmra.mrb[0].mxu0 %v3958
        %v4487 = vpop.f32.mrb[0].mxu0
        %v4488 = vadd.f32 %v4070, %v4487
        %v4489 = vpop.f32.mrb[0].mxu0
        %v4490 = vpop.f32.mrb[0].mxu0
        %v4491 = vadd.f32 %v4070, %v4490
        %v4492 = vpop.f32.mrb[0].mxu0
        %4493 = vdwg.mxu0
        %4494 = vmatprep.subr.bf16.mxu0 0
        %4495 = vmatpush1.bf16.msra.mxu0 %v4288
        %4496 = vmatprep.subr.bf16.mxu0 0
        %4497 = vmatpush1.bf16.msra.mxu0 %v4289
        %4498 = vmatprep.subr.bf16.mxu0 0
        %4499 = vmatpush1.bf16.msra.mxu0 %v4290
        %4500 = vmatprep.subr.bf16.mxu0 0
        %4501 = vmatpush1.bf16.msra.mxu0 %v4291
        %4502 = vmatprep.subr.bf16.mxu0 0
        %4503 = vmatpush1.bf16.msra.mxu0 %v4292
        %4504 = vmatprep.subr.bf16.mxu0 0
        %4505 = vmatpush1.bf16.msra.mxu0 %v4293
        %4506 = vmatprep.subr.bf16.mxu0 0
        %4507 = vmatpush1.bf16.msra.mxu0 %v4294
        %4508 = vmatprep.subr.bf16.mxu0 0
        %4509 = vmatpush1.bf16.msra.mxu0 %v4295
        %4510 = vmatprep.subr.bf16.mxu0 0
        %4511 = vmatpush1.bf16.msra.mxu0 %v4296
        %4512 = vmatprep.subr.bf16.mxu0 0
        %4513 = vmatpush1.bf16.msra.mxu0 %v4297
        %4514 = vmatprep.subr.bf16.mxu0 0
        %4515 = vmatpush1.bf16.msra.mxu0 %v4298
        %4516 = vmatprep.subr.bf16.mxu0 0
        %4517 = vmatpush1.bf16.msra.mxu0 %v4299
        %4518 = vmatprep.subr.bf16.mxu0 0
        %4519 = vmatpush1.bf16.msra.mxu0 %v4300
        %4520 = vmatprep.subr.bf16.mxu0 0
        %4521 = vmatpush1.bf16.msra.mxu0 %v4301
        %4522 = vmatprep.subr.bf16.mxu0 0
        %4523 = vmatpush1.bf16.msra.mxu0 %v4302
        %4524 = vmatprep.subr.bf16.mxu0 0
        %4525 = vmatpush1.bf16.msra.mxu0 %v4303
        %4526 = vmatprep.mubr.bf16.mxu0 %v3912
        %4527 = vmatmul.mubr.bf16.gmra.mrb[0].mxu0 %v3911
        %v4528 = vpop.f32.mrb[0].mxu0
        %v4529 = vadd.f32 %v4432, %v4528
        %v4530 = vpop.f32.mrb[0].mxu0
        %v4531 = vpop.f32.mrb[0].mxu0
        %v4532 = vadd.f32 %v4435, %v4531
        %v4533 = vpop.f32.mrb[0].mxu0
        %4534 = vmatprep.mubr.bf16.mxu0 %v3919
        %4535 = vmatmul.mubr.bf16.gmra.mrb[0].mxu0 %v3918
        %v4536 = vpop.f32.mrb[0].mxu0
        %v4537 = vadd.f32 %v4440, %v4536
        %v4538 = vpop.f32.mrb[0].mxu0
        %v4539 = vpop.f32.mrb[0].mxu0
        %v4540 = vadd.f32 %v4443, %v4539
        %v4541 = vpop.f32.mrb[0].mxu0
        %4542 = vmatprep.mubr.bf16.mxu0 %v3926
        %4543 = vmatmul.mubr.bf16.gmra.mrb[0].mxu0 %v3925
        %v4544 = vpop.f32.mrb[0].mxu0
        %v4545 = vadd.f32 %v4448, %v4544
        %v4546 = vpop.f32.mrb[0].mxu0
        %v4547 = vpop.f32.mrb[0].mxu0
        %v4548 = vadd.f32 %v4451, %v4547
        %v4549 = vpop.f32.mrb[0].mxu0
        %4550 = vmatprep.mubr.bf16.mxu0 %v3933
        %4551 = vmatmul.mubr.bf16.gmra.mrb[0].mxu0 %v3932
        %v4552 = vpop.f32.mrb[0].mxu0
        %v4553 = vadd.f32 %v4456, %v4552
        %v4554 = vpop.f32.mrb[0].mxu0
        %v4555 = vpop.f32.mrb[0].mxu0
        %v4556 = vadd.f32 %v4459, %v4555
        %v4557 = vpop.f32.mrb[0].mxu0
        %4558 = vmatprep.mubr.bf16.mxu0 %v3940
        %4559 = vmatmul.mubr.bf16.gmra.mrb[0].mxu0 %v3939
        %v4560 = vpop.f32.mrb[0].mxu0
        %v4561 = vadd.f32 %v4464, %v4560
        %v4562 = vpop.f32.mrb[0].mxu0
        %v4563 = vpop.f32.mrb[0].mxu0
        %v4564 = vadd.f32 %v4467, %v4563
        %v4565 = vpop.f32.mrb[0].mxu0
        %4566 = vmatprep.mubr.bf16.mxu0 %v3947
        %4567 = vmatmul.mubr.bf16.gmra.mrb[0].mxu0 %v3946
        %v4568 = vpop.f32.mrb[0].mxu0
        %v4569 = vadd.f32 %v4472, %v4568
        %v4570 = vpop.f32.mrb[0].mxu0
        %v4571 = vpop.f32.mrb[0].mxu0
        %v4572 = vadd.f32 %v4475, %v4571
        %v4573 = vpop.f32.mrb[0].mxu0
        %4574 = vmatprep.mubr.bf16.mxu0 %v3954
        %4575 = vmatmul.mubr.bf16.gmra.mrb[0].mxu0 %v3953
        %v4576 = vpop.f32.mrb[0].mxu0
        %v4577 = vadd.f32 %v4480, %v4576
        %v4578 = vpop.f32.mrb[0].mxu0
        %v4579 = vpop.f32.mrb[0].mxu0
        %v4580 = vadd.f32 %v4483, %v4579
        %v4581 = vpop.f32.mrb[0].mxu0
        %4582 = vmatprep.mubr.bf16.mxu0 %v3961
        %4583 = vmatmul.mubr.bf16.gmra.mrb[0].mxu0 %v3960
        %v4584 = vpop.f32.mrb[0].mxu0
        %v4585 = vadd.f32 %v4488, %v4584
        %v4586 = vpop.f32.mrb[0].mxu0
        %v4587 = vpop.f32.mrb[0].mxu0
        %v4588 = vadd.f32 %v4491, %v4587
        %v4589 = vpop.f32.mrb[0].mxu0
        %4590 = vdwg.mxu0
        %4591 = vmatprep.subr.bf16.mxu0 0
        %4592 = vmatpush1.bf16.msra.mxu0 %v4304
        %4593 = vmatprep.subr.bf16.mxu0 0
        %4594 = vmatpush1.bf16.msra.mxu0 %v4305
        %4595 = vmatprep.subr.bf16.mxu0 0
        %4596 = vmatpush1.bf16.msra.mxu0 %v4306
        %4597 = vmatprep.subr.bf16.mxu0 0
        %4598 = vmatpush1.bf16.msra.mxu0 %v4307
        %4599 = vmatprep.subr.bf16.mxu0 0
        %4600 = vmatpush1.bf16.msra.mxu0 %v4308
        %4601 = vmatprep.subr.bf16.mxu0 0
        %4602 = vmatpush1.bf16.msra.mxu0 %v4309
        %4603 = vmatprep.subr.bf16.mxu0 0
        %4604 = vmatpush1.bf16.msra.mxu0 %v4310
        %4605 = vmatprep.subr.bf16.mxu0 0
        %4606 = vmatpush1.bf16.msra.mxu0 %v4311
        %4607 = vmatprep.subr.bf16.mxu0 0
        %4608 = vmatpush1.bf16.msra.mxu0 %v4312
        %4609 = vmatprep.subr.bf16.mxu0 0
        %4610 = vmatpush1.bf16.msra.mxu0 %v4313
        %4611 = vmatprep.subr.bf16.mxu0 0
        %4612 = vmatpush1.bf16.msra.mxu0 %v4314
        %4613 = vmatprep.subr.bf16.mxu0 0
        %4614 = vmatpush1.bf16.msra.mxu0 %v4315
        %4615 = vmatprep.subr.bf16.mxu0 0
        %4616 = vmatpush1.bf16.msra.mxu0 %v4316
        %4617 = vmatprep.subr.bf16.mxu0 0
        %4618 = vmatpush1.bf16.msra.mxu0 %v4317
        %4619 = vmatprep.subr.bf16.mxu0 0
        %4620 = vmatpush1.bf16.msra.mxu0 %v4318
        %4621 = vmatprep.subr.bf16.mxu0 0
        %4622 = vmatpush1.bf16.msra.mxu0 %v4319
        %4623 = vmatprep.mubr.bf16.mxu0 %v3914
        %4624 = vmatmul.mubr.bf16.gmra.mrb[0].mxu0 %v3913
        %v4625 = vpop.f32.mrb[0].mxu0
        %v4626 = vadd.f32 %v4529, %v4625
        %v4627 = vpop.f32.mrb[0].mxu0
        %v4628 = vpop.f32.mrb[0].mxu0
        %v4629 = vadd.f32 %v4532, %v4628
        %v4630 = vpop.f32.mrb[0].mxu0
        %4631 = vmatprep.mubr.bf16.mxu0 %v3921
        %4632 = vmatmul.mubr.bf16.gmra.mrb[0].mxu0 %v3920
        %v4633 = vpop.f32.mrb[0].mxu0
        %v4634 = vadd.f32 %v4537, %v4633
        %v4635 = vpop.f32.mrb[0].mxu0
        %v4636 = vpop.f32.mrb[0].mxu0
        %v4637 = vadd.f32 %v4540, %v4636
        %v4638 = vpop.f32.mrb[0].mxu0
        %4639 = vmatprep.mubr.bf16.mxu0 %v3928
        %4640 = vmatmul.mubr.bf16.gmra.mrb[0].mxu0 %v3927
        %v4641 = vpop.f32.mrb[0].mxu0
        %v4642 = vadd.f32 %v4545, %v4641
        %v4643 = vpop.f32.mrb[0].mxu0
        %v4644 = vpop.f32.mrb[0].mxu0
        %v4645 = vadd.f32 %v4548, %v4644
        %v4646 = vpop.f32.mrb[0].mxu0
        %4647 = vmatprep.mubr.bf16.mxu0 %v3935
        %4648 = vmatmul.mubr.bf16.gmra.mrb[0].mxu0 %v3934
        %v4649 = vpop.f32.mrb[0].mxu0
        %v4650 = vadd.f32 %v4553, %v4649
        %v4651 = vpop.f32.mrb[0].mxu0
        %v4652 = vpop.f32.mrb[0].mxu0
        %v4653 = vadd.f32 %v4556, %v4652
        %v4654 = vpop.f32.mrb[0].mxu0
        %4655 = vmatprep.mubr.bf16.mxu0 %v3942
        %4656 = vmatmul.mubr.bf16.gmra.mrb[0].mxu0 %v3941
        %v4657 = vpop.f32.mrb[0].mxu0
        %v4658 = vadd.f32 %v4561, %v4657
        %v4659 = vpop.f32.mrb[0].mxu0
        %v4660 = vpop.f32.mrb[0].mxu0
        %v4661 = vadd.f32 %v4564, %v4660
        %v4662 = vpop.f32.mrb[0].mxu0
        %4663 = vmatprep.mubr.bf16.mxu0 %v3949
        %4664 = vmatmul.mubr.bf16.gmra.mrb[0].mxu0 %v3948
        %v4665 = vpop.f32.mrb[0].mxu0
        %v4666 = vadd.f32 %v4569, %v4665
        %v4667 = vpop.f32.mrb[0].mxu0
        %v4668 = vpop.f32.mrb[0].mxu0
        %v4669 = vadd.f32 %v4572, %v4668
        %v4670 = vpop.f32.mrb[0].mxu0
        %4671 = vmatprep.mubr.bf16.mxu0 %v3956
        %4672 = vmatmul.mubr.bf16.gmra.mrb[0].mxu0 %v3955
        %v4673 = vpop.f32.mrb[0].mxu0
        %v4674 = vadd.f32 %v4577, %v4673
        %v4675 = vpop.f32.mrb[0].mxu0
        %v4676 = vpop.f32.mrb[0].mxu0
        %v4677 = vadd.f32 %v4580, %v4676
        %v4678 = vpop.f32.mrb[0].mxu0
        %4679 = vmatprep.mubr.bf16.mxu0 %v3963
        %4680 = vmatmul.mubr.bf16.gmra.mrb[0].mxu0 %v3962
        %v4681 = vpop.f32.mrb[0].mxu0
        %v4682 = vadd.f32 %v4585, %v4681
        %v4683 = vpop.f32.mrb[0].mxu0
        %v4684 = vpop.f32.mrb[0].mxu0
        %v4685 = vadd.f32 %v4588, %v4684
        %v4686 = vpop.f32.mrb[0].mxu0
        %4687 = vdwg.mxu0
        %4688 = vmatprep.subr.bf16.mxu0 0
        %4689 = vmatpush1.bf16.msra.mxu0 %v4320
        %4690 = vmatprep.subr.bf16.mxu0 0
        %4691 = vmatpush1.bf16.msra.mxu0 %v4321
        %4692 = vmatprep.subr.bf16.mxu0 0
        %4693 = vmatpush1.bf16.msra.mxu0 0
        %4694 = vmatprep.subr.bf16.mxu0 0
        %4695 = vmatpush1.bf16.msra.mxu0 0
        %4696 = vmatprep.subr.bf16.mxu0 0
        %4697 = vmatpush1.bf16.msra.mxu0 0
        %4698 = vmatprep.subr.bf16.mxu0 0
        %4699 = vmatpush1.bf16.msra.mxu0 0
        %4700 = vmatprep.subr.bf16.mxu0 0
        %4701 = vmatpush1.bf16.msra.mxu0 0
        %4702 = vmatprep.subr.bf16.mxu0 0
        %4703 = vmatpush1.bf16.msra.mxu0 0
        %4704 = vmatprep.subr.bf16.mxu0 0
        %4705 = vmatpush1.bf16.msra.mxu0 0
        %4706 = vmatprep.subr.bf16.mxu0 0
        %4707 = vmatpush1.bf16.msra.mxu0 0
        %4708 = vmatprep.subr.bf16.mxu0 0
        %4709 = vmatpush1.bf16.msra.mxu0 0
        %4710 = vmatprep.subr.bf16.mxu0 0
        %4711 = vmatpush1.bf16.msra.mxu0 0
        %4712 = vmatprep.subr.bf16.mxu0 0
        %4713 = vmatpush1.bf16.msra.mxu0 0
        %4714 = vmatprep.subr.bf16.mxu0 0
        %4715 = vmatpush1.bf16.msra.mxu0 0
        %4716 = vmatprep.subr.bf16.mxu0 0
        %4717 = vmatpush1.bf16.msra.mxu0 0
        %4718 = vmatprep.subr.bf16.mxu0 0
        %4719 = vmatpush1.bf16.msra.mxu0 0
        %4720 = vmatprep.mubr.bf16.mxu0 0
        %4721 = vmatmul.mubr.bf16.gmra.mrb[0].mxu0 %v4374
        %v4722 = vpop.f32.mrb[0].mxu0
        %v4723 = vadd.f32 %v4626, %v4722
        %v4724 = vpop.f32.mrb[0].mxu0
        %v4725 = vpop.f32.mrb[0].mxu0
        %v4726 = vadd.f32 %v4629, %v4725
        %v4727 = vpop.f32.mrb[0].mxu0
        %4728 = vmatprep.mubr.bf16.mxu0 0
        %4729 = vmatmul.mubr.bf16.gmra.mrb[0].mxu0 %v4377
        %v4730 = vpop.f32.mrb[0].mxu0
        %v4731 = vadd.f32 %v4634, %v4730
        %v4732 = vpop.f32.mrb[0].mxu0
        %v4733 = vpop.f32.mrb[0].mxu0
        %v4734 = vadd.f32 %v4637, %v4733
        %v4735 = vpop.f32.mrb[0].mxu0
        %4736 = vmatprep.mubr.bf16.mxu0 0
        %4737 = vmatmul.mubr.bf16.gmra.mrb[0].mxu0 %v4380
        %v4738 = vpop.f32.mrb[0].mxu0
        %v4739 = vadd.f32 %v4642, %v4738
        %v4740 = vpop.f32.mrb[0].mxu0
        %v4741 = vpop.f32.mrb[0].mxu0
        %v4742 = vadd.f32 %v4645, %v4741
        %v4743 = vpop.f32.mrb[0].mxu0
        %4744 = vmatprep.mubr.bf16.mxu0 0
        %4745 = vmatmul.mubr.bf16.gmra.mrb[0].mxu0 %v4383
        %v4746 = vpop.f32.mrb[0].mxu0
        %v4747 = vadd.f32 %v4650, %v4746
        %v4748 = vpop.f32.mrb[0].mxu0
        %v4749 = vpop.f32.mrb[0].mxu0
        %v4750 = vadd.f32 %v4653, %v4749
        %v4751 = vpop.f32.mrb[0].mxu0
        %4752 = vmatprep.mubr.bf16.mxu0 0
        %4753 = vmatmul.mubr.bf16.gmra.mrb[0].mxu0 %v4386
        %v4754 = vpop.f32.mrb[0].mxu0
        %v4755 = vadd.f32 %v4658, %v4754
        %v4756 = vpop.f32.mrb[0].mxu0
        %v4757 = vpop.f32.mrb[0].mxu0
        %v4758 = vadd.f32 %v4661, %v4757
        %v4759 = vpop.f32.mrb[0].mxu0
        %4760 = vmatprep.mubr.bf16.mxu0 0
        %4761 = vmatmul.mubr.bf16.gmra.mrb[0].mxu0 %v4389
        %v4762 = vpop.f32.mrb[0].mxu0
        %v4763 = vadd.f32 %v4666, %v4762
        %v4764 = vpop.f32.mrb[0].mxu0
        %v4765 = vpop.f32.mrb[0].mxu0
        %v4766 = vadd.f32 %v4669, %v4765
        %v4767 = vpop.f32.mrb[0].mxu0
        %4768 = vmatprep.mubr.bf16.mxu0 0
        %4769 = vmatmul.mubr.bf16.gmra.mrb[0].mxu0 %v4392
        %v4770 = vpop.f32.mrb[0].mxu0
        %v4771 = vadd.f32 %v4674, %v4770
        %v4772 = vpop.f32.mrb[0].mxu0
        %v4773 = vpop.f32.mrb[0].mxu0
        %v4774 = vadd.f32 %v4677, %v4773
        %v4775 = vpop.f32.mrb[0].mxu0
        %4776 = vmatprep.mubr.bf16.mxu0 0
        %4777 = vmatmul.mubr.bf16.gmra.mrb[0].mxu0 %v4395
        %v4778 = vpop.f32.mrb[0].mxu0
        %v4779 = vadd.f32 %v4682, %v4778
        %v4780 = vpop.f32.mrb[0].mxu0
        %v4781 = vpop.f32.mrb[0].mxu0
        %v4782 = vadd.f32 %v4685, %v4781
        %v4783 = vpop.f32.mrb[0].mxu0
        %4784 = vdwg.mxu0
        %4785 = vst [vmem:[%s319] sm:$0xff] %v4723
        %4786 = vst [vmem:[%s319 + $0x8] sm:$0xff] %v4726
        %4787 = vst [vmem:[%s319 + $0x10] sm:$0xff] %v4731
        %4788 = vst [vmem:[%s319 + $0x18] sm:$0xff] %v4734
        %4789 = vst [vmem:[%s319 + $0x20] sm:$0xff] %v4739
        %4790 = vst [vmem:[%s319 + $0x28] sm:$0xff] %v4742
        %4791 = vst [vmem:[%s319 + $0x30] sm:$0xff] %v4747
        %4792 = vst [vmem:[%s319 + $0x38] sm:$0xff] %v4750
        %4793 = vst [vmem:[%s319 + $0x40] sm:$0xff] %v4755
        %4794 = vst [vmem:[%s319 + $0x48] sm:$0xff] %v4758
        %4795 = vst [vmem:[%s319 + $0x50] sm:$0xff] %v4763
        %4796 = vst [vmem:[%s319 + $0x58] sm:$0xff] %v4766
        %4797 = vst [vmem:[%s319 + $0x60] sm:$0xff] %v4771
        %4798 = vst [vmem:[%s319 + $0x68] sm:$0xff] %v4774
        %4799 = vst [vmem:[%s319 + $0x70] sm:$0xff] %v4779
        %4800 = vst [vmem:[%s319 + $0x78] sm:$0xff] %v4782
        %s4801 = sand.u32 %s208, 1
        %s4802 = scalar_lea.sflag [#allocation3], %s4801
        %s4803 = sand.u32 %s208, 1
        %s4804 = smul.addr %s4803, 128
        %s4805 = scalar_lea.vmem [#allocation2], %s4804
        // Predicated region
        $region53: #{tpu_custom_call.1} parent=51 // pred_check
          %p4806 = pneg %p218
        $region54: #{tpu_custom_call.1} parent=51 // pred_check_branch
          %4808 = sbr.rel (%p4806) target = $region56
        $region55: #{tpu_custom_call.1} parent=51 // pred_region
          %s4809 = smul.u32 16, %s22
          %s4811 = ssub.s32 2048, 2048
          %4812 = vsyncadd %s4802, %s4811
          %s4813 = smul.addr %s4809, 128
          %s4814 = scalar_lea.hbm %s8, %s4813
          %s4815 = sshll.u32 %s4805, 4
          %s4816 = int_to_ptr.vmem [resolvable:$true] %s4815
          %4821 = dma.vmem_to_hbm [thread:$0]  %s4816, 2048, %s4814, %s4802, 128, 128, 8
        $region56: #{tpu_custom_call.1} parent=51 // pred_fallthru
          _
      $region52: #{tpu_custom_call.1} parent=5 // pred_fallthru
        _
      %p4822 = scmp.le.s32.totalorder 2, %s17
      // Predicated region
      $region57: #{tpu_custom_call.1} parent=5 // pred_check
        %p4823 = pneg %p4822
      $region58: #{tpu_custom_call.1} parent=5 // pred_check_branch
        %4825 = sbr.rel (%p4823) target = $region60
      $region59: #{tpu_custom_call.1} parent=5 // pred_region
        %s4826 = ssub.s32 %s17, 2
        // Predicated region
        $region61: #{tpu_custom_call.1} parent=59 // pred_check
          %p4827 = pneg %p224
        $region62: #{tpu_custom_call.1} parent=59 // pred_check_branch
          %4829 = sbr.rel (%p4827) target = $region64
        $region63: #{tpu_custom_call.1} parent=59 // pred_region
          %s4830 = sand.u32 %s209, 1
          %s4831 = scalar_lea.sflag [#allocation3], %s4830
          %s4832 = sand.u32 %s209, 1
          %s4833 = smul.addr %s4832, 128
          %s4834 = scalar_lea.vmem [#allocation2], %s4833
          %4835 = dma.done %s4831, 2048
        $region64: #{tpu_custom_call.1} parent=59 // pred_fallthru
          _
      $region60: #{tpu_custom_call.1} parent=5 // pred_fallthru
        _
    $region6: #{tpu_custom_call.1} parent=1 // loop_footer
      %s21 = sadd.s32 1, %s17
    $region7: #{tpu_custom_call.1} parent=1 // loop_footer_branch
      %16 = sbr.rel target = $region3
    $region8: #{tpu_custom_call.1} parent=1 // loop_exit
      _
    %4836 = vsyncpa [#allocation3], 1
    %s4837 = scalar_lea.sflag [#allocation3], 1
    %4838 = vsyncpa %s4837, 1

</llo_original>
